<compile_context>
chip_gen: v5e
topology: v5e:2x2
jax: 0.10.0
libtpu: 0.0.40
codegen_flags: <defaults>
</compile_context>

<pallas_src>
import math
import jax
import jax.numpy as jnp
from jax.experimental import pallas as pl
from jax.experimental.pallas import tpu as pltpu  # noqa: F401  (TPU backend)

# ----------------------------- config (small) --------------------------------
IMAGE_SIZE   = 16
PATCH_SIZE   = 4
NUM_CHANNELS = 3
HIDDEN       = 32
INTERMEDIATE = 64
NUM_HEADS    = 4
HEAD_DIM     = HIDDEN // NUM_HEADS
NUM_LAYERS   = 2
NUM_CLASSES  = 10
BATCH        = 2

GRID_HW     = IMAGE_SIZE // PATCH_SIZE
NUM_PATCHES = GRID_HW * GRID_HW                        # 16
SEQ         = NUM_PATCHES + 1                          # 17 (cls token)
PATCH_DIM   = NUM_CHANNELS * PATCH_SIZE * PATCH_SIZE   # 48
EPS         = 1e-6


# ----------------------------- kernel helpers --------------------------------
def _layernorm(x, gamma, beta):
    mean = jnp.mean(x, axis=-1, keepdims=True)
    var = jnp.mean((x - mean) ** 2, axis=-1, keepdims=True)
    return (x - mean) * jax.lax.rsqrt(var + EPS) * gamma + beta


def _quick_gelu(x):
    # QuickGLEU: x * sigmoid(1.702 * x)
    return x * jax.nn.sigmoid(1.702 * x)


def _mm(a, w_bf16):
    # bf16 MXU matmul with f32 accumulation; weights are pre-cast to bf16.
    return jnp.dot(a.astype(jnp.bfloat16), w_bf16,
                   preferred_element_type=jnp.float32)


# ----------------------------- fused Pallas kernel ----------------------------
def fused_vit_kernel(*refs):
    o_ref = refs[-1]
    vals = [r[...] for r in refs[:-1]]
    cursor = [0]

    def take(n):
        i = cursor[0]
        cursor[0] = i + n
        return vals[i:i + n]

    patches, pos, cls_tok, cls_mask, attn_bias = take(5)
    wp, bp, g_pe, b_pe, wd, bd = take(6)                      # patch embeddings
    pre_g, pre_b = take(2)                                    # ViTModel.pre_norm
    layer_ws = [take(12) for _ in range(NUM_LAYERS)]          # ViTLayer x N
    post_g, post_b, wpool, bpool, wg1, bg1, wg2, bg2 = take(8)

    bs = patches.shape[0]                                     # B * SEQ
    b_count = bs // SEQ

    # --- ViTPatchEmbeddings: conv-as-matmul + LayerNorm + dense
    # (rows at cls positions are zero dummies; masked out just below)
    h = _mm(patches, wp) + bp
    h = _layernorm(h, g_pe, b_pe)
    pe = _mm(h, wd) + bd                                      # (BS, H)

    # --- ViTEmbeddings: splice cls token at rows b*SEQ, add cos pos embedding
    x = cls_mask * cls_tok + (1.0 - cls_mask) * pe + pos      # (BS, H)

    # --- ViTModel.pre_norm
    x = _layernorm(x, pre_g, pre_b)

    inv_scale = 1.0 / (float(HEAD_DIM) ** 0.5)

    # --- encoder: NUM_LAYERS ViTLayers, unrolled in Python
    for (g1, b1, w_qkv, b_qkv, wc, bc, g2, b2, w1, bb1, w2, bb2) in layer_ws:
        hn = _layernorm(x, g1, b1)
        qkv = _mm(hn, w_qkv) + b_qkv                          # (BS, 3H) f32

        ctx_heads = []
        for hd in range(NUM_HEADS):                           # unrolled, 4 heads
            lo = hd * HEAD_DIM
            qh = qkv[:, lo:lo + HEAD_DIM].astype(jnp.bfloat16)
            kh = qkv[:, HIDDEN + lo:HIDDEN + lo + HEAD_DIM].astype(jnp.bfloat16)
            vh = qkv[:, 2 * HIDDEN + lo:2 * HIDDEN + lo + HEAD_DIM].astype(jnp.bfloat16)

            s = jax.lax.dot_general(qh, kh, (((1,), (1,)), ((), ())),
                                    preferred_element_type=jnp.float32)
            s = s * inv_scale + attn_bias                     # block-diag batch mask
            s = s - jnp.max(s, axis=-1, keepdims=True)
            e = jnp.exp(s)
            p = e * pl.reciprocal(jnp.sum(e, axis=-1, keepdims=True), approx=True)
            ctx_heads.append(jnp.dot(p.astype(jnp.bfloat16), vh,
                                     preferred_element_type=jnp.float32))

        ctx = jnp.concatenate(ctx_heads, axis=-1)             # (BS, H)
        x = x + _mm(ctx, wc) + bc                             # single c_proj matmul

        h2 = _layernorm(x, g2, b2)
        m = _quick_gelu(_mm(h2, w1) + bb1)
        x = x + _mm(m, w2) + bb2

    # --- post_norm -> pooler(first token, dense, tanh) -> generator
    cls_rows = jnp.concatenate(
        [x[b * SEQ:b * SEQ + 1, :] for b in range(b_count)], axis=0)   # (B, H)
    cls_rows = _layernorm(cls_rows, post_g, post_b)   # row-wise LN on cls rows only == exact
    pooled = jnp.tanh(_mm(cls_rows, wpool) + bpool)
    g = _quick_gelu(_mm(pooled, wg1) + bg1)
    o_ref[...] = _mm(g, wg2) + bg2                            # (B, NUM_CLASSES)


# ----------------------------- pallas_call wrapper ----------------------------
def _full_spec(a):
    nd = a.ndim
    return pl.BlockSpec(a.shape, lambda *_: (0,) * nd)


def extract_patches(x):
    # x: (B, C, H, W) NCHW -> (B, num_patches, C*p*p); matches Conv2d with
    # kernel=stride=patch and weight flattened in (c, kh, kw) order.
    B, C, H, W = x.shape
    p = PATCH_SIZE
    x = x.reshape(B, C, H // p, p, W // p, p)
    x = x.transpose(0, 2, 4, 1, 3, 5)
    return x.reshape(B, (H // p) * (W // p), C * p * p)


def vit_forward(x, params):
    assert x.shape[1:] == (NUM_CHANNELS, IMAGE_SIZE, IMAGE_SIZE)
    B = x.shape[0]
    BS = B * SEQ

    # glue (pure data movement / tiny constants), done once per call in XLA
    patches = extract_patches(x)                              # (B, N, PD)
    patches = jnp.pad(patches, ((0, 0), (1, 0), (0, 0)))      # zero dummy cls rows
    patches = patches.reshape(BS, PATCH_DIM)
    pos = jnp.tile(params["pos"], (B, 1))                     # (BS, H)

    seg = jnp.repeat(jnp.arange(B, dtype=jnp.int32), SEQ)     # batch id per row
    attn_bias = jnp.where(seg[:, None] == seg[None, :], 0.0, -1e30
                          ).astype(jnp.float32)               # (BS, BS)
    cls_mask = ((jnp.arange(BS, dtype=jnp.int32) % SEQ) == 0
                ).astype(jnp.float32)[:, None]                # (BS, 1)

    inputs = [patches, pos, params["cls"], cls_mask, attn_bias]
    inputs += list(params["patch"]) + list(params["pre_norm"])
    for lw in params["layers"]:
        inputs += list(lw)
    inputs += list(params["head"])

    return pl.pallas_call(
        fused_vit_kernel,
        out_shape=jax.ShapeDtypeStruct((B, NUM_CLASSES), jnp.float32),
        in_specs=[_full_spec(a) for a in inputs],
        out_specs=pl.BlockSpec((B, NUM_CLASSES), lambda *_: (0, 0)),
    )(*inputs)


# ----------------------------- parameters ------------------------------------
def build_cos_position_embedding(d_model, max_len=10000):
    den = jnp.exp(-jnp.arange(0, d_model, 2, dtype=jnp.float32)
                  * math.log(float(max_len)) / d_model)
    pos = jnp.arange(0, max_len, dtype=jnp.float32).reshape(max_len, 1)
    pe = jnp.zeros((max_len, d_model), jnp.float32)
    pe = pe.at[:, 0::2].set(jnp.sin(pos * den))
    pe = pe.at[:, 1::2].set(jnp.cos(pos * den))
    pe_token = jnp.zeros((1, d_model), jnp.float32)
    return jnp.concatenate([pe_token, pe], axis=0)


def init_params(key):
    def nxt():
        nonlocal key
        key, sub = jax.random.split(key)
        return sub

    def dense(fan_in, fan_out):
        # weight matrices are pre-cast to bf16 (MXU-native); biases stay f32
        w = jax.random.normal(nxt(), (fan_in, fan_out), jnp.float32) * 0.02
        b = jax.random.normal(nxt(), (1, fan_out), jnp.float32) * 0.02
        return w.astype(jnp.bfloat16), b

    def ln():
        return jnp.ones((1, HIDDEN), jnp.float32), jnp.zeros((1, HIDDEN), jnp.float32)

    # patch embeddings: conv-as-matmul weight, bias, LN, dense
    wp, bp = dense(PATCH_DIM, HIDDEN)
    g_pe, b_pe = ln()
    wd, bd = dense(HIDDEN, HIDDEN)
    patch = (wp, bp, g_pe, b_pe, wd, bd)

    cls_token = jax.random.normal(nxt(), (1, HIDDEN), jnp.float32) * HIDDEN ** (-0.5)
    pos = build_cos_position_embedding(HIDDEN)[:SEQ]          # (SEQ, H)

    pre_norm = ln()

    layers = []
    for _ in range(NUM_LAYERS):
        g1, b1 = ln()
        w_qkv, b_qkv = dense(HIDDEN, 3 * HIDDEN)              # fused q/k/v
        wc, bc = dense(HIDDEN, HIDDEN)
        g2, b2 = ln()
        w1, bb1 = dense(HIDDEN, INTERMEDIATE)
        w2, bb2 = dense(INTERMEDIATE, HIDDEN)
        layers.append((g1, b1, w_qkv, b_qkv, wc, bc, g2, b2, w1, bb1, w2, bb2))

    post_g, post_b = ln()
    wpool, bpool = dense(HIDDEN, HIDDEN)
    wg1, bg1 = dense(HIDDEN, INTERMEDIATE)
    wg2, bg2 = dense(INTERMEDIATE, NUM_CLASSES)
    head = (post_g, post_b, wpool, bpool, wg1, bg1, wg2, bg2)

    return {"patch": patch, "cls": cls_token, "pos": pos,
            "pre_norm": pre_norm, "layers": layers, "head": head}


# ----------------------------- main -------------------------------------------
if __name__ == "__main__":
    key = jax.random.PRNGKey(0)
    k_param, k_input = jax.random.split(key)
    params = init_params(k_param)
    x = jax.random.normal(k_input, (BATCH, NUM_CHANNELS, IMAGE_SIZE, IMAGE_SIZE),
                          jnp.float32)
    out = jax.jit(vit_forward)(x, params)
    out = jax.block_until_ready(out)
    assert out.shape == (BATCH, NUM_CLASSES)
    assert bool(jnp.all(jnp.isfinite(out)))
    print("KERNEL_OK")
</pallas_src>

<mosaic_0001>
module attributes {stable_mosaic.version = 11 : i64} {
  func.func @fused_vit_kernel(%arg0: memref<34x48xf32, #tpu.memory_space<vmem>>, %arg1: memref<34x32xf32, #tpu.memory_space<vmem>>, %arg2: memref<1x32xf32, #tpu.memory_space<vmem>>, %arg3: memref<34x1xf32, #tpu.memory_space<vmem>>, %arg4: memref<34x34xf32, #tpu.memory_space<vmem>>, %arg5: memref<48x32xbf16, #tpu.memory_space<vmem>>, %arg6: memref<1x32xf32, #tpu.memory_space<vmem>>, %arg7: memref<1x32xf32, #tpu.memory_space<vmem>>, %arg8: memref<1x32xf32, #tpu.memory_space<vmem>>, %arg9: memref<32x32xbf16, #tpu.memory_space<vmem>>, %arg10: memref<1x32xf32, #tpu.memory_space<vmem>>, %arg11: memref<1x32xf32, #tpu.memory_space<vmem>>, %arg12: memref<1x32xf32, #tpu.memory_space<vmem>>, %arg13: memref<1x32xf32, #tpu.memory_space<vmem>>, %arg14: memref<1x32xf32, #tpu.memory_space<vmem>>, %arg15: memref<32x96xbf16, #tpu.memory_space<vmem>>, %arg16: memref<1x96xf32, #tpu.memory_space<vmem>>, %arg17: memref<32x32xbf16, #tpu.memory_space<vmem>>, %arg18: memref<1x32xf32, #tpu.memory_space<vmem>>, %arg19: memref<1x32xf32, #tpu.memory_space<vmem>>, %arg20: memref<1x32xf32, #tpu.memory_space<vmem>>, %arg21: memref<32x64xbf16, #tpu.memory_space<vmem>>, %arg22: memref<1x64xf32, #tpu.memory_space<vmem>>, %arg23: memref<64x32xbf16, #tpu.memory_space<vmem>>, %arg24: memref<1x32xf32, #tpu.memory_space<vmem>>, %arg25: memref<1x32xf32, #tpu.memory_space<vmem>>, %arg26: memref<1x32xf32, #tpu.memory_space<vmem>>, %arg27: memref<32x96xbf16, #tpu.memory_space<vmem>>, %arg28: memref<1x96xf32, #tpu.memory_space<vmem>>, %arg29: memref<32x32xbf16, #tpu.memory_space<vmem>>, %arg30: memref<1x32xf32, #tpu.memory_space<vmem>>, %arg31: memref<1x32xf32, #tpu.memory_space<vmem>>, %arg32: memref<1x32xf32, #tpu.memory_space<vmem>>, %arg33: memref<32x64xbf16, #tpu.memory_space<vmem>>, %arg34: memref<1x64xf32, #tpu.memory_space<vmem>>, %arg35: memref<64x32xbf16, #tpu.memory_space<vmem>>, %arg36: memref<1x32xf32, #tpu.memory_space<vmem>>, %arg37: memref<1x32xf32, #tpu.memory_space<vmem>>, %arg38: memref<1x32xf32, #tpu.memory_space<vmem>>, %arg39: memref<32x32xbf16, #tpu.memory_space<vmem>>, %arg40: memref<1x32xf32, #tpu.memory_space<vmem>>, %arg41: memref<32x64xbf16, #tpu.memory_space<vmem>>, %arg42: memref<1x64xf32, #tpu.memory_space<vmem>>, %arg43: memref<64x10xbf16, #tpu.memory_space<vmem>>, %arg44: memref<1x10xf32, #tpu.memory_space<vmem>>, %arg45: memref<2x10xf32, #tpu.memory_space<vmem>>) attributes {dimension_semantics = [], scalar_prefetch = 0 : i64, scratch_operands = 0 : i64, tpu.core_type = #tpu.core_type<tc>} {
    %c0 = arith.constant 0 : index
    %c0_0 = arith.constant 0 : index
    %0 = vector.load %arg0[%c0, %c0_0] : memref<34x48xf32, #tpu.memory_space<vmem>>, vector<34x48xf32>
    %c0_1 = arith.constant 0 : index
    %c0_2 = arith.constant 0 : index
    %1 = vector.load %arg1[%c0_1, %c0_2] : memref<34x32xf32, #tpu.memory_space<vmem>>, vector<34x32xf32>
    %c0_3 = arith.constant 0 : index
    %c0_4 = arith.constant 0 : index
    %2 = vector.load %arg2[%c0_3, %c0_4] : memref<1x32xf32, #tpu.memory_space<vmem>>, vector<1x32xf32>
    %c0_5 = arith.constant 0 : index
    %c0_6 = arith.constant 0 : index
    %3 = vector.load %arg3[%c0_5, %c0_6] : memref<34x1xf32, #tpu.memory_space<vmem>>, vector<34x1xf32>
    %c0_7 = arith.constant 0 : index
    %c0_8 = arith.constant 0 : index
    %4 = vector.load %arg4[%c0_7, %c0_8] : memref<34x34xf32, #tpu.memory_space<vmem>>, vector<34x34xf32>
    %c0_9 = arith.constant 0 : index
    %c0_10 = arith.constant 0 : index
    %5 = vector.load %arg5[%c0_9, %c0_10] : memref<48x32xbf16, #tpu.memory_space<vmem>>, vector<48x32xbf16>
    %c0_11 = arith.constant 0 : index
    %c0_12 = arith.constant 0 : index
    %6 = vector.load %arg6[%c0_11, %c0_12] : memref<1x32xf32, #tpu.memory_space<vmem>>, vector<1x32xf32>
    %c0_13 = arith.constant 0 : index
    %c0_14 = arith.constant 0 : index
    %7 = vector.load %arg7[%c0_13, %c0_14] : memref<1x32xf32, #tpu.memory_space<vmem>>, vector<1x32xf32>
    %c0_15 = arith.constant 0 : index
    %c0_16 = arith.constant 0 : index
    %8 = vector.load %arg8[%c0_15, %c0_16] : memref<1x32xf32, #tpu.memory_space<vmem>>, vector<1x32xf32>
    %c0_17 = arith.constant 0 : index
    %c0_18 = arith.constant 0 : index
    %9 = vector.load %arg9[%c0_17, %c0_18] : memref<32x32xbf16, #tpu.memory_space<vmem>>, vector<32x32xbf16>
    %c0_19 = arith.constant 0 : index
    %c0_20 = arith.constant 0 : index
    %10 = vector.load %arg10[%c0_19, %c0_20] : memref<1x32xf32, #tpu.memory_space<vmem>>, vector<1x32xf32>
    %c0_21 = arith.constant 0 : index
    %c0_22 = arith.constant 0 : index
    %11 = vector.load %arg11[%c0_21, %c0_22] : memref<1x32xf32, #tpu.memory_space<vmem>>, vector<1x32xf32>
    %c0_23 = arith.constant 0 : index
    %c0_24 = arith.constant 0 : index
    %12 = vector.load %arg12[%c0_23, %c0_24] : memref<1x32xf32, #tpu.memory_space<vmem>>, vector<1x32xf32>
    %c0_25 = arith.constant 0 : index
    %c0_26 = arith.constant 0 : index
    %13 = vector.load %arg13[%c0_25, %c0_26] : memref<1x32xf32, #tpu.memory_space<vmem>>, vector<1x32xf32>
    %c0_27 = arith.constant 0 : index
    %c0_28 = arith.constant 0 : index
    %14 = vector.load %arg14[%c0_27, %c0_28] : memref<1x32xf32, #tpu.memory_space<vmem>>, vector<1x32xf32>
    %c0_29 = arith.constant 0 : index
    %c0_30 = arith.constant 0 : index
    %15 = vector.load %arg15[%c0_29, %c0_30] : memref<32x96xbf16, #tpu.memory_space<vmem>>, vector<32x96xbf16>
    %c0_31 = arith.constant 0 : index
    %c0_32 = arith.constant 0 : index
    %16 = vector.load %arg16[%c0_31, %c0_32] : memref<1x96xf32, #tpu.memory_space<vmem>>, vector<1x96xf32>
    %c0_33 = arith.constant 0 : index
    %c0_34 = arith.constant 0 : index
    %17 = vector.load %arg17[%c0_33, %c0_34] : memref<32x32xbf16, #tpu.memory_space<vmem>>, vector<32x32xbf16>
    %c0_35 = arith.constant 0 : index
    %c0_36 = arith.constant 0 : index
    %18 = vector.load %arg18[%c0_35, %c0_36] : memref<1x32xf32, #tpu.memory_space<vmem>>, vector<1x32xf32>
    %c0_37 = arith.constant 0 : index
    %c0_38 = arith.constant 0 : index
    %19 = vector.load %arg19[%c0_37, %c0_38] : memref<1x32xf32, #tpu.memory_space<vmem>>, vector<1x32xf32>
    %c0_39 = arith.constant 0 : index
    %c0_40 = arith.constant 0 : index
    %20 = vector.load %arg20[%c0_39, %c0_40] : memref<1x32xf32, #tpu.memory_space<vmem>>, vector<1x32xf32>
    %c0_41 = arith.constant 0 : index
    %c0_42 = arith.constant 0 : index
    %21 = vector.load %arg21[%c0_41, %c0_42] : memref<32x64xbf16, #tpu.memory_space<vmem>>, vector<32x64xbf16>
    %c0_43 = arith.constant 0 : index
    %c0_44 = arith.constant 0 : index
    %22 = vector.load %arg22[%c0_43, %c0_44] : memref<1x64xf32, #tpu.memory_space<vmem>>, vector<1x64xf32>
    %c0_45 = arith.constant 0 : index
    %c0_46 = arith.constant 0 : index
    %23 = vector.load %arg23[%c0_45, %c0_46] : memref<64x32xbf16, #tpu.memory_space<vmem>>, vector<64x32xbf16>
    %c0_47 = arith.constant 0 : index
    %c0_48 = arith.constant 0 : index
    %24 = vector.load %arg24[%c0_47, %c0_48] : memref<1x32xf32, #tpu.memory_space<vmem>>, vector<1x32xf32>
    %c0_49 = arith.constant 0 : index
    %c0_50 = arith.constant 0 : index
    %25 = vector.load %arg25[%c0_49, %c0_50] : memref<1x32xf32, #tpu.memory_space<vmem>>, vector<1x32xf32>
    %c0_51 = arith.constant 0 : index
    %c0_52 = arith.constant 0 : index
    %26 = vector.load %arg26[%c0_51, %c0_52] : memref<1x32xf32, #tpu.memory_space<vmem>>, vector<1x32xf32>
    %c0_53 = arith.constant 0 : index
    %c0_54 = arith.constant 0 : index
    %27 = vector.load %arg27[%c0_53, %c0_54] : memref<32x96xbf16, #tpu.memory_space<vmem>>, vector<32x96xbf16>
    %c0_55 = arith.constant 0 : index
    %c0_56 = arith.constant 0 : index
    %28 = vector.load %arg28[%c0_55, %c0_56] : memref<1x96xf32, #tpu.memory_space<vmem>>, vector<1x96xf32>
    %c0_57 = arith.constant 0 : index
    %c0_58 = arith.constant 0 : index
    %29 = vector.load %arg29[%c0_57, %c0_58] : memref<32x32xbf16, #tpu.memory_space<vmem>>, vector<32x32xbf16>
    %c0_59 = arith.constant 0 : index
    %c0_60 = arith.constant 0 : index
    %30 = vector.load %arg30[%c0_59, %c0_60] : memref<1x32xf32, #tpu.memory_space<vmem>>, vector<1x32xf32>
    %c0_61 = arith.constant 0 : index
    %c0_62 = arith.constant 0 : index
    %31 = vector.load %arg31[%c0_61, %c0_62] : memref<1x32xf32, #tpu.memory_space<vmem>>, vector<1x32xf32>
    %c0_63 = arith.constant 0 : index
    %c0_64 = arith.constant 0 : index
    %32 = vector.load %arg32[%c0_63, %c0_64] : memref<1x32xf32, #tpu.memory_space<vmem>>, vector<1x32xf32>
    %c0_65 = arith.constant 0 : index
    %c0_66 = arith.constant 0 : index
    %33 = vector.load %arg33[%c0_65, %c0_66] : memref<32x64xbf16, #tpu.memory_space<vmem>>, vector<32x64xbf16>
    %c0_67 = arith.constant 0 : index
    %c0_68 = arith.constant 0 : index
    %34 = vector.load %arg34[%c0_67, %c0_68] : memref<1x64xf32, #tpu.memory_space<vmem>>, vector<1x64xf32>
    %c0_69 = arith.constant 0 : index
    %c0_70 = arith.constant 0 : index
    %35 = vector.load %arg35[%c0_69, %c0_70] : memref<64x32xbf16, #tpu.memory_space<vmem>>, vector<64x32xbf16>
    %c0_71 = arith.constant 0 : index
    %c0_72 = arith.constant 0 : index
    %36 = vector.load %arg36[%c0_71, %c0_72] : memref<1x32xf32, #tpu.memory_space<vmem>>, vector<1x32xf32>
    %c0_73 = arith.constant 0 : index
    %c0_74 = arith.constant 0 : index
    %37 = vector.load %arg37[%c0_73, %c0_74] : memref<1x32xf32, #tpu.memory_space<vmem>>, vector<1x32xf32>
    %c0_75 = arith.constant 0 : index
    %c0_76 = arith.constant 0 : index
    %38 = vector.load %arg38[%c0_75, %c0_76] : memref<1x32xf32, #tpu.memory_space<vmem>>, vector<1x32xf32>
    %c0_77 = arith.constant 0 : index
    %c0_78 = arith.constant 0 : index
    %39 = vector.load %arg39[%c0_77, %c0_78] : memref<32x32xbf16, #tpu.memory_space<vmem>>, vector<32x32xbf16>
    %c0_79 = arith.constant 0 : index
    %c0_80 = arith.constant 0 : index
    %40 = vector.load %arg40[%c0_79, %c0_80] : memref<1x32xf32, #tpu.memory_space<vmem>>, vector<1x32xf32>
    %c0_81 = arith.constant 0 : index
    %c0_82 = arith.constant 0 : index
    %41 = vector.load %arg41[%c0_81, %c0_82] : memref<32x64xbf16, #tpu.memory_space<vmem>>, vector<32x64xbf16>
    %c0_83 = arith.constant 0 : index
    %c0_84 = arith.constant 0 : index
    %42 = vector.load %arg42[%c0_83, %c0_84] : memref<1x64xf32, #tpu.memory_space<vmem>>, vector<1x64xf32>
    %c0_85 = arith.constant 0 : index
    %c0_86 = arith.constant 0 : index
    %43 = vector.load %arg43[%c0_85, %c0_86] : memref<64x10xbf16, #tpu.memory_space<vmem>>, vector<64x10xbf16>
    %c0_87 = arith.constant 0 : index
    %c0_88 = arith.constant 0 : index
    %44 = vector.load %arg44[%c0_87, %c0_88] : memref<1x10xf32, #tpu.memory_space<vmem>>, vector<1x10xf32>
    %45 = arith.truncf %0 : vector<34x48xf32> to vector<34x48xbf16>
    %cst = arith.constant dense<0.000000e+00> : vector<34x32xf32>
    %46 = tpu.matmul %45, %5, %cst {dimension_numbers = #tpu.dot_dimension_numbers<[1], [0], [0], [1], [0, 0, 1, 1], [], []>} : vector<34x48xbf16>, vector<48x32xbf16>, vector<34x32xf32> -> vector<34x32xf32>
    %47 = vector.broadcast %6 : vector<1x32xf32> to vector<34x32xf32>
    %48 = arith.addf %46, %47 : vector<34x32xf32>
    %cst_89 = arith.constant dense<0.000000e+00> : vector<34xf32>
    %49 = vector.multi_reduction <add>, %48, %cst_89 [1] : vector<34x32xf32> to vector<34xf32>
    %50 = vector.shape_cast %49 : vector<34xf32> to vector<34x1xf32>
    %cst_90 = arith.constant 3.200000e+01 : f32
    %51 = vector.broadcast %cst_90 : f32 to vector<34x1xf32>
    %52 = arith.divf %50, %51 : vector<34x1xf32>
    %53 = vector.broadcast %52 : vector<34x1xf32> to vector<34x32xf32>
    %54 = arith.subf %48, %53 : vector<34x32xf32>
    %55 = arith.mulf %54, %54 : vector<34x32xf32>
    %cst_91 = arith.constant dense<0.000000e+00> : vector<34xf32>
    %56 = vector.multi_reduction <add>, %55, %cst_91 [1] : vector<34x32xf32> to vector<34xf32>
    %57 = vector.shape_cast %56 : vector<34xf32> to vector<34x1xf32>
    %cst_92 = arith.constant 3.200000e+01 : f32
    %58 = vector.broadcast %cst_92 : f32 to vector<34x1xf32>
    %59 = arith.divf %57, %58 : vector<34x1xf32>
    %60 = vector.broadcast %52 : vector<34x1xf32> to vector<34x32xf32>
    %61 = arith.subf %48, %60 : vector<34x32xf32>
    %cst_93 = arith.constant 9.99999997E-7 : f32
    %62 = vector.broadcast %cst_93 : f32 to vector<34x1xf32>
    %63 = arith.addf %59, %62 : vector<34x1xf32>
    %64 = math.rsqrt %63 : vector<34x1xf32>
    %65 = vector.broadcast %64 : vector<34x1xf32> to vector<34x32xf32>
    %66 = arith.mulf %61, %65 : vector<34x32xf32>
    %67 = vector.broadcast %7 : vector<1x32xf32> to vector<34x32xf32>
    %68 = arith.mulf %66, %67 : vector<34x32xf32>
    %69 = vector.broadcast %8 : vector<1x32xf32> to vector<34x32xf32>
    %70 = arith.addf %68, %69 : vector<34x32xf32>
    %71 = arith.truncf %70 : vector<34x32xf32> to vector<34x32xbf16>
    %cst_94 = arith.constant dense<0.000000e+00> : vector<34x32xf32>
    %72 = tpu.matmul %71, %9, %cst_94 {dimension_numbers = #tpu.dot_dimension_numbers<[1], [0], [0], [1], [0, 0, 1, 1], [], []>} : vector<34x32xbf16>, vector<32x32xbf16>, vector<34x32xf32> -> vector<34x32xf32>
    %73 = vector.broadcast %10 : vector<1x32xf32> to vector<34x32xf32>
    %74 = arith.addf %72, %73 : vector<34x32xf32>
    %75 = vector.broadcast %3 : vector<34x1xf32> to vector<34x32xf32>
    %76 = vector.broadcast %2 : vector<1x32xf32> to vector<34x32xf32>
    %77 = arith.mulf %75, %76 : vector<34x32xf32>
    %cst_95 = arith.constant 1.000000e+00 : f32
    %78 = vector.broadcast %cst_95 : f32 to vector<34x1xf32>
    %79 = arith.subf %78, %3 : vector<34x1xf32>
    %80 = vector.broadcast %79 : vector<34x1xf32> to vector<34x32xf32>
    %81 = arith.mulf %80, %74 : vector<34x32xf32>
    %82 = arith.addf %77, %81 : vector<34x32xf32>
    %83 = arith.addf %82, %1 : vector<34x32xf32>
    %cst_96 = arith.constant dense<0.000000e+00> : vector<34xf32>
    %84 = vector.multi_reduction <add>, %83, %cst_96 [1] : vector<34x32xf32> to vector<34xf32>
    %85 = vector.shape_cast %84 : vector<34xf32> to vector<34x1xf32>
    %cst_97 = arith.constant 3.200000e+01 : f32
    %86 = vector.broadcast %cst_97 : f32 to vector<34x1xf32>
    %87 = arith.divf %85, %86 : vector<34x1xf32>
    %88 = vector.broadcast %87 : vector<34x1xf32> to vector<34x32xf32>
    %89 = arith.subf %83, %88 : vector<34x32xf32>
    %90 = arith.mulf %89, %89 : vector<34x32xf32>
    %cst_98 = arith.constant dense<0.000000e+00> : vector<34xf32>
    %91 = vector.multi_reduction <add>, %90, %cst_98 [1] : vector<34x32xf32> to vector<34xf32>
    %92 = vector.shape_cast %91 : vector<34xf32> to vector<34x1xf32>
    %cst_99 = arith.constant 3.200000e+01 : f32
    %93 = vector.broadcast %cst_99 : f32 to vector<34x1xf32>
    %94 = arith.divf %92, %93 : vector<34x1xf32>
    %95 = vector.broadcast %87 : vector<34x1xf32> to vector<34x32xf32>
    %96 = arith.subf %83, %95 : vector<34x32xf32>
    %cst_100 = arith.constant 9.99999997E-7 : f32
    %97 = vector.broadcast %cst_100 : f32 to vector<34x1xf32>
    %98 = arith.addf %94, %97 : vector<34x1xf32>
    %99 = math.rsqrt %98 : vector<34x1xf32>
    %100 = vector.broadcast %99 : vector<34x1xf32> to vector<34x32xf32>
    %101 = arith.mulf %96, %100 : vector<34x32xf32>
    %102 = vector.broadcast %11 : vector<1x32xf32> to vector<34x32xf32>
    %103 = arith.mulf %101, %102 : vector<34x32xf32>
    %104 = vector.broadcast %12 : vector<1x32xf32> to vector<34x32xf32>
    %105 = arith.addf %103, %104 : vector<34x32xf32>
    %cst_101 = arith.constant dense<0.000000e+00> : vector<34xf32>
    %106 = vector.multi_reduction <add>, %105, %cst_101 [1] : vector<34x32xf32> to vector<34xf32>
    %107 = vector.shape_cast %106 : vector<34xf32> to vector<34x1xf32>
    %cst_102 = arith.constant 3.200000e+01 : f32
    %108 = vector.broadcast %cst_102 : f32 to vector<34x1xf32>
    %109 = arith.divf %107, %108 : vector<34x1xf32>
    %110 = vector.broadcast %109 : vector<34x1xf32> to vector<34x32xf32>
    %111 = arith.subf %105, %110 : vector<34x32xf32>
    %112 = arith.mulf %111, %111 : vector<34x32xf32>
    %cst_103 = arith.constant dense<0.000000e+00> : vector<34xf32>
    %113 = vector.multi_reduction <add>, %112, %cst_103 [1] : vector<34x32xf32> to vector<34xf32>
    %114 = vector.shape_cast %113 : vector<34xf32> to vector<34x1xf32>
    %cst_104 = arith.constant 3.200000e+01 : f32
    %115 = vector.broadcast %cst_104 : f32 to vector<34x1xf32>
    %116 = arith.divf %114, %115 : vector<34x1xf32>
    %117 = vector.broadcast %109 : vector<34x1xf32> to vector<34x32xf32>
    %118 = arith.subf %105, %117 : vector<34x32xf32>
    %cst_105 = arith.constant 9.99999997E-7 : f32
    %119 = vector.broadcast %cst_105 : f32 to vector<34x1xf32>
    %120 = arith.addf %116, %119 : vector<34x1xf32>
    %121 = math.rsqrt %120 : vector<34x1xf32>
    %122 = vector.broadcast %121 : vector<34x1xf32> to vector<34x32xf32>
    %123 = arith.mulf %118, %122 : vector<34x32xf32>
    %124 = vector.broadcast %13 : vector<1x32xf32> to vector<34x32xf32>
    %125 = arith.mulf %123, %124 : vector<34x32xf32>
    %126 = vector.broadcast %14 : vector<1x32xf32> to vector<34x32xf32>
    %127 = arith.addf %125, %126 : vector<34x32xf32>
    %128 = arith.truncf %127 : vector<34x32xf32> to vector<34x32xbf16>
    %cst_106 = arith.constant dense<0.000000e+00> : vector<34x96xf32>
    %129 = tpu.matmul %128, %15, %cst_106 {dimension_numbers = #tpu.dot_dimension_numbers<[1], [0], [0], [1], [0, 0, 1, 1], [], []>} : vector<34x32xbf16>, vector<32x96xbf16>, vector<34x96xf32> -> vector<34x96xf32>
    %130 = vector.broadcast %16 : vector<1x96xf32> to vector<34x96xf32>
    %131 = arith.addf %129, %130 : vector<34x96xf32>
    %132 = vector.extract_strided_slice %131 {offsets = [0, 0], sizes = [34, 8], strides = [1, 1]} : vector<34x96xf32> to vector<34x8xf32>
    %133 = arith.truncf %132 : vector<34x8xf32> to vector<34x8xbf16>
    %134 = vector.extract_strided_slice %131 {offsets = [0, 32], sizes = [34, 8], strides = [1, 1]} : vector<34x96xf32> to vector<34x8xf32>
    %135 = arith.truncf %134 : vector<34x8xf32> to vector<34x8xbf16>
    %136 = vector.extract_strided_slice %131 {offsets = [0, 64], sizes = [34, 8], strides = [1, 1]} : vector<34x96xf32> to vector<34x8xf32>
    %137 = arith.truncf %136 : vector<34x8xf32> to vector<34x8xbf16>
    %cst_107 = arith.constant dense<0.000000e+00> : vector<34x34xf32>
    %138 = tpu.matmul %133, %135, %cst_107 {dimension_numbers = #tpu.dot_dimension_numbers<[1], [1], [0], [0], [0, 0, 1, 0], [], []>} : vector<34x8xbf16>, vector<34x8xbf16>, vector<34x34xf32> -> vector<34x34xf32>
    %cst_108 = arith.constant 0.353553385 : f32
    %139 = vector.broadcast %cst_108 : f32 to vector<34x34xf32>
    %140 = arith.mulf %138, %139 : vector<34x34xf32>
    %141 = arith.addf %140, %4 : vector<34x34xf32>
    %cst_109 = arith.constant dense<0xFF800000> : vector<34xf32>
    %142 = vector.multi_reduction <maximumf>, %141, %cst_109 [1] : vector<34x34xf32> to vector<34xf32>
    %143 = vector.shape_cast %142 : vector<34xf32> to vector<34x1xf32>
    %144 = vector.broadcast %143 : vector<34x1xf32> to vector<34x34xf32>
    %145 = arith.subf %141, %144 : vector<34x34xf32>
    %146 = math.exp %145 : vector<34x34xf32>
    %cst_110 = arith.constant dense<0.000000e+00> : vector<34xf32>
    %147 = vector.multi_reduction <add>, %146, %cst_110 [1] : vector<34x34xf32> to vector<34xf32>
    %148 = vector.shape_cast %147 : vector<34xf32> to vector<34x1xf32>
    %149 = tpu.reciprocal %148 {approx = true} : vector<34x1xf32> -> vector<34x1xf32>
    %150 = vector.broadcast %149 : vector<34x1xf32> to vector<34x34xf32>
    %151 = arith.mulf %146, %150 : vector<34x34xf32>
    %152 = arith.truncf %151 : vector<34x34xf32> to vector<34x34xbf16>
    %cst_111 = arith.constant dense<0.000000e+00> : vector<34x8xf32>
    %153 = tpu.matmul %152, %137, %cst_111 {dimension_numbers = #tpu.dot_dimension_numbers<[1], [0], [0], [1], [0, 0, 1, 1], [], []>} : vector<34x34xbf16>, vector<34x8xbf16>, vector<34x8xf32> -> vector<34x8xf32>
    %154 = vector.extract_strided_slice %131 {offsets = [0, 8], sizes = [34, 8], strides = [1, 1]} : vector<34x96xf32> to vector<34x8xf32>
    %155 = arith.truncf %154 : vector<34x8xf32> to vector<34x8xbf16>
    %156 = vector.extract_strided_slice %131 {offsets = [0, 40], sizes = [34, 8], strides = [1, 1]} : vector<34x96xf32> to vector<34x8xf32>
    %157 = arith.truncf %156 : vector<34x8xf32> to vector<34x8xbf16>
    %158 = vector.extract_strided_slice %131 {offsets = [0, 72], sizes = [34, 8], strides = [1, 1]} : vector<34x96xf32> to vector<34x8xf32>
    %159 = arith.truncf %158 : vector<34x8xf32> to vector<34x8xbf16>
    %cst_112 = arith.constant dense<0.000000e+00> : vector<34x34xf32>
    %160 = tpu.matmul %155, %157, %cst_112 {dimension_numbers = #tpu.dot_dimension_numbers<[1], [1], [0], [0], [0, 0, 1, 0], [], []>} : vector<34x8xbf16>, vector<34x8xbf16>, vector<34x34xf32> -> vector<34x34xf32>
    %cst_113 = arith.constant 0.353553385 : f32
    %161 = vector.broadcast %cst_113 : f32 to vector<34x34xf32>
    %162 = arith.mulf %160, %161 : vector<34x34xf32>
    %163 = arith.addf %162, %4 : vector<34x34xf32>
    %cst_114 = arith.constant dense<0xFF800000> : vector<34xf32>
    %164 = vector.multi_reduction <maximumf>, %163, %cst_114 [1] : vector<34x34xf32> to vector<34xf32>
    %165 = vector.shape_cast %164 : vector<34xf32> to vector<34x1xf32>
    %166 = vector.broadcast %165 : vector<34x1xf32> to vector<34x34xf32>
    %167 = arith.subf %163, %166 : vector<34x34xf32>
    %168 = math.exp %167 : vector<34x34xf32>
    %cst_115 = arith.constant dense<0.000000e+00> : vector<34xf32>
    %169 = vector.multi_reduction <add>, %168, %cst_115 [1] : vector<34x34xf32> to vector<34xf32>
    %170 = vector.shape_cast %169 : vector<34xf32> to vector<34x1xf32>
    %171 = tpu.reciprocal %170 {approx = true} : vector<34x1xf32> -> vector<34x1xf32>
    %172 = vector.broadcast %171 : vector<34x1xf32> to vector<34x34xf32>
    %173 = arith.mulf %168, %172 : vector<34x34xf32>
    %174 = arith.truncf %173 : vector<34x34xf32> to vector<34x34xbf16>
    %cst_116 = arith.constant dense<0.000000e+00> : vector<34x8xf32>
    %175 = tpu.matmul %174, %159, %cst_116 {dimension_numbers = #tpu.dot_dimension_numbers<[1], [0], [0], [1], [0, 0, 1, 1], [], []>} : vector<34x34xbf16>, vector<34x8xbf16>, vector<34x8xf32> -> vector<34x8xf32>
    %176 = vector.extract_strided_slice %131 {offsets = [0, 16], sizes = [34, 8], strides = [1, 1]} : vector<34x96xf32> to vector<34x8xf32>
    %177 = arith.truncf %176 : vector<34x8xf32> to vector<34x8xbf16>
    %178 = vector.extract_strided_slice %131 {offsets = [0, 48], sizes = [34, 8], strides = [1, 1]} : vector<34x96xf32> to vector<34x8xf32>
    %179 = arith.truncf %178 : vector<34x8xf32> to vector<34x8xbf16>
    %180 = vector.extract_strided_slice %131 {offsets = [0, 80], sizes = [34, 8], strides = [1, 1]} : vector<34x96xf32> to vector<34x8xf32>
    %181 = arith.truncf %180 : vector<34x8xf32> to vector<34x8xbf16>
    %cst_117 = arith.constant dense<0.000000e+00> : vector<34x34xf32>
    %182 = tpu.matmul %177, %179, %cst_117 {dimension_numbers = #tpu.dot_dimension_numbers<[1], [1], [0], [0], [0, 0, 1, 0], [], []>} : vector<34x8xbf16>, vector<34x8xbf16>, vector<34x34xf32> -> vector<34x34xf32>
    %cst_118 = arith.constant 0.353553385 : f32
    %183 = vector.broadcast %cst_118 : f32 to vector<34x34xf32>
    %184 = arith.mulf %182, %183 : vector<34x34xf32>
    %185 = arith.addf %184, %4 : vector<34x34xf32>
    %cst_119 = arith.constant dense<0xFF800000> : vector<34xf32>
    %186 = vector.multi_reduction <maximumf>, %185, %cst_119 [1] : vector<34x34xf32> to vector<34xf32>
    %187 = vector.shape_cast %186 : vector<34xf32> to vector<34x1xf32>
    %188 = vector.broadcast %187 : vector<34x1xf32> to vector<34x34xf32>
    %189 = arith.subf %185, %188 : vector<34x34xf32>
    %190 = math.exp %189 : vector<34x34xf32>
    %cst_120 = arith.constant dense<0.000000e+00> : vector<34xf32>
    %191 = vector.multi_reduction <add>, %190, %cst_120 [1] : vector<34x34xf32> to vector<34xf32>
    %192 = vector.shape_cast %191 : vector<34xf32> to vector<34x1xf32>
    %193 = tpu.reciprocal %192 {approx = true} : vector<34x1xf32> -> vector<34x1xf32>
    %194 = vector.broadcast %193 : vector<34x1xf32> to vector<34x34xf32>
    %195 = arith.mulf %190, %194 : vector<34x34xf32>
    %196 = arith.truncf %195 : vector<34x34xf32> to vector<34x34xbf16>
    %cst_121 = arith.constant dense<0.000000e+00> : vector<34x8xf32>
    %197 = tpu.matmul %196, %181, %cst_121 {dimension_numbers = #tpu.dot_dimension_numbers<[1], [0], [0], [1], [0, 0, 1, 1], [], []>} : vector<34x34xbf16>, vector<34x8xbf16>, vector<34x8xf32> -> vector<34x8xf32>
    %198 = vector.extract_strided_slice %131 {offsets = [0, 24], sizes = [34, 8], strides = [1, 1]} : vector<34x96xf32> to vector<34x8xf32>
    %199 = arith.truncf %198 : vector<34x8xf32> to vector<34x8xbf16>
    %200 = vector.extract_strided_slice %131 {offsets = [0, 56], sizes = [34, 8], strides = [1, 1]} : vector<34x96xf32> to vector<34x8xf32>
    %201 = arith.truncf %200 : vector<34x8xf32> to vector<34x8xbf16>
    %202 = vector.extract_strided_slice %131 {offsets = [0, 88], sizes = [34, 8], strides = [1, 1]} : vector<34x96xf32> to vector<34x8xf32>
    %203 = arith.truncf %202 : vector<34x8xf32> to vector<34x8xbf16>
    %cst_122 = arith.constant dense<0.000000e+00> : vector<34x34xf32>
    %204 = tpu.matmul %199, %201, %cst_122 {dimension_numbers = #tpu.dot_dimension_numbers<[1], [1], [0], [0], [0, 0, 1, 0], [], []>} : vector<34x8xbf16>, vector<34x8xbf16>, vector<34x34xf32> -> vector<34x34xf32>
    %cst_123 = arith.constant 0.353553385 : f32
    %205 = vector.broadcast %cst_123 : f32 to vector<34x34xf32>
    %206 = arith.mulf %204, %205 : vector<34x34xf32>
    %207 = arith.addf %206, %4 : vector<34x34xf32>
    %cst_124 = arith.constant dense<0xFF800000> : vector<34xf32>
    %208 = vector.multi_reduction <maximumf>, %207, %cst_124 [1] : vector<34x34xf32> to vector<34xf32>
    %209 = vector.shape_cast %208 : vector<34xf32> to vector<34x1xf32>
    %210 = vector.broadcast %209 : vector<34x1xf32> to vector<34x34xf32>
    %211 = arith.subf %207, %210 : vector<34x34xf32>
    %212 = math.exp %211 : vector<34x34xf32>
    %cst_125 = arith.constant dense<0.000000e+00> : vector<34xf32>
    %213 = vector.multi_reduction <add>, %212, %cst_125 [1] : vector<34x34xf32> to vector<34xf32>
    %214 = vector.shape_cast %213 : vector<34xf32> to vector<34x1xf32>
    %215 = tpu.reciprocal %214 {approx = true} : vector<34x1xf32> -> vector<34x1xf32>
    %216 = vector.broadcast %215 : vector<34x1xf32> to vector<34x34xf32>
    %217 = arith.mulf %212, %216 : vector<34x34xf32>
    %218 = arith.truncf %217 : vector<34x34xf32> to vector<34x34xbf16>
    %cst_126 = arith.constant dense<0.000000e+00> : vector<34x8xf32>
    %219 = tpu.matmul %218, %203, %cst_126 {dimension_numbers = #tpu.dot_dimension_numbers<[1], [0], [0], [1], [0, 0, 1, 1], [], []>} : vector<34x34xbf16>, vector<34x8xbf16>, vector<34x8xf32> -> vector<34x8xf32>
    %220 = tpu.concatenate %153, %175, %197, %219 in 1 : vector<34x8xf32>, vector<34x8xf32>, vector<34x8xf32>, vector<34x8xf32> -> vector<34x32xf32>
    %221 = arith.truncf %220 : vector<34x32xf32> to vector<34x32xbf16>
    %cst_127 = arith.constant dense<0.000000e+00> : vector<34x32xf32>
    %222 = tpu.matmul %221, %17, %cst_127 {dimension_numbers = #tpu.dot_dimension_numbers<[1], [0], [0], [1], [0, 0, 1, 1], [], []>} : vector<34x32xbf16>, vector<32x32xbf16>, vector<34x32xf32> -> vector<34x32xf32>
    %223 = arith.addf %105, %222 : vector<34x32xf32>
    %224 = vector.broadcast %18 : vector<1x32xf32> to vector<34x32xf32>
    %225 = arith.addf %223, %224 : vector<34x32xf32>
    %cst_128 = arith.constant dense<0.000000e+00> : vector<34xf32>
    %226 = vector.multi_reduction <add>, %225, %cst_128 [1] : vector<34x32xf32> to vector<34xf32>
    %227 = vector.shape_cast %226 : vector<34xf32> to vector<34x1xf32>
    %cst_129 = arith.constant 3.200000e+01 : f32
    %228 = vector.broadcast %cst_129 : f32 to vector<34x1xf32>
    %229 = arith.divf %227, %228 : vector<34x1xf32>
    %230 = vector.broadcast %229 : vector<34x1xf32> to vector<34x32xf32>
    %231 = arith.subf %225, %230 : vector<34x32xf32>
    %232 = arith.mulf %231, %231 : vector<34x32xf32>
    %cst_130 = arith.constant dense<0.000000e+00> : vector<34xf32>
    %233 = vector.multi_reduction <add>, %232, %cst_130 [1] : vector<34x32xf32> to vector<34xf32>
    %234 = vector.shape_cast %233 : vector<34xf32> to vector<34x1xf32>
    %cst_131 = arith.constant 3.200000e+01 : f32
    %235 = vector.broadcast %cst_131 : f32 to vector<34x1xf32>
    %236 = arith.divf %234, %235 : vector<34x1xf32>
    %237 = vector.broadcast %229 : vector<34x1xf32> to vector<34x32xf32>
    %238 = arith.subf %225, %237 : vector<34x32xf32>
    %cst_132 = arith.constant 9.99999997E-7 : f32
    %239 = vector.broadcast %cst_132 : f32 to vector<34x1xf32>
    %240 = arith.addf %236, %239 : vector<34x1xf32>
    %241 = math.rsqrt %240 : vector<34x1xf32>
    %242 = vector.broadcast %241 : vector<34x1xf32> to vector<34x32xf32>
    %243 = arith.mulf %238, %242 : vector<34x32xf32>
    %244 = vector.broadcast %19 : vector<1x32xf32> to vector<34x32xf32>
    %245 = arith.mulf %243, %244 : vector<34x32xf32>
    %246 = vector.broadcast %20 : vector<1x32xf32> to vector<34x32xf32>
    %247 = arith.addf %245, %246 : vector<34x32xf32>
    %248 = arith.truncf %247 : vector<34x32xf32> to vector<34x32xbf16>
    %cst_133 = arith.constant dense<0.000000e+00> : vector<34x64xf32>
    %249 = tpu.matmul %248, %21, %cst_133 {dimension_numbers = #tpu.dot_dimension_numbers<[1], [0], [0], [1], [0, 0, 1, 1], [], []>} : vector<34x32xbf16>, vector<32x64xbf16>, vector<34x64xf32> -> vector<34x64xf32>
    %250 = vector.broadcast %22 : vector<1x64xf32> to vector<34x64xf32>
    %251 = arith.addf %249, %250 : vector<34x64xf32>
    %cst_134 = arith.constant 1.702000e+00 : f32
    %252 = vector.broadcast %cst_134 : f32 to vector<34x64xf32>
    %253 = arith.mulf %252, %251 : vector<34x64xf32>
    %254 = arith.negf %253 : vector<34x64xf32>
    %255 = math.exp %254 : vector<34x64xf32>
    %cst_135 = arith.constant 1.000000e+00 : f32
    %256 = vector.broadcast %cst_135 : f32 to vector<34x64xf32>
    %257 = arith.addf %256, %255 : vector<34x64xf32>
    %258 = arith.divf %256, %257 : vector<34x64xf32>
    %259 = arith.mulf %251, %258 : vector<34x64xf32>
    %260 = arith.truncf %259 : vector<34x64xf32> to vector<34x64xbf16>
    %cst_136 = arith.constant dense<0.000000e+00> : vector<34x32xf32>
    %261 = tpu.matmul %260, %23, %cst_136 {dimension_numbers = #tpu.dot_dimension_numbers<[1], [0], [0], [1], [0, 0, 1, 1], [], []>} : vector<34x64xbf16>, vector<64x32xbf16>, vector<34x32xf32> -> vector<34x32xf32>
    %262 = arith.addf %225, %261 : vector<34x32xf32>
    %263 = vector.broadcast %24 : vector<1x32xf32> to vector<34x32xf32>
    %264 = arith.addf %262, %263 : vector<34x32xf32>
    %cst_137 = arith.constant dense<0.000000e+00> : vector<34xf32>
    %265 = vector.multi_reduction <add>, %264, %cst_137 [1] : vector<34x32xf32> to vector<34xf32>
    %266 = vector.shape_cast %265 : vector<34xf32> to vector<34x1xf32>
    %cst_138 = arith.constant 3.200000e+01 : f32
    %267 = vector.broadcast %cst_138 : f32 to vector<34x1xf32>
    %268 = arith.divf %266, %267 : vector<34x1xf32>
    %269 = vector.broadcast %268 : vector<34x1xf32> to vector<34x32xf32>
    %270 = arith.subf %264, %269 : vector<34x32xf32>
    %271 = arith.mulf %270, %270 : vector<34x32xf32>
    %cst_139 = arith.constant dense<0.000000e+00> : vector<34xf32>
    %272 = vector.multi_reduction <add>, %271, %cst_139 [1] : vector<34x32xf32> to vector<34xf32>
    %273 = vector.shape_cast %272 : vector<34xf32> to vector<34x1xf32>
    %cst_140 = arith.constant 3.200000e+01 : f32
    %274 = vector.broadcast %cst_140 : f32 to vector<34x1xf32>
    %275 = arith.divf %273, %274 : vector<34x1xf32>
    %276 = vector.broadcast %268 : vector<34x1xf32> to vector<34x32xf32>
    %277 = arith.subf %264, %276 : vector<34x32xf32>
    %cst_141 = arith.constant 9.99999997E-7 : f32
    %278 = vector.broadcast %cst_141 : f32 to vector<34x1xf32>
    %279 = arith.addf %275, %278 : vector<34x1xf32>
    %280 = math.rsqrt %279 : vector<34x1xf32>
    %281 = vector.broadcast %280 : vector<34x1xf32> to vector<34x32xf32>
    %282 = arith.mulf %277, %281 : vector<34x32xf32>
    %283 = vector.broadcast %25 : vector<1x32xf32> to vector<34x32xf32>
    %284 = arith.mulf %282, %283 : vector<34x32xf32>
    %285 = vector.broadcast %26 : vector<1x32xf32> to vector<34x32xf32>
    %286 = arith.addf %284, %285 : vector<34x32xf32>
    %287 = arith.truncf %286 : vector<34x32xf32> to vector<34x32xbf16>
    %cst_142 = arith.constant dense<0.000000e+00> : vector<34x96xf32>
    %288 = tpu.matmul %287, %27, %cst_142 {dimension_numbers = #tpu.dot_dimension_numbers<[1], [0], [0], [1], [0, 0, 1, 1], [], []>} : vector<34x32xbf16>, vector<32x96xbf16>, vector<34x96xf32> -> vector<34x96xf32>
    %289 = vector.broadcast %28 : vector<1x96xf32> to vector<34x96xf32>
    %290 = arith.addf %288, %289 : vector<34x96xf32>
    %291 = vector.extract_strided_slice %290 {offsets = [0, 0], sizes = [34, 8], strides = [1, 1]} : vector<34x96xf32> to vector<34x8xf32>
    %292 = arith.truncf %291 : vector<34x8xf32> to vector<34x8xbf16>
    %293 = vector.extract_strided_slice %290 {offsets = [0, 32], sizes = [34, 8], strides = [1, 1]} : vector<34x96xf32> to vector<34x8xf32>
    %294 = arith.truncf %293 : vector<34x8xf32> to vector<34x8xbf16>
    %295 = vector.extract_strided_slice %290 {offsets = [0, 64], sizes = [34, 8], strides = [1, 1]} : vector<34x96xf32> to vector<34x8xf32>
    %296 = arith.truncf %295 : vector<34x8xf32> to vector<34x8xbf16>
    %cst_143 = arith.constant dense<0.000000e+00> : vector<34x34xf32>
    %297 = tpu.matmul %292, %294, %cst_143 {dimension_numbers = #tpu.dot_dimension_numbers<[1], [1], [0], [0], [0, 0, 1, 0], [], []>} : vector<34x8xbf16>, vector<34x8xbf16>, vector<34x34xf32> -> vector<34x34xf32>
    %cst_144 = arith.constant 0.353553385 : f32
    %298 = vector.broadcast %cst_144 : f32 to vector<34x34xf32>
    %299 = arith.mulf %297, %298 : vector<34x34xf32>
    %300 = arith.addf %299, %4 : vector<34x34xf32>
    %cst_145 = arith.constant dense<0xFF800000> : vector<34xf32>
    %301 = vector.multi_reduction <maximumf>, %300, %cst_145 [1] : vector<34x34xf32> to vector<34xf32>
    %302 = vector.shape_cast %301 : vector<34xf32> to vector<34x1xf32>
    %303 = vector.broadcast %302 : vector<34x1xf32> to vector<34x34xf32>
    %304 = arith.subf %300, %303 : vector<34x34xf32>
    %305 = math.exp %304 : vector<34x34xf32>
    %cst_146 = arith.constant dense<0.000000e+00> : vector<34xf32>
    %306 = vector.multi_reduction <add>, %305, %cst_146 [1] : vector<34x34xf32> to vector<34xf32>
    %307 = vector.shape_cast %306 : vector<34xf32> to vector<34x1xf32>
    %308 = tpu.reciprocal %307 {approx = true} : vector<34x1xf32> -> vector<34x1xf32>
    %309 = vector.broadcast %308 : vector<34x1xf32> to vector<34x34xf32>
    %310 = arith.mulf %305, %309 : vector<34x34xf32>
    %311 = arith.truncf %310 : vector<34x34xf32> to vector<34x34xbf16>
    %cst_147 = arith.constant dense<0.000000e+00> : vector<34x8xf32>
    %312 = tpu.matmul %311, %296, %cst_147 {dimension_numbers = #tpu.dot_dimension_numbers<[1], [0], [0], [1], [0, 0, 1, 1], [], []>} : vector<34x34xbf16>, vector<34x8xbf16>, vector<34x8xf32> -> vector<34x8xf32>
    %313 = vector.extract_strided_slice %290 {offsets = [0, 8], sizes = [34, 8], strides = [1, 1]} : vector<34x96xf32> to vector<34x8xf32>
    %314 = arith.truncf %313 : vector<34x8xf32> to vector<34x8xbf16>
    %315 = vector.extract_strided_slice %290 {offsets = [0, 40], sizes = [34, 8], strides = [1, 1]} : vector<34x96xf32> to vector<34x8xf32>
    %316 = arith.truncf %315 : vector<34x8xf32> to vector<34x8xbf16>
    %317 = vector.extract_strided_slice %290 {offsets = [0, 72], sizes = [34, 8], strides = [1, 1]} : vector<34x96xf32> to vector<34x8xf32>
    %318 = arith.truncf %317 : vector<34x8xf32> to vector<34x8xbf16>
    %cst_148 = arith.constant dense<0.000000e+00> : vector<34x34xf32>
    %319 = tpu.matmul %314, %316, %cst_148 {dimension_numbers = #tpu.dot_dimension_numbers<[1], [1], [0], [0], [0, 0, 1, 0], [], []>} : vector<34x8xbf16>, vector<34x8xbf16>, vector<34x34xf32> -> vector<34x34xf32>
    %cst_149 = arith.constant 0.353553385 : f32
    %320 = vector.broadcast %cst_149 : f32 to vector<34x34xf32>
    %321 = arith.mulf %319, %320 : vector<34x34xf32>
    %322 = arith.addf %321, %4 : vector<34x34xf32>
    %cst_150 = arith.constant dense<0xFF800000> : vector<34xf32>
    %323 = vector.multi_reduction <maximumf>, %322, %cst_150 [1] : vector<34x34xf32> to vector<34xf32>
    %324 = vector.shape_cast %323 : vector<34xf32> to vector<34x1xf32>
    %325 = vector.broadcast %324 : vector<34x1xf32> to vector<34x34xf32>
    %326 = arith.subf %322, %325 : vector<34x34xf32>
    %327 = math.exp %326 : vector<34x34xf32>
    %cst_151 = arith.constant dense<0.000000e+00> : vector<34xf32>
    %328 = vector.multi_reduction <add>, %327, %cst_151 [1] : vector<34x34xf32> to vector<34xf32>
    %329 = vector.shape_cast %328 : vector<34xf32> to vector<34x1xf32>
    %330 = tpu.reciprocal %329 {approx = true} : vector<34x1xf32> -> vector<34x1xf32>
    %331 = vector.broadcast %330 : vector<34x1xf32> to vector<34x34xf32>
    %332 = arith.mulf %327, %331 : vector<34x34xf32>
    %333 = arith.truncf %332 : vector<34x34xf32> to vector<34x34xbf16>
    %cst_152 = arith.constant dense<0.000000e+00> : vector<34x8xf32>
    %334 = tpu.matmul %333, %318, %cst_152 {dimension_numbers = #tpu.dot_dimension_numbers<[1], [0], [0], [1], [0, 0, 1, 1], [], []>} : vector<34x34xbf16>, vector<34x8xbf16>, vector<34x8xf32> -> vector<34x8xf32>
    %335 = vector.extract_strided_slice %290 {offsets = [0, 16], sizes = [34, 8], strides = [1, 1]} : vector<34x96xf32> to vector<34x8xf32>
    %336 = arith.truncf %335 : vector<34x8xf32> to vector<34x8xbf16>
    %337 = vector.extract_strided_slice %290 {offsets = [0, 48], sizes = [34, 8], strides = [1, 1]} : vector<34x96xf32> to vector<34x8xf32>
    %338 = arith.truncf %337 : vector<34x8xf32> to vector<34x8xbf16>
    %339 = vector.extract_strided_slice %290 {offsets = [0, 80], sizes = [34, 8], strides = [1, 1]} : vector<34x96xf32> to vector<34x8xf32>
    %340 = arith.truncf %339 : vector<34x8xf32> to vector<34x8xbf16>
    %cst_153 = arith.constant dense<0.000000e+00> : vector<34x34xf32>
    %341 = tpu.matmul %336, %338, %cst_153 {dimension_numbers = #tpu.dot_dimension_numbers<[1], [1], [0], [0], [0, 0, 1, 0], [], []>} : vector<34x8xbf16>, vector<34x8xbf16>, vector<34x34xf32> -> vector<34x34xf32>
    %cst_154 = arith.constant 0.353553385 : f32
    %342 = vector.broadcast %cst_154 : f32 to vector<34x34xf32>
    %343 = arith.mulf %341, %342 : vector<34x34xf32>
    %344 = arith.addf %343, %4 : vector<34x34xf32>
    %cst_155 = arith.constant dense<0xFF800000> : vector<34xf32>
    %345 = vector.multi_reduction <maximumf>, %344, %cst_155 [1] : vector<34x34xf32> to vector<34xf32>
    %346 = vector.shape_cast %345 : vector<34xf32> to vector<34x1xf32>
    %347 = vector.broadcast %346 : vector<34x1xf32> to vector<34x34xf32>
    %348 = arith.subf %344, %347 : vector<34x34xf32>
    %349 = math.exp %348 : vector<34x34xf32>
    %cst_156 = arith.constant dense<0.000000e+00> : vector<34xf32>
    %350 = vector.multi_reduction <add>, %349, %cst_156 [1] : vector<34x34xf32> to vector<34xf32>
    %351 = vector.shape_cast %350 : vector<34xf32> to vector<34x1xf32>
    %352 = tpu.reciprocal %351 {approx = true} : vector<34x1xf32> -> vector<34x1xf32>
    %353 = vector.broadcast %352 : vector<34x1xf32> to vector<34x34xf32>
    %354 = arith.mulf %349, %353 : vector<34x34xf32>
    %355 = arith.truncf %354 : vector<34x34xf32> to vector<34x34xbf16>
    %cst_157 = arith.constant dense<0.000000e+00> : vector<34x8xf32>
    %356 = tpu.matmul %355, %340, %cst_157 {dimension_numbers = #tpu.dot_dimension_numbers<[1], [0], [0], [1], [0, 0, 1, 1], [], []>} : vector<34x34xbf16>, vector<34x8xbf16>, vector<34x8xf32> -> vector<34x8xf32>
    %357 = vector.extract_strided_slice %290 {offsets = [0, 24], sizes = [34, 8], strides = [1, 1]} : vector<34x96xf32> to vector<34x8xf32>
    %358 = arith.truncf %357 : vector<34x8xf32> to vector<34x8xbf16>
    %359 = vector.extract_strided_slice %290 {offsets = [0, 56], sizes = [34, 8], strides = [1, 1]} : vector<34x96xf32> to vector<34x8xf32>
    %360 = arith.truncf %359 : vector<34x8xf32> to vector<34x8xbf16>
    %361 = vector.extract_strided_slice %290 {offsets = [0, 88], sizes = [34, 8], strides = [1, 1]} : vector<34x96xf32> to vector<34x8xf32>
    %362 = arith.truncf %361 : vector<34x8xf32> to vector<34x8xbf16>
    %cst_158 = arith.constant dense<0.000000e+00> : vector<34x34xf32>
    %363 = tpu.matmul %358, %360, %cst_158 {dimension_numbers = #tpu.dot_dimension_numbers<[1], [1], [0], [0], [0, 0, 1, 0], [], []>} : vector<34x8xbf16>, vector<34x8xbf16>, vector<34x34xf32> -> vector<34x34xf32>
    %cst_159 = arith.constant 0.353553385 : f32
    %364 = vector.broadcast %cst_159 : f32 to vector<34x34xf32>
    %365 = arith.mulf %363, %364 : vector<34x34xf32>
    %366 = arith.addf %365, %4 : vector<34x34xf32>
    %cst_160 = arith.constant dense<0xFF800000> : vector<34xf32>
    %367 = vector.multi_reduction <maximumf>, %366, %cst_160 [1] : vector<34x34xf32> to vector<34xf32>
    %368 = vector.shape_cast %367 : vector<34xf32> to vector<34x1xf32>
    %369 = vector.broadcast %368 : vector<34x1xf32> to vector<34x34xf32>
    %370 = arith.subf %366, %369 : vector<34x34xf32>
    %371 = math.exp %370 : vector<34x34xf32>
    %cst_161 = arith.constant dense<0.000000e+00> : vector<34xf32>
    %372 = vector.multi_reduction <add>, %371, %cst_161 [1] : vector<34x34xf32> to vector<34xf32>
    %373 = vector.shape_cast %372 : vector<34xf32> to vector<34x1xf32>
    %374 = tpu.reciprocal %373 {approx = true} : vector<34x1xf32> -> vector<34x1xf32>
    %375 = vector.broadcast %374 : vector<34x1xf32> to vector<34x34xf32>
    %376 = arith.mulf %371, %375 : vector<34x34xf32>
    %377 = arith.truncf %376 : vector<34x34xf32> to vector<34x34xbf16>
    %cst_162 = arith.constant dense<0.000000e+00> : vector<34x8xf32>
    %378 = tpu.matmul %377, %362, %cst_162 {dimension_numbers = #tpu.dot_dimension_numbers<[1], [0], [0], [1], [0, 0, 1, 1], [], []>} : vector<34x34xbf16>, vector<34x8xbf16>, vector<34x8xf32> -> vector<34x8xf32>
    %379 = tpu.concatenate %312, %334, %356, %378 in 1 : vector<34x8xf32>, vector<34x8xf32>, vector<34x8xf32>, vector<34x8xf32> -> vector<34x32xf32>
    %380 = arith.truncf %379 : vector<34x32xf32> to vector<34x32xbf16>
    %cst_163 = arith.constant dense<0.000000e+00> : vector<34x32xf32>
    %381 = tpu.matmul %380, %29, %cst_163 {dimension_numbers = #tpu.dot_dimension_numbers<[1], [0], [0], [1], [0, 0, 1, 1], [], []>} : vector<34x32xbf16>, vector<32x32xbf16>, vector<34x32xf32> -> vector<34x32xf32>
    %382 = arith.addf %264, %381 : vector<34x32xf32>
    %383 = vector.broadcast %30 : vector<1x32xf32> to vector<34x32xf32>
    %384 = arith.addf %382, %383 : vector<34x32xf32>
    %cst_164 = arith.constant dense<0.000000e+00> : vector<34xf32>
    %385 = vector.multi_reduction <add>, %384, %cst_164 [1] : vector<34x32xf32> to vector<34xf32>
    %386 = vector.shape_cast %385 : vector<34xf32> to vector<34x1xf32>
    %cst_165 = arith.constant 3.200000e+01 : f32
    %387 = vector.broadcast %cst_165 : f32 to vector<34x1xf32>
    %388 = arith.divf %386, %387 : vector<34x1xf32>
    %389 = vector.broadcast %388 : vector<34x1xf32> to vector<34x32xf32>
    %390 = arith.subf %384, %389 : vector<34x32xf32>
    %391 = arith.mulf %390, %390 : vector<34x32xf32>
    %cst_166 = arith.constant dense<0.000000e+00> : vector<34xf32>
    %392 = vector.multi_reduction <add>, %391, %cst_166 [1] : vector<34x32xf32> to vector<34xf32>
    %393 = vector.shape_cast %392 : vector<34xf32> to vector<34x1xf32>
    %cst_167 = arith.constant 3.200000e+01 : f32
    %394 = vector.broadcast %cst_167 : f32 to vector<34x1xf32>
    %395 = arith.divf %393, %394 : vector<34x1xf32>
    %396 = vector.broadcast %388 : vector<34x1xf32> to vector<34x32xf32>
    %397 = arith.subf %384, %396 : vector<34x32xf32>
    %cst_168 = arith.constant 9.99999997E-7 : f32
    %398 = vector.broadcast %cst_168 : f32 to vector<34x1xf32>
    %399 = arith.addf %395, %398 : vector<34x1xf32>
    %400 = math.rsqrt %399 : vector<34x1xf32>
    %401 = vector.broadcast %400 : vector<34x1xf32> to vector<34x32xf32>
    %402 = arith.mulf %397, %401 : vector<34x32xf32>
    %403 = vector.broadcast %31 : vector<1x32xf32> to vector<34x32xf32>
    %404 = arith.mulf %402, %403 : vector<34x32xf32>
    %405 = vector.broadcast %32 : vector<1x32xf32> to vector<34x32xf32>
    %406 = arith.addf %404, %405 : vector<34x32xf32>
    %407 = arith.truncf %406 : vector<34x32xf32> to vector<34x32xbf16>
    %cst_169 = arith.constant dense<0.000000e+00> : vector<34x64xf32>
    %408 = tpu.matmul %407, %33, %cst_169 {dimension_numbers = #tpu.dot_dimension_numbers<[1], [0], [0], [1], [0, 0, 1, 1], [], []>} : vector<34x32xbf16>, vector<32x64xbf16>, vector<34x64xf32> -> vector<34x64xf32>
    %409 = vector.broadcast %34 : vector<1x64xf32> to vector<34x64xf32>
    %410 = arith.addf %408, %409 : vector<34x64xf32>
    %cst_170 = arith.constant 1.702000e+00 : f32
    %411 = vector.broadcast %cst_170 : f32 to vector<34x64xf32>
    %412 = arith.mulf %411, %410 : vector<34x64xf32>
    %413 = arith.negf %412 : vector<34x64xf32>
    %414 = math.exp %413 : vector<34x64xf32>
    %cst_171 = arith.constant 1.000000e+00 : f32
    %415 = vector.broadcast %cst_171 : f32 to vector<34x64xf32>
    %416 = arith.addf %415, %414 : vector<34x64xf32>
    %417 = arith.divf %415, %416 : vector<34x64xf32>
    %418 = arith.mulf %410, %417 : vector<34x64xf32>
    %419 = arith.truncf %418 : vector<34x64xf32> to vector<34x64xbf16>
    %cst_172 = arith.constant dense<0.000000e+00> : vector<34x32xf32>
    %420 = tpu.matmul %419, %35, %cst_172 {dimension_numbers = #tpu.dot_dimension_numbers<[1], [0], [0], [1], [0, 0, 1, 1], [], []>} : vector<34x64xbf16>, vector<64x32xbf16>, vector<34x32xf32> -> vector<34x32xf32>
    %421 = arith.addf %384, %420 : vector<34x32xf32>
    %422 = vector.broadcast %36 : vector<1x32xf32> to vector<34x32xf32>
    %423 = arith.addf %421, %422 : vector<34x32xf32>
    %424 = vector.extract_strided_slice %423 {offsets = [0, 0], sizes = [1, 32], strides = [1, 1]} : vector<34x32xf32> to vector<1x32xf32>
    %425 = vector.extract_strided_slice %423 {offsets = [17, 0], sizes = [1, 32], strides = [1, 1]} : vector<34x32xf32> to vector<1x32xf32>
    %426 = tpu.concatenate %424, %425 in 0 : vector<1x32xf32>, vector<1x32xf32> -> vector<2x32xf32>
    %cst_173 = arith.constant dense<0.000000e+00> : vector<2xf32>
    %427 = vector.multi_reduction <add>, %426, %cst_173 [1] : vector<2x32xf32> to vector<2xf32>
    %428 = vector.shape_cast %427 : vector<2xf32> to vector<2x1xf32>
    %cst_174 = arith.constant 3.200000e+01 : f32
    %429 = vector.broadcast %cst_174 : f32 to vector<2x1xf32>
    %430 = arith.divf %428, %429 : vector<2x1xf32>
    %431 = vector.broadcast %430 : vector<2x1xf32> to vector<2x32xf32>
    %432 = arith.subf %426, %431 : vector<2x32xf32>
    %433 = arith.mulf %432, %432 : vector<2x32xf32>
    %cst_175 = arith.constant dense<0.000000e+00> : vector<2xf32>
    %434 = vector.multi_reduction <add>, %433, %cst_175 [1] : vector<2x32xf32> to vector<2xf32>
    %435 = vector.shape_cast %434 : vector<2xf32> to vector<2x1xf32>
    %cst_176 = arith.constant 3.200000e+01 : f32
    %436 = vector.broadcast %cst_176 : f32 to vector<2x1xf32>
    %437 = arith.divf %435, %436 : vector<2x1xf32>
    %438 = vector.broadcast %430 : vector<2x1xf32> to vector<2x32xf32>
    %439 = arith.subf %426, %438 : vector<2x32xf32>
    %cst_177 = arith.constant 9.99999997E-7 : f32
    %440 = vector.broadcast %cst_177 : f32 to vector<2x1xf32>
    %441 = arith.addf %437, %440 : vector<2x1xf32>
    %442 = math.rsqrt %441 : vector<2x1xf32>
    %443 = vector.broadcast %442 : vector<2x1xf32> to vector<2x32xf32>
    %444 = arith.mulf %439, %443 : vector<2x32xf32>
    %445 = vector.broadcast %37 : vector<1x32xf32> to vector<2x32xf32>
    %446 = arith.mulf %444, %445 : vector<2x32xf32>
    %447 = vector.broadcast %38 : vector<1x32xf32> to vector<2x32xf32>
    %448 = arith.addf %446, %447 : vector<2x32xf32>
    %449 = arith.truncf %448 : vector<2x32xf32> to vector<2x32xbf16>
    %cst_178 = arith.constant dense<0.000000e+00> : vector<2x32xf32>
    %450 = tpu.matmul %449, %39, %cst_178 {dimension_numbers = #tpu.dot_dimension_numbers<[1], [0], [0], [1], [0, 0, 1, 1], [], []>} : vector<2x32xbf16>, vector<32x32xbf16>, vector<2x32xf32> -> vector<2x32xf32>
    %451 = vector.broadcast %40 : vector<1x32xf32> to vector<2x32xf32>
    %452 = arith.addf %450, %451 : vector<2x32xf32>
    %453 = math.tanh %452 : vector<2x32xf32>
    %454 = arith.truncf %453 : vector<2x32xf32> to vector<2x32xbf16>
    %cst_179 = arith.constant dense<0.000000e+00> : vector<2x64xf32>
    %455 = tpu.matmul %454, %41, %cst_179 {dimension_numbers = #tpu.dot_dimension_numbers<[1], [0], [0], [1], [0, 0, 1, 1], [], []>} : vector<2x32xbf16>, vector<32x64xbf16>, vector<2x64xf32> -> vector<2x64xf32>
    %456 = vector.broadcast %42 : vector<1x64xf32> to vector<2x64xf32>
    %457 = arith.addf %455, %456 : vector<2x64xf32>
    %cst_180 = arith.constant 1.702000e+00 : f32
    %458 = vector.broadcast %cst_180 : f32 to vector<2x64xf32>
    %459 = arith.mulf %458, %457 : vector<2x64xf32>
    %460 = arith.negf %459 : vector<2x64xf32>
    %461 = math.exp %460 : vector<2x64xf32>
    %cst_181 = arith.constant 1.000000e+00 : f32
    %462 = vector.broadcast %cst_181 : f32 to vector<2x64xf32>
    %463 = arith.addf %462, %461 : vector<2x64xf32>
    %464 = arith.divf %462, %463 : vector<2x64xf32>
    %465 = arith.mulf %457, %464 : vector<2x64xf32>
    %466 = arith.truncf %465 : vector<2x64xf32> to vector<2x64xbf16>
    %cst_182 = arith.constant dense<0.000000e+00> : vector<2x10xf32>
    %467 = tpu.matmul %466, %43, %cst_182 {dimension_numbers = #tpu.dot_dimension_numbers<[1], [0], [0], [1], [0, 0, 1, 1], [], []>} : vector<2x64xbf16>, vector<64x10xbf16>, vector<2x10xf32> -> vector<2x10xf32>
    %468 = vector.broadcast %44 : vector<1x10xf32> to vector<2x10xf32>
    %469 = arith.addf %467, %468 : vector<2x10xf32>
    %c0_183 = arith.constant 0 : index
    %c0_184 = arith.constant 0 : index
    %470 = vector.load %arg45[%c0_183, %c0_184] : memref<2x10xf32, #tpu.memory_space<vmem>>, vector<2x10xf32>
    tpu.vector_store %arg45[%c0_183, %c0_184], %469 {strides = array<i32>} : memref<2x10xf32, #tpu.memory_space<vmem>>, vector<2x10xf32>,
    return
  }
}

</mosaic_0001>

<llo_original>
// kernel: tile.9
$region0: #{tile.9}
  %s0 = inlined_call_operand.vmem [shape: f32[2,17,32], index: 0, kind: input, shape index: {}]
  %s1 = inlined_call_operand.vmem [shape: f32[34,32], index: 1, kind: output, shape index: {}]
  %v2 = vld [vmem:[%s0] sm:$0xff]
  %vm3 = vcmask 261120
  %4 = vst.msk [vmem:[%s1] sm:$0xff] %vm3, %v2
  %s5 = scalar_lea.vmem %s0, 8
  %v6 = vld [vmem:[%s5] sm:$0xff]
  %vm7 = vcmask 261120
  %s8 = scalar_lea.vmem %s1, 8
  %9 = vst.msk [vmem:[%s8] sm:$0xff] %vm7, %v6
  %s10 = scalar_lea.vmem %s0, 16
  %s11 = smov 3
  %v12 = vld [vmem:[%s10] ss:$8 sm:%s11]
  %vm13 = vcmask 261120
  %s14 = scalar_lea.vmem %s1, 16
  %15 = vst.msk [vmem:[%s14] sm:$0x3] %vm13, %v12
  %s16 = scalar_lea.vmem %s0, 25
  %v17 = vld [vmem:[%s16] sm:$0xff]
  %vm18 = vcmask 261120
  %s19 = scalar_lea.vmem %s1, 18
  %20 = vst.msk [vmem:[%s19] sm:$0xff] %vm18, %v17
  %s21 = scalar_lea.vmem %s0, 33
  %v22 = vld [vmem:[%s21] sm:$0xff]
  %vm23 = vcmask 261120
  %s24 = scalar_lea.vmem %s1, 26
  %25 = vst.msk [vmem:[%s24] sm:$0xff] %vm23, %v22

// kernel: eq.13
$region0: #{eq.13}
  %s0 = inlined_call_operand.vmem [shape: s32[2,17], index: 0, kind: input, shape index: {}]
  %s1 = inlined_call_operand.vmem [shape: s32[34], index: 1, kind: output, shape index: {}]
  $region1: #{eq.13} parent=0
    #allocation0 [shape = 'u8[4096]{0}', space=vmem, size = 0x1000, scoped, tag = 'scoped mem for output reshape']
    #allocation1 [shape = 'u8[4096]{0}', space=vmem, size = 0x1000, scoped, tag = 'scoped mem for input reshape']
    %s3 = ssub.s32 4, 1
    %v4 = vld [vmem:[%s0] sm:%s3]
    %5 = vst [vmem:[#allocation1] sm:%s3] %v4
    %v6 = vld [vmem:[#allocation1] sm:$0x1]
    %vm7 = vcmask 138240
    %8 = vst.msk [vmem:[#allocation0] sm:$0x1] %vm7, %v6
    %s9 = scalar_lea.vmem [#allocation1], 1
    %v10 = vld [vmem:[%s9] sm:$0x1]
    %11 = vrot.lane.b32.xlu0 %v10, 17
    %v12 = vpop.permute.xlu0 %11
    %vm13 = vcmask 277640
    %14 = vst.msk [vmem:[#allocation0] sm:$0x1] %vm13, %v12
    %s16 = ssub.s32 2, 1
    %v17 = vld [vmem:[#allocation0] sm:%s16]
    %s19 = ssub.s32 2, 1
    %20 = vst [vmem:[%s1] sm:%s19] %v17

// kernel: vit_forward.1
$region0: #{vit_forward.1}
  #allocation0 [shape = 'u32[]', space=smem, size = 0x4, offset = 0x4, fixed_abs, tag = 'smem constant byte address 0x4 - core index']
  #allocation1 [shape = 'u32[72,128]{1,0:T(1,128)}', space=vmem, size = 0x9000, scoped, tag = 'internal scratch']
  %s0 = inlined_call_operand.smem [shape: u32[46], index: -1, kind: input, shape index: {}]
  %s1 = sld [smem:[%s0]]
  %s2 = scalar_lea.smem %s0, 1
  %s3 = sld [smem:[%s2]]
  %s4 = scalar_lea.smem %s0, 2
  %s5 = sld [smem:[%s4]]
  %s6 = scalar_lea.smem %s0, 3
  %s7 = sld [smem:[%s6]]
  %s8 = scalar_lea.smem %s0, 4
  %s9 = sld [smem:[%s8]]
  %s10 = scalar_lea.smem %s0, 5
  %s11 = sld [smem:[%s10]]
  %s12 = scalar_lea.smem %s0, 6
  %s13 = sld [smem:[%s12]]
  %s14 = scalar_lea.smem %s0, 7
  %s15 = sld [smem:[%s14]]
  %s16 = scalar_lea.smem %s0, 8
  %s17 = sld [smem:[%s16]]
  %s18 = scalar_lea.smem %s0, 9
  %s19 = sld [smem:[%s18]]
  %s20 = scalar_lea.smem %s0, 10
  %s21 = sld [smem:[%s20]]
  %s22 = scalar_lea.smem %s0, 11
  %s23 = sld [smem:[%s22]]
  %s24 = scalar_lea.smem %s0, 12
  %s25 = sld [smem:[%s24]]
  %s26 = scalar_lea.smem %s0, 13
  %s27 = sld [smem:[%s26]]
  %s28 = scalar_lea.smem %s0, 14
  %s29 = sld [smem:[%s28]]
  %s30 = scalar_lea.smem %s0, 15
  %s31 = sld [smem:[%s30]]
  %s32 = scalar_lea.smem %s0, 16
  %s33 = sld [smem:[%s32]]
  %s34 = scalar_lea.smem %s0, 17
  %s35 = sld [smem:[%s34]]
  %s36 = scalar_lea.smem %s0, 18
  %s37 = sld [smem:[%s36]]
  %s38 = scalar_lea.smem %s0, 19
  %s39 = sld [smem:[%s38]]
  %s40 = scalar_lea.smem %s0, 20
  %s41 = sld [smem:[%s40]]
  %s42 = scalar_lea.smem %s0, 21
  %s43 = sld [smem:[%s42]]
  %s44 = scalar_lea.smem %s0, 22
  %s45 = sld [smem:[%s44]]
  %s46 = scalar_lea.smem %s0, 23
  %s47 = sld [smem:[%s46]]
  %s48 = scalar_lea.smem %s0, 24
  %s49 = sld [smem:[%s48]]
  %s50 = scalar_lea.smem %s0, 25
  %s51 = sld [smem:[%s50]]
  %s52 = scalar_lea.smem %s0, 26
  %s53 = sld [smem:[%s52]]
  %s54 = scalar_lea.smem %s0, 27
  %s55 = sld [smem:[%s54]]
  %s56 = scalar_lea.smem %s0, 28
  %s57 = sld [smem:[%s56]]
  %s58 = scalar_lea.smem %s0, 29
  %s59 = sld [smem:[%s58]]
  %s60 = scalar_lea.smem %s0, 30
  %s61 = sld [smem:[%s60]]
  %s62 = scalar_lea.smem %s0, 31
  %s63 = sld [smem:[%s62]]
  %s64 = scalar_lea.smem %s0, 32
  %s65 = sld [smem:[%s64]]
  %s66 = scalar_lea.smem %s0, 33
  %s67 = sld [smem:[%s66]]
  %s68 = scalar_lea.smem %s0, 34
  %s69 = sld [smem:[%s68]]
  %s70 = scalar_lea.smem %s0, 35
  %s71 = sld [smem:[%s70]]
  %s72 = scalar_lea.smem %s0, 36
  %s73 = sld [smem:[%s72]]
  %s74 = scalar_lea.smem %s0, 37
  %s75 = sld [smem:[%s74]]
  %s76 = scalar_lea.smem %s0, 38
  %s77 = sld [smem:[%s76]]
  %s78 = scalar_lea.smem %s0, 39
  %s79 = sld [smem:[%s78]]
  %s80 = scalar_lea.smem %s0, 40
  %s81 = sld [smem:[%s80]]
  %s82 = scalar_lea.smem %s0, 41
  %s83 = sld [smem:[%s82]]
  %s84 = scalar_lea.smem %s0, 42
  %s85 = sld [smem:[%s84]]
  %s86 = scalar_lea.smem %s0, 43
  %s87 = sld [smem:[%s86]]
  %s88 = scalar_lea.smem %s0, 44
  %s89 = sld [smem:[%s88]]
  %s90 = scalar_lea.smem %s0, 45
  %s91 = sld [smem:[%s90]]
  %s92 = sld [smem:[#allocation0]]
  $region194: #{vit_forward.1} parent=0
    _
  %s94 = ssub.s32 1, %s92
  %s95 = scalar_select 0, %s94, %s92
  $region1: #{vit_forward.1} parent=0
    #allocation2 [shape = 'u8[512]{0}', space=vmem, size = 0x400, scoped, tag = 'input window, operand 44, single buffered']
    #allocation3 [shape = 's32[1]{0}', space=sflag, size = 0x4, scoped, tag = 'scoped memory for vit_forward.1']
    #allocation4 [shape = 's32[1]{0}', space=sflag, size = 0x4, scoped, tag = 'scoped memory for vit_forward.1']
    #allocation5 [shape = 'u8[1024]{0}', space=vmem, size = 0x400, scoped, tag = 'output window, operand 0, single buffered']
    %96 = vsyncpa [#allocation3], 0
    %97 = vsyncpa [#allocation4], 0
    // Predicated region
    $region2: #{vit_forward.1} parent=1 // pred_check
      _
    $region3: #{vit_forward.1} parent=1 // pred_check_branch
      %99 = sbr.rel (0) target = $region5
    $region4: #{vit_forward.1} parent=1 // pred_region
      _
    $region5: #{vit_forward.1} parent=1 // pred_fallthru
      _
    // Predicated region
    $region6: #{vit_forward.1} parent=1 // pred_check
      _
    $region7: #{vit_forward.1} parent=1 // pred_check_branch
      %101 = sbr.rel (0) target = $region9
    $region8: #{vit_forward.1} parent=1 // pred_region
      _
    $region9: #{vit_forward.1} parent=1 // pred_fallthru
      _
    // Predicated region
    $region10: #{vit_forward.1} parent=1 // pred_check
      _
    $region11: #{vit_forward.1} parent=1 // pred_check_branch
      %103 = sbr.rel (0) target = $region13
    $region12: #{vit_forward.1} parent=1 // pred_region
      _
    $region13: #{vit_forward.1} parent=1 // pred_fallthru
      _
    // Predicated region
    $region14: #{vit_forward.1} parent=1 // pred_check
      _
    $region15: #{vit_forward.1} parent=1 // pred_check_branch
      %105 = sbr.rel (0) target = $region17
    $region16: #{vit_forward.1} parent=1 // pred_region
      _
    $region17: #{vit_forward.1} parent=1 // pred_fallthru
      _
    // Predicated region
    $region18: #{vit_forward.1} parent=1 // pred_check
      _
    $region19: #{vit_forward.1} parent=1 // pred_check_branch
      %107 = sbr.rel (0) target = $region21
    $region20: #{vit_forward.1} parent=1 // pred_region
      _
    $region21: #{vit_forward.1} parent=1 // pred_fallthru
      _
    // Predicated region
    $region22: #{vit_forward.1} parent=1 // pred_check
      _
    $region23: #{vit_forward.1} parent=1 // pred_check_branch
      %109 = sbr.rel (0) target = $region25
    $region24: #{vit_forward.1} parent=1 // pred_region
      _
    $region25: #{vit_forward.1} parent=1 // pred_fallthru
      _
    // Predicated region
    $region26: #{vit_forward.1} parent=1 // pred_check
      _
    $region27: #{vit_forward.1} parent=1 // pred_check_branch
      %111 = sbr.rel (0) target = $region29
    $region28: #{vit_forward.1} parent=1 // pred_region
      _
    $region29: #{vit_forward.1} parent=1 // pred_fallthru
      _
    // Predicated region
    $region30: #{vit_forward.1} parent=1 // pred_check
      _
    $region31: #{vit_forward.1} parent=1 // pred_check_branch
      %113 = sbr.rel (0) target = $region33
    $region32: #{vit_forward.1} parent=1 // pred_region
      _
    $region33: #{vit_forward.1} parent=1 // pred_fallthru
      _
    // Predicated region
    $region34: #{vit_forward.1} parent=1 // pred_check
      _
    $region35: #{vit_forward.1} parent=1 // pred_check_branch
      %115 = sbr.rel (0) target = $region37
    $region36: #{vit_forward.1} parent=1 // pred_region
      _
    $region37: #{vit_forward.1} parent=1 // pred_fallthru
      _
    // Predicated region
    $region38: #{vit_forward.1} parent=1 // pred_check
      _
    $region39: #{vit_forward.1} parent=1 // pred_check_branch
      %117 = sbr.rel (0) target = $region41
    $region40: #{vit_forward.1} parent=1 // pred_region
      _
    $region41: #{vit_forward.1} parent=1 // pred_fallthru
      _
    // Predicated region
    $region42: #{vit_forward.1} parent=1 // pred_check
      _
    $region43: #{vit_forward.1} parent=1 // pred_check_branch
      %119 = sbr.rel (0) target = $region45
    $region44: #{vit_forward.1} parent=1 // pred_region
      _
    $region45: #{vit_forward.1} parent=1 // pred_fallthru
      _
    // Predicated region
    $region46: #{vit_forward.1} parent=1 // pred_check
      _
    $region47: #{vit_forward.1} parent=1 // pred_check_branch
      %121 = sbr.rel (0) target = $region49
    $region48: #{vit_forward.1} parent=1 // pred_region
      _
    $region49: #{vit_forward.1} parent=1 // pred_fallthru
      _
    // Predicated region
    $region50: #{vit_forward.1} parent=1 // pred_check
      _
    $region51: #{vit_forward.1} parent=1 // pred_check_branch
      %123 = sbr.rel (0) target = $region53
    $region52: #{vit_forward.1} parent=1 // pred_region
      _
    $region53: #{vit_forward.1} parent=1 // pred_fallthru
      _
    // Predicated region
    $region54: #{vit_forward.1} parent=1 // pred_check
      _
    $region55: #{vit_forward.1} parent=1 // pred_check_branch
      %125 = sbr.rel (0) target = $region57
    $region56: #{vit_forward.1} parent=1 // pred_region
      _
    $region57: #{vit_forward.1} parent=1 // pred_fallthru
      _
    // Predicated region
    $region58: #{vit_forward.1} parent=1 // pred_check
      _
    $region59: #{vit_forward.1} parent=1 // pred_check_branch
      %127 = sbr.rel (0) target = $region61
    $region60: #{vit_forward.1} parent=1 // pred_region
      _
    $region61: #{vit_forward.1} parent=1 // pred_fallthru
      _
    // Predicated region
    $region62: #{vit_forward.1} parent=1 // pred_check
      _
    $region63: #{vit_forward.1} parent=1 // pred_check_branch
      %129 = sbr.rel (0) target = $region65
    $region64: #{vit_forward.1} parent=1 // pred_region
      _
    $region65: #{vit_forward.1} parent=1 // pred_fallthru
      _
    // Predicated region
    $region66: #{vit_forward.1} parent=1 // pred_check
      _
    $region67: #{vit_forward.1} parent=1 // pred_check_branch
      %131 = sbr.rel (0) target = $region69
    $region68: #{vit_forward.1} parent=1 // pred_region
      _
    $region69: #{vit_forward.1} parent=1 // pred_fallthru
      _
    // Predicated region
    $region70: #{vit_forward.1} parent=1 // pred_check
      _
    $region71: #{vit_forward.1} parent=1 // pred_check_branch
      %133 = sbr.rel (0) target = $region73
    $region72: #{vit_forward.1} parent=1 // pred_region
      _
    $region73: #{vit_forward.1} parent=1 // pred_fallthru
      _
    // Predicated region
    $region74: #{vit_forward.1} parent=1 // pred_check
      _
    $region75: #{vit_forward.1} parent=1 // pred_check_branch
      %135 = sbr.rel (0) target = $region77
    $region76: #{vit_forward.1} parent=1 // pred_region
      _
    $region77: #{vit_forward.1} parent=1 // pred_fallthru
      _
    // Predicated region
    $region78: #{vit_forward.1} parent=1 // pred_check
      _
    $region79: #{vit_forward.1} parent=1 // pred_check_branch
      %137 = sbr.rel (0) target = $region81
    $region80: #{vit_forward.1} parent=1 // pred_region
      _
    $region81: #{vit_forward.1} parent=1 // pred_fallthru
      _
    // Predicated region
    $region82: #{vit_forward.1} parent=1 // pred_check
      _
    $region83: #{vit_forward.1} parent=1 // pred_check_branch
      %139 = sbr.rel (0) target = $region85
    $region84: #{vit_forward.1} parent=1 // pred_region
      _
    $region85: #{vit_forward.1} parent=1 // pred_fallthru
      _
    // Predicated region
    $region86: #{vit_forward.1} parent=1 // pred_check
      _
    $region87: #{vit_forward.1} parent=1 // pred_check_branch
      %141 = sbr.rel (0) target = $region89
    $region88: #{vit_forward.1} parent=1 // pred_region
      _
    $region89: #{vit_forward.1} parent=1 // pred_fallthru
      _
    // Predicated region
    $region90: #{vit_forward.1} parent=1 // pred_check
      _
    $region91: #{vit_forward.1} parent=1 // pred_check_branch
      %143 = sbr.rel (0) target = $region93
    $region92: #{vit_forward.1} parent=1 // pred_region
      _
    $region93: #{vit_forward.1} parent=1 // pred_fallthru
      _
    // Predicated region
    $region94: #{vit_forward.1} parent=1 // pred_check
      _
    $region95: #{vit_forward.1} parent=1 // pred_check_branch
      %145 = sbr.rel (0) target = $region97
    $region96: #{vit_forward.1} parent=1 // pred_region
      _
    $region97: #{vit_forward.1} parent=1 // pred_fallthru
      _
    // Predicated region
    $region98: #{vit_forward.1} parent=1 // pred_check
      _
    $region99: #{vit_forward.1} parent=1 // pred_check_branch
      %147 = sbr.rel (0) target = $region101
    $region100: #{vit_forward.1} parent=1 // pred_region
      _
    $region101: #{vit_forward.1} parent=1 // pred_fallthru
      _
    // Predicated region
    $region102: #{vit_forward.1} parent=1 // pred_check
      _
    $region103: #{vit_forward.1} parent=1 // pred_check_branch
      %149 = sbr.rel (0) target = $region105
    $region104: #{vit_forward.1} parent=1 // pred_region
      _
    $region105: #{vit_forward.1} parent=1 // pred_fallthru
      _
    // Predicated region
    $region106: #{vit_forward.1} parent=1 // pred_check
      _
    $region107: #{vit_forward.1} parent=1 // pred_check_branch
      %151 = sbr.rel (0) target = $region109
    $region108: #{vit_forward.1} parent=1 // pred_region
      _
    $region109: #{vit_forward.1} parent=1 // pred_fallthru
      _
    // Predicated region
    $region110: #{vit_forward.1} parent=1 // pred_check
      _
    $region111: #{vit_forward.1} parent=1 // pred_check_branch
      %153 = sbr.rel (0) target = $region113
    $region112: #{vit_forward.1} parent=1 // pred_region
      _
    $region113: #{vit_forward.1} parent=1 // pred_fallthru
      _
    // Predicated region
    $region114: #{vit_forward.1} parent=1 // pred_check
      _
    $region115: #{vit_forward.1} parent=1 // pred_check_branch
      %155 = sbr.rel (0) target = $region117
    $region116: #{vit_forward.1} parent=1 // pred_region
      _
    $region117: #{vit_forward.1} parent=1 // pred_fallthru
      _
    // Predicated region
    $region118: #{vit_forward.1} parent=1 // pred_check
      _
    $region119: #{vit_forward.1} parent=1 // pred_check_branch
      %157 = sbr.rel (0) target = $region121
    $region120: #{vit_forward.1} parent=1 // pred_region
      _
    $region121: #{vit_forward.1} parent=1 // pred_fallthru
      _
    // Predicated region
    $region122: #{vit_forward.1} parent=1 // pred_check
      _
    $region123: #{vit_forward.1} parent=1 // pred_check_branch
      %159 = sbr.rel (0) target = $region125
    $region124: #{vit_forward.1} parent=1 // pred_region
      _
    $region125: #{vit_forward.1} parent=1 // pred_fallthru
      _
    // Predicated region
    $region126: #{vit_forward.1} parent=1 // pred_check
      _
    $region127: #{vit_forward.1} parent=1 // pred_check_branch
      %161 = sbr.rel (0) target = $region129
    $region128: #{vit_forward.1} parent=1 // pred_region
      _
    $region129: #{vit_forward.1} parent=1 // pred_fallthru
      _
    // Predicated region
    $region130: #{vit_forward.1} parent=1 // pred_check
      _
    $region131: #{vit_forward.1} parent=1 // pred_check_branch
      %163 = sbr.rel (0) target = $region133
    $region132: #{vit_forward.1} parent=1 // pred_region
      _
    $region133: #{vit_forward.1} parent=1 // pred_fallthru
      _
    // Predicated region
    $region134: #{vit_forward.1} parent=1 // pred_check
      _
    $region135: #{vit_forward.1} parent=1 // pred_check_branch
      %165 = sbr.rel (0) target = $region137
    $region136: #{vit_forward.1} parent=1 // pred_region
      _
    $region137: #{vit_forward.1} parent=1 // pred_fallthru
      _
    // Predicated region
    $region138: #{vit_forward.1} parent=1 // pred_check
      _
    $region139: #{vit_forward.1} parent=1 // pred_check_branch
      %167 = sbr.rel (0) target = $region141
    $region140: #{vit_forward.1} parent=1 // pred_region
      _
    $region141: #{vit_forward.1} parent=1 // pred_fallthru
      _
    // Predicated region
    $region142: #{vit_forward.1} parent=1 // pred_check
      _
    $region143: #{vit_forward.1} parent=1 // pred_check_branch
      %169 = sbr.rel (0) target = $region145
    $region144: #{vit_forward.1} parent=1 // pred_region
      _
    $region145: #{vit_forward.1} parent=1 // pred_fallthru
      _
    // Predicated region
    $region146: #{vit_forward.1} parent=1 // pred_check
      _
    $region147: #{vit_forward.1} parent=1 // pred_check_branch
      %171 = sbr.rel (0) target = $region149
    $region148: #{vit_forward.1} parent=1 // pred_region
      _
    $region149: #{vit_forward.1} parent=1 // pred_fallthru
      _
    // Predicated region
    $region150: #{vit_forward.1} parent=1 // pred_check
      _
    $region151: #{vit_forward.1} parent=1 // pred_check_branch
      %173 = sbr.rel (0) target = $region153
    $region152: #{vit_forward.1} parent=1 // pred_region
      _
    $region153: #{vit_forward.1} parent=1 // pred_fallthru
      _
    // Predicated region
    $region154: #{vit_forward.1} parent=1 // pred_check
      _
    $region155: #{vit_forward.1} parent=1 // pred_check_branch
      %175 = sbr.rel (0) target = $region157
    $region156: #{vit_forward.1} parent=1 // pred_region
      _
    $region157: #{vit_forward.1} parent=1 // pred_fallthru
      _
    // Predicated region
    $region158: #{vit_forward.1} parent=1 // pred_check
      _
    $region159: #{vit_forward.1} parent=1 // pred_check_branch
      %177 = sbr.rel (0) target = $region161
    $region160: #{vit_forward.1} parent=1 // pred_region
      _
    $region161: #{vit_forward.1} parent=1 // pred_fallthru
      _
    // Predicated region
    $region162: #{vit_forward.1} parent=1 // pred_check
      _
    $region163: #{vit_forward.1} parent=1 // pred_check_branch
      %179 = sbr.rel (0) target = $region165
    $region164: #{vit_forward.1} parent=1 // pred_region
      _
    $region165: #{vit_forward.1} parent=1 // pred_fallthru
      _
    // Predicated region
    $region166: #{vit_forward.1} parent=1 // pred_check
      _
    $region167: #{vit_forward.1} parent=1 // pred_check_branch
      %181 = sbr.rel (0) target = $region169
    $region168: #{vit_forward.1} parent=1 // pred_region
      _
    $region169: #{vit_forward.1} parent=1 // pred_fallthru
      _
    // Predicated region
    $region170: #{vit_forward.1} parent=1 // pred_check
      _
    $region171: #{vit_forward.1} parent=1 // pred_check_branch
      %183 = sbr.rel (0) target = $region173
    $region172: #{vit_forward.1} parent=1 // pred_region
      _
    $region173: #{vit_forward.1} parent=1 // pred_fallthru
      _
    // Predicated region
    $region174: #{vit_forward.1} parent=1 // pred_check
      _
    $region175: #{vit_forward.1} parent=1 // pred_check_branch
      %185 = sbr.rel (0) target = $region177
    $region176: #{vit_forward.1} parent=1 // pred_region
      _
    $region177: #{vit_forward.1} parent=1 // pred_fallthru
      _
    // Predicated region
    $region178: #{vit_forward.1} parent=1 // pred_check
      _
    $region179: #{vit_forward.1} parent=1 // pred_check_branch
      %187 = sbr.rel (0) target = $region181
    $region180: #{vit_forward.1} parent=1 // pred_region
      %189 = vsyncadd [#allocation3], 0
      %s191 = sshll.u32 %s89, 4
      %s192 = int_to_ptr.hbm [resolvable:$true] %s191
      %s193 = sshll.u32 [#allocation2], 4
      %s194 = int_to_ptr.vmem [resolvable:$true] %s193
      %196 = dma.hbm_to_vmem [thread:$0]  %s192, 16, %s194, [#allocation3]
    $region181: #{vit_forward.1} parent=1 // pred_fallthru
      _
    // Predicated region
    $region182: #{vit_forward.1} parent=1 // pred_check
      _
    $region183: #{vit_forward.1} parent=1 // pred_check_branch
      %198 = sbr.rel (0) target = $region185
    $region184: #{vit_forward.1} parent=1 // pred_region
      %200 = dma.done [#allocation3], 16
    $region185: #{vit_forward.1} parent=1 // pred_fallthru
      _
    %v202 = vld [vmem:[%s1] sm:$0xff]
    %v203 = vld [vmem:[%s1 + $0x8] sm:$0xff]
    %v204 = vld [vmem:[%s1 + $0x10] sm:$0xff]
    %v205 = vld [vmem:[%s1 + $0x18] sm:$0xff]
    %v206 = vld [vmem:[%s1 + $0x20] sm:$0x3]
    %v207 = vld [vmem:[%s3] sm:$0xff]
    %v208 = vld [vmem:[%s3 + $0x8] sm:$0xff]
    %v209 = vld [vmem:[%s3 + $0x10] sm:$0xff]
    %v210 = vld [vmem:[%s3 + $0x18] sm:$0xff]
    %v211 = vld [vmem:[%s3 + $0x20] sm:$0x3]
    %v212 = vld [vmem:[%s5] sm:$0x1]
    %v213 = vld [vmem:[%s7] sm:$0xff]
    %v214 = vld [vmem:[%s7 + $0x8] sm:$0xff]
    %v215 = vld [vmem:[%s7 + $0x10] sm:$0xff]
    %v216 = vld [vmem:[%s7 + $0x18] sm:$0xff]
    %v217 = vld [vmem:[%s7 + $0x20] sm:$0x3]
    %v218 = vld [vmem:[%s9] sm:$0xff]
    %v219 = vld [vmem:[%s9 + $0x8] sm:$0xff]
    %v220 = vld [vmem:[%s9 + $0x10] sm:$0xff]
    %v221 = vld [vmem:[%s9 + $0x18] sm:$0xff]
    %v222 = vld [vmem:[%s9 + $0x20] sm:$0x3]
    %v223 = vld [vmem:[%s11] sm:$0xf]
    %v224 = vld [vmem:[%s11 + $0x4] sm:$0xf]
    %v225 = vld [vmem:[%s11 + $0x8] sm:$0xf]
    %v226 = vld [vmem:[%s11 + $0xc] sm:$0xf]
    %v227 = vld [vmem:[%s11 + $0x10] sm:$0xf]
    %v228 = vld [vmem:[%s11 + $0x14] sm:$0xf]
    %v229 = vld [vmem:[%s13] sm:$0x1]
    %v230 = vld [vmem:[%s15] sm:$0x1]
    %v231 = vld [vmem:[%s17] sm:$0x1]
    %v232 = vld [vmem:[%s19] sm:$0xf]
    %v233 = vld [vmem:[%s19 + $0x4] sm:$0xf]
    %v234 = vld [vmem:[%s19 + $0x8] sm:$0xf]
    %v235 = vld [vmem:[%s19 + $0xc] sm:$0xf]
    %v236 = vld [vmem:[%s21] sm:$0x1]
    %v237 = vld [vmem:[%s23] sm:$0x1]
    %v238 = vld [vmem:[%s25] sm:$0x1]
    %v239 = vld [vmem:[%s27] sm:$0x1]
    %v240 = vld [vmem:[%s29] sm:$0x1]
    %v241 = vld [vmem:[%s31] sm:$0xf]
    %v242 = vld [vmem:[%s31 + $0x4] sm:$0xf]
    %v243 = vld [vmem:[%s31 + $0x8] sm:$0xf]
    %v244 = vld [vmem:[%s31 + $0xc] sm:$0xf]
    %v245 = vld [vmem:[%s33] sm:$0x1]
    %v246 = vld [vmem:[%s35] sm:$0xf]
    %v247 = vld [vmem:[%s35 + $0x4] sm:$0xf]
    %v248 = vld [vmem:[%s35 + $0x8] sm:$0xf]
    %v249 = vld [vmem:[%s35 + $0xc] sm:$0xf]
    %v250 = vld [vmem:[%s37] sm:$0x1]
    %v251 = vld [vmem:[%s39] sm:$0x1]
    %v252 = vld [vmem:[%s41] sm:$0x1]
    %v253 = vld [vmem:[%s43] sm:$0xf]
    %v254 = vld [vmem:[%s43 + $0x4] sm:$0xf]
    %v255 = vld [vmem:[%s43 + $0x8] sm:$0xf]
    %v256 = vld [vmem:[%s43 + $0xc] sm:$0xf]
    %v257 = vld [vmem:[%s45] sm:$0x1]
    %v258 = vld [vmem:[%s47] sm:$0xf]
    %v259 = vld [vmem:[%s47 + $0x4] sm:$0xf]
    %v260 = vld [vmem:[%s47 + $0x8] sm:$0xf]
    %v261 = vld [vmem:[%s47 + $0xc] sm:$0xf]
    %v262 = vld [vmem:[%s47 + $0x10] sm:$0xf]
    %v263 = vld [vmem:[%s47 + $0x14] sm:$0xf]
    %v264 = vld [vmem:[%s47 + $0x18] sm:$0xf]
    %v265 = vld [vmem:[%s47 + $0x1c] sm:$0xf]
    %v266 = vld [vmem:[%s49] sm:$0x1]
    %v267 = vld [vmem:[%s51] sm:$0x1]
    %v268 = vld [vmem:[%s53] sm:$0x1]
    %v269 = vld [vmem:[%s55] sm:$0xf]
    %v270 = vld [vmem:[%s55 + $0x4] sm:$0xf]
    %v271 = vld [vmem:[%s55 + $0x8] sm:$0xf]
    %v272 = vld [vmem:[%s55 + $0xc] sm:$0xf]
    %v273 = vld [vmem:[%s57] sm:$0x1]
    %v274 = vld [vmem:[%s59] sm:$0xf]
    %v275 = vld [vmem:[%s59 + $0x4] sm:$0xf]
    %v276 = vld [vmem:[%s59 + $0x8] sm:$0xf]
    %v277 = vld [vmem:[%s59 + $0xc] sm:$0xf]
    %v278 = vld [vmem:[%s61] sm:$0x1]
    %v279 = vld [vmem:[%s63] sm:$0x1]
    %v280 = vld [vmem:[%s65] sm:$0x1]
    %v281 = vld [vmem:[%s67] sm:$0xf]
    %v282 = vld [vmem:[%s67 + $0x4] sm:$0xf]
    %v283 = vld [vmem:[%s67 + $0x8] sm:$0xf]
    %v284 = vld [vmem:[%s67 + $0xc] sm:$0xf]
    %v285 = vld [vmem:[%s69] sm:$0x1]
    %v286 = vld [vmem:[%s71] sm:$0xf]
    %v287 = vld [vmem:[%s71 + $0x4] sm:$0xf]
    %v288 = vld [vmem:[%s71 + $0x8] sm:$0xf]
    %v289 = vld [vmem:[%s71 + $0xc] sm:$0xf]
    %v290 = vld [vmem:[%s71 + $0x10] sm:$0xf]
    %v291 = vld [vmem:[%s71 + $0x14] sm:$0xf]
    %v292 = vld [vmem:[%s71 + $0x18] sm:$0xf]
    %v293 = vld [vmem:[%s71 + $0x1c] sm:$0xf]
    %v294 = vld [vmem:[%s73] sm:$0x1]
    %v295 = vld [vmem:[%s75] sm:$0x1]
    %v296 = vld [vmem:[%s77] sm:$0x1]
    %v297 = vld [vmem:[%s79] sm:$0xf]
    %v298 = vld [vmem:[%s79 + $0x4] sm:$0xf]
    %v299 = vld [vmem:[%s79 + $0x8] sm:$0xf]
    %v300 = vld [vmem:[%s79 + $0xc] sm:$0xf]
    %v301 = vld [vmem:[%s81] sm:$0x1]
    %v302 = vld [vmem:[%s83] sm:$0xf]
    %v303 = vld [vmem:[%s83 + $0x4] sm:$0xf]
    %v304 = vld [vmem:[%s83 + $0x8] sm:$0xf]
    %v305 = vld [vmem:[%s83 + $0xc] sm:$0xf]
    %v306 = vld [vmem:[%s85] sm:$0x1]
    %v307 = vld [vmem:[%s87] sm:$0xf]
    %v308 = vld [vmem:[%s87 + $0x4] sm:$0xf]
    %v309 = vld [vmem:[%s87 + $0x8] sm:$0xf]
    %v310 = vld [vmem:[%s87 + $0xc] sm:$0xf]
    %v311 = vld [vmem:[%s87 + $0x10] sm:$0xf]
    %v312 = vld [vmem:[%s87 + $0x14] sm:$0xf]
    %v313 = vld [vmem:[%s87 + $0x18] sm:$0xf]
    %v314 = vld [vmem:[%s87 + $0x1c] sm:$0xf]
    %v315 = vld [vmem:[#allocation2] sm:$0x1]
    %v316 = vpack.c.bf16 %v203, %v202
    %v317 = vpack.c.bf16 %v205, %v204
    %v318 = vpack.c.bf16 %v206, %v206
    %v320 = vperm.slane %v229, 0
    %v328 = vunpack.c.l.b16 %v223
    %v329 = vunpack.c.l.b16 %v224
    %v330 = vunpack.c.l.b16 %v225
    %v331 = vunpack.c.l.b16 %v226
    %v332 = vunpack.c.l.b16 %v227
    %v333 = vunpack.c.l.b16 %v228
    %v334 = vpack.c.b16 %v329, %v328
    %v335 = vpack.c.b16 %v331, %v330
    %v336 = vpack.c.b16 %v333, %v332
    %vm340 = vcmask 392192
    %v342 = vsel %vm340, %v316, 0
    %v345 = vsel %vm340, %v317, 0
    %v348 = vsel %vm340, %v318, 0
    %350 = vmatpush.bf16.msra.mxu0 0
    %351 = vmatpush.bf16.msra.mxu0 0
    %352 = vmatpush.bf16.msra.mxu0 0
    %353 = vmatpush.bf16.msra.mxu0 0
    %354 = vmatpush.bf16.msra.mxu0 0
    %355 = vmatpush.bf16.msra.mxu0 %v336
    %356 = vmatpush.bf16.msra.mxu0 %v335
    %357 = vmatpush.bf16.msra.mxu0 %v334
    %358 = vmatmul.bf16.gmra.mxu0 %v342
    %v359 = vpop.f32.mrf.mxu0
    %v360 = vadd.f32 %v320, %v359
    %v361 = vpop.f32.mrf.mxu0
    %v362 = vadd.f32 %v320, %v361
    %363 = vmatmul.bf16.gmra.mxu0 %v345
    %v364 = vpop.f32.mrf.mxu0
    %v365 = vadd.f32 %v320, %v364
    %v366 = vpop.f32.mrf.mxu0
    %v367 = vadd.f32 %v320, %v366
    %368 = vmatmul.bf16.gmra.mxu0 %v348
    %v369 = vpop.f32.mrf.mxu0
    %v370 = vadd.f32 %v320, %v369
    %v371 = vpop.f32.mrf.mxu0
    %372 = vdwg.mxu0
    %vm373 = vcmask 261120
    %v374 = vsel %vm373, %v360, 0.0
    %375 = vadd.xlane.f32.xlu0 %v374
    %v376 = vpop.xlane.xlu0 %375
    %v377 = vsel %vm373, %v362, 0.0
    %378 = vadd.xlane.f32.xlu0 %v377
    %v379 = vpop.xlane.xlu0 %378
    %v380 = vsel %vm373, %v365, 0.0
    %381 = vadd.xlane.f32.xlu0 %v380
    %v382 = vpop.xlane.xlu0 %381
    %v383 = vsel %vm373, %v367, 0.0
    %384 = vadd.xlane.f32.xlu0 %v383
    %v385 = vpop.xlane.xlu0 %384
    %vm386 = vcmask 254976
    %v387 = vsel %vm386, %v370, 0.0
    %388 = vadd.xlane.f32.xlu0 %v387
    %v389 = vpop.xlane.xlu0 %388
    %v390 = vrcp.pop 32.0
    %v391 = vmul.f32 32.0, %v390
    %v392 = vsub.f32 1.0, %v391
    %v393 = vmul.f32 %v390, %v392
    %v394 = vadd.f32 %v390, %v393
    %vm395 = vweird.f32 %v390
    %v396 = vsel %vm395, %v390, %v394
    %v397 = vmul.f32 %v376, %v396
    %v398 = vmul.f32 %v379, %v396
    %v399 = vmul.f32 %v382, %v396
    %v400 = vmul.f32 %v385, %v396
    %v401 = vmul.f32 %v389, %v396
    %v402 = vsub.f32 %v360, %v397
    %v403 = vsub.f32 %v362, %v398
    %v404 = vsub.f32 %v365, %v399
    %v405 = vsub.f32 %v367, %v400
    %v406 = vsub.f32 %v370, %v401
    %v407 = vmul.f32 %v402, %v402
    %v408 = vmul.f32 %v403, %v403
    %v409 = vmul.f32 %v404, %v404
    %v410 = vmul.f32 %v405, %v405
    %v411 = vmul.f32 %v406, %v406
    %v412 = vsel %vm373, %v407, 0.0
    %413 = vadd.xlane.f32.xlu0 %v412
    %v414 = vpop.xlane.xlu0 %413
    %v415 = vsel %vm373, %v408, 0.0
    %416 = vadd.xlane.f32.xlu0 %v415
    %v417 = vpop.xlane.xlu0 %416
    %v418 = vsel %vm373, %v409, 0.0
    %419 = vadd.xlane.f32.xlu0 %v418
    %v420 = vpop.xlane.xlu0 %419
    %v421 = vsel %vm373, %v410, 0.0
    %422 = vadd.xlane.f32.xlu0 %v421
    %v423 = vpop.xlane.xlu0 %422
    %v424 = vsel %vm386, %v411, 0.0
    %425 = vadd.xlane.f32.xlu0 %v424
    %v426 = vpop.xlane.xlu0 %425
    %v427 = vmul.f32 %v414, %v396
    %v428 = vmul.f32 %v417, %v396
    %v429 = vmul.f32 %v420, %v396
    %v430 = vmul.f32 %v423, %v396
    %v431 = vmul.f32 %v426, %v396
    %v432 = vadd.f32 %v427, 1e-06
    %v433 = vadd.f32 %v428, 1e-06
    %v434 = vadd.f32 %v429, 1e-06
    %v435 = vadd.f32 %v430, 1e-06
    %v436 = vadd.f32 %v431, 1e-06
    %v437 = vrsqrt.pop %v432
    %v438 = vmul.f32 %v437, %v432
    %v439 = vmul.f32 %v438, %v437
    %v440 = vmul.f32 0.5, %v439
    %v441 = vsub.f32 1.5, %v440
    %v442 = vmul.f32 %v437, %v441
    %vm443 = vweird.f32 %v432
    %vm444 = vweird.f32 %v437
    %vm445 = vmor %vm443, %vm444
    %v446 = vsel %vm445, %v437, %v442
    %v447 = vrsqrt.pop %v433
    %v448 = vmul.f32 %v447, %v433
    %v449 = vmul.f32 %v448, %v447
    %v450 = vmul.f32 0.5, %v449
    %v451 = vsub.f32 1.5, %v450
    %v452 = vmul.f32 %v447, %v451
    %vm453 = vweird.f32 %v433
    %vm454 = vweird.f32 %v447
    %vm455 = vmor %vm453, %vm454
    %v456 = vsel %vm455, %v447, %v452
    %v457 = vrsqrt.pop %v434
    %v458 = vmul.f32 %v457, %v434
    %v459 = vmul.f32 %v458, %v457
    %v460 = vmul.f32 0.5, %v459
    %v461 = vsub.f32 1.5, %v460
    %v462 = vmul.f32 %v457, %v461
    %vm463 = vweird.f32 %v434
    %vm464 = vweird.f32 %v457
    %vm465 = vmor %vm463, %vm464
    %v466 = vsel %vm465, %v457, %v462
    %v467 = vrsqrt.pop %v435
    %v468 = vmul.f32 %v467, %v435
    %v469 = vmul.f32 %v468, %v467
    %v470 = vmul.f32 0.5, %v469
    %v471 = vsub.f32 1.5, %v470
    %v472 = vmul.f32 %v467, %v471
    %vm473 = vweird.f32 %v435
    %vm474 = vweird.f32 %v467
    %vm475 = vmor %vm473, %vm474
    %v476 = vsel %vm475, %v467, %v472
    %v477 = vrsqrt.pop %v436
    %v478 = vmul.f32 %v477, %v436
    %v479 = vmul.f32 %v478, %v477
    %v480 = vmul.f32 0.5, %v479
    %v481 = vsub.f32 1.5, %v480
    %v482 = vmul.f32 %v477, %v481
    %vm483 = vweird.f32 %v436
    %vm484 = vweird.f32 %v477
    %vm485 = vmor %vm483, %vm484
    %v486 = vsel %vm485, %v477, %v482
    %v487 = vmul.f32 %v402, %v446
    %v488 = vmul.f32 %v403, %v456
    %v489 = vmul.f32 %v404, %v466
    %v490 = vmul.f32 %v405, %v476
    %v491 = vmul.f32 %v406, %v486
    %v493 = vperm.slane %v230, 0
    %v495 = vmul.f32 %v487, %v493
    %v496 = vmul.f32 %v488, %v493
    %v497 = vmul.f32 %v489, %v493
    %v498 = vmul.f32 %v490, %v493
    %v499 = vmul.f32 %v491, %v493
    %v501 = vperm.slane %v231, 0
    %v503 = vadd.f32 %v495, %v501
    %v504 = vadd.f32 %v496, %v501
    %v505 = vadd.f32 %v497, %v501
    %v506 = vadd.f32 %v498, %v501
    %v507 = vadd.f32 %v499, %v501
    %v508 = vpack.c.bf16 %v504, %v503
    %v509 = vpack.c.bf16 %v506, %v505
    %v510 = vpack.c.bf16 %v507, %v507
    %v512 = vperm.slane %v236, 0
    %v518 = vunpack.c.l.b16 %v232
    %v519 = vunpack.c.l.b16 %v233
    %v520 = vunpack.c.l.b16 %v234
    %v521 = vunpack.c.l.b16 %v235
    %v522 = vpack.c.b16 %v519, %v518
    %v523 = vpack.c.b16 %v521, %v520
    %v527 = vsel %vm373, %v508, 0
    %v530 = vsel %vm373, %v509, 0
    %v533 = vsel %vm373, %v510, 0
    %535 = vmatpush.bf16.msra.mxu0 0
    %536 = vmatpush.bf16.msra.mxu0 0
    %537 = vmatpush.bf16.msra.mxu0 0
    %538 = vmatpush.bf16.msra.mxu0 0
    %539 = vmatpush.bf16.msra.mxu0 0
    %540 = vmatpush.bf16.msra.mxu0 0
    %541 = vmatpush.bf16.msra.mxu0 %v523
    %542 = vmatpush.bf16.msra.mxu0 %v522
    %543 = vmatmul.bf16.gmra.mxu0 %v527
    %v544 = vpop.f32.mrf.mxu0
    %v545 = vadd.f32 %v512, %v544
    %v546 = vpop.f32.mrf.mxu0
    %v547 = vadd.f32 %v512, %v546
    %548 = vmatmul.bf16.gmra.mxu0 %v530
    %v549 = vpop.f32.mrf.mxu0
    %v550 = vadd.f32 %v512, %v549
    %v551 = vpop.f32.mrf.mxu0
    %v552 = vadd.f32 %v512, %v551
    %553 = vmatmul.bf16.gmra.mxu0 %v533
    %v554 = vpop.f32.mrf.mxu0
    %v555 = vadd.f32 %v512, %v554
    %v556 = vpop.f32.mrf.mxu0
    %557 = vdwg.mxu0
    %559 = vset.pattern.permute.xlu0 0
    %560 = vperm.xlu0 %559, %v213
    %v561 = vpop.permute.xlu0 %560
    %564 = vset.pattern.permute.xlu0 0
    %565 = vperm.xlu0 %564, %v214
    %v566 = vpop.permute.xlu0 %565
    %569 = vset.pattern.permute.xlu0 0
    %570 = vperm.xlu0 %569, %v215
    %v571 = vpop.permute.xlu0 %570
    %574 = vset.pattern.permute.xlu0 0
    %575 = vperm.xlu0 %574, %v216
    %v576 = vpop.permute.xlu0 %575
    %579 = vset.pattern.permute.xlu0 0
    %580 = vperm.xlu0 %579, %v217
    %v581 = vpop.permute.xlu0 %580
    %v584 = vperm.slane %v212, 0
    %v586 = vmul.f32 %v561, %v584
    %v587 = vmul.f32 %v566, %v584
    %v588 = vmul.f32 %v571, %v584
    %v589 = vmul.f32 %v576, %v584
    %v590 = vmul.f32 %v581, %v584
    %v591 = vsub.f32 1.0, %v213
    %v592 = vsub.f32 1.0, %v214
    %v593 = vsub.f32 1.0, %v215
    %v594 = vsub.f32 1.0, %v216
    %v595 = vsub.f32 1.0, %v217
    %597 = vset.pattern.permute.xlu0 0
    %598 = vperm.xlu0 %597, %v591
    %v599 = vpop.permute.xlu0 %598
    %602 = vset.pattern.permute.xlu0 0
    %603 = vperm.xlu0 %602, %v592
    %v604 = vpop.permute.xlu0 %603
    %607 = vset.pattern.permute.xlu0 0
    %608 = vperm.xlu0 %607, %v593
    %v609 = vpop.permute.xlu0 %608
    %612 = vset.pattern.permute.xlu0 0
    %613 = vperm.xlu0 %612, %v594
    %v614 = vpop.permute.xlu0 %613
    %617 = vset.pattern.permute.xlu0 0
    %618 = vperm.xlu0 %617, %v595
    %v619 = vpop.permute.xlu0 %618
    %v621 = vmul.f32 %v599, %v545
    %v622 = vmul.f32 %v604, %v547
    %v623 = vmul.f32 %v609, %v550
    %v624 = vmul.f32 %v614, %v552
    %v625 = vmul.f32 %v619, %v555
    %v626 = vadd.f32 %v586, %v621
    %v627 = vadd.f32 %v587, %v622
    %v628 = vadd.f32 %v588, %v623
    %v629 = vadd.f32 %v589, %v624
    %v630 = vadd.f32 %v590, %v625
    %v631 = vadd.f32 %v626, %v207
    %v632 = vadd.f32 %v627, %v208
    %v633 = vadd.f32 %v628, %v209
    %v634 = vadd.f32 %v629, %v210
    %v635 = vadd.f32 %v630, %v211
    %v636 = vsel %vm373, %v631, 0.0
    %637 = vadd.xlane.f32.xlu0 %v636
    %v638 = vpop.xlane.xlu0 %637
    %v639 = vsel %vm373, %v632, 0.0
    %640 = vadd.xlane.f32.xlu0 %v639
    %v641 = vpop.xlane.xlu0 %640
    %v642 = vsel %vm373, %v633, 0.0
    %643 = vadd.xlane.f32.xlu0 %v642
    %v644 = vpop.xlane.xlu0 %643
    %v645 = vsel %vm373, %v634, 0.0
    %646 = vadd.xlane.f32.xlu0 %v645
    %v647 = vpop.xlane.xlu0 %646
    %v648 = vsel %vm386, %v635, 0.0
    %649 = vadd.xlane.f32.xlu0 %v648
    %v650 = vpop.xlane.xlu0 %649
    %v651 = vmul.f32 %v638, %v396
    %v652 = vmul.f32 %v641, %v396
    %v653 = vmul.f32 %v644, %v396
    %v654 = vmul.f32 %v647, %v396
    %v655 = vmul.f32 %v650, %v396
    %v656 = vsub.f32 %v631, %v651
    %v657 = vsub.f32 %v632, %v652
    %v658 = vsub.f32 %v633, %v653
    %v659 = vsub.f32 %v634, %v654
    %v660 = vsub.f32 %v635, %v655
    %v661 = vmul.f32 %v656, %v656
    %v662 = vmul.f32 %v657, %v657
    %v663 = vmul.f32 %v658, %v658
    %v664 = vmul.f32 %v659, %v659
    %v665 = vmul.f32 %v660, %v660
    %v666 = vsel %vm373, %v661, 0.0
    %667 = vadd.xlane.f32.xlu0 %v666
    %v668 = vpop.xlane.xlu0 %667
    %v669 = vsel %vm373, %v662, 0.0
    %670 = vadd.xlane.f32.xlu0 %v669
    %v671 = vpop.xlane.xlu0 %670
    %v672 = vsel %vm373, %v663, 0.0
    %673 = vadd.xlane.f32.xlu0 %v672
    %v674 = vpop.xlane.xlu0 %673
    %v675 = vsel %vm373, %v664, 0.0
    %676 = vadd.xlane.f32.xlu0 %v675
    %v677 = vpop.xlane.xlu0 %676
    %v678 = vsel %vm386, %v665, 0.0
    %679 = vadd.xlane.f32.xlu0 %v678
    %v680 = vpop.xlane.xlu0 %679
    %v681 = vmul.f32 %v668, %v396
    %v682 = vmul.f32 %v671, %v396
    %v683 = vmul.f32 %v674, %v396
    %v684 = vmul.f32 %v677, %v396
    %v685 = vmul.f32 %v680, %v396
    %v686 = vadd.f32 %v681, 1e-06
    %v687 = vadd.f32 %v682, 1e-06
    %v688 = vadd.f32 %v683, 1e-06
    %v689 = vadd.f32 %v684, 1e-06
    %v690 = vadd.f32 %v685, 1e-06
    %v691 = vrsqrt.pop %v686
    %v692 = vmul.f32 %v691, %v686
    %v693 = vmul.f32 %v692, %v691
    %v694 = vmul.f32 0.5, %v693
    %v695 = vsub.f32 1.5, %v694
    %v696 = vmul.f32 %v691, %v695
    %vm697 = vweird.f32 %v686
    %vm698 = vweird.f32 %v691
    %vm699 = vmor %vm697, %vm698
    %v700 = vsel %vm699, %v691, %v696
    %v701 = vrsqrt.pop %v687
    %v702 = vmul.f32 %v701, %v687
    %v703 = vmul.f32 %v702, %v701
    %v704 = vmul.f32 0.5, %v703
    %v705 = vsub.f32 1.5, %v704
    %v706 = vmul.f32 %v701, %v705
    %vm707 = vweird.f32 %v687
    %vm708 = vweird.f32 %v701
    %vm709 = vmor %vm707, %vm708
    %v710 = vsel %vm709, %v701, %v706
    %v711 = vrsqrt.pop %v688
    %v712 = vmul.f32 %v711, %v688
    %v713 = vmul.f32 %v712, %v711
    %v714 = vmul.f32 0.5, %v713
    %v715 = vsub.f32 1.5, %v714
    %v716 = vmul.f32 %v711, %v715
    %vm717 = vweird.f32 %v688
    %vm718 = vweird.f32 %v711
    %vm719 = vmor %vm717, %vm718
    %v720 = vsel %vm719, %v711, %v716
    %v721 = vrsqrt.pop %v689
    %v722 = vmul.f32 %v721, %v689
    %v723 = vmul.f32 %v722, %v721
    %v724 = vmul.f32 0.5, %v723
    %v725 = vsub.f32 1.5, %v724
    %v726 = vmul.f32 %v721, %v725
    %vm727 = vweird.f32 %v689
    %vm728 = vweird.f32 %v721
    %vm729 = vmor %vm727, %vm728
    %v730 = vsel %vm729, %v721, %v726
    %v731 = vrsqrt.pop %v690
    %v732 = vmul.f32 %v731, %v690
    %v733 = vmul.f32 %v732, %v731
    %v734 = vmul.f32 0.5, %v733
    %v735 = vsub.f32 1.5, %v734
    %v736 = vmul.f32 %v731, %v735
    %vm737 = vweird.f32 %v690
    %vm738 = vweird.f32 %v731
    %vm739 = vmor %vm737, %vm738
    %v740 = vsel %vm739, %v731, %v736
    %v741 = vmul.f32 %v656, %v700
    %v742 = vmul.f32 %v657, %v710
    %v743 = vmul.f32 %v658, %v720
    %v744 = vmul.f32 %v659, %v730
    %v745 = vmul.f32 %v660, %v740
    %v747 = vperm.slane %v237, 0
    %v749 = vmul.f32 %v741, %v747
    %v750 = vmul.f32 %v742, %v747
    %v751 = vmul.f32 %v743, %v747
    %v752 = vmul.f32 %v744, %v747
    %v753 = vmul.f32 %v745, %v747
    %v755 = vperm.slane %v238, 0
    %v757 = vadd.f32 %v749, %v755
    %v758 = vadd.f32 %v750, %v755
    %v759 = vadd.f32 %v751, %v755
    %v760 = vadd.f32 %v752, %v755
    %v761 = vadd.f32 %v753, %v755
    %v762 = vsel %vm373, %v757, 0.0
    %763 = vadd.xlane.f32.xlu0 %v762
    %v764 = vpop.xlane.xlu0 %763
    %v765 = vsel %vm373, %v758, 0.0
    %766 = vadd.xlane.f32.xlu0 %v765
    %v767 = vpop.xlane.xlu0 %766
    %v768 = vsel %vm373, %v759, 0.0
    %769 = vadd.xlane.f32.xlu0 %v768
    %v770 = vpop.xlane.xlu0 %769
    %v771 = vsel %vm373, %v760, 0.0
    %772 = vadd.xlane.f32.xlu0 %v771
    %v773 = vpop.xlane.xlu0 %772
    %v774 = vsel %vm386, %v761, 0.0
    %775 = vadd.xlane.f32.xlu0 %v774
    %v776 = vpop.xlane.xlu0 %775
    %v777 = vmul.f32 %v764, %v396
    %v778 = vmul.f32 %v767, %v396
    %v779 = vmul.f32 %v770, %v396
    %v780 = vmul.f32 %v773, %v396
    %v781 = vmul.f32 %v776, %v396
    %v782 = vsub.f32 %v757, %v777
    %v783 = vsub.f32 %v758, %v778
    %v784 = vsub.f32 %v759, %v779
    %v785 = vsub.f32 %v760, %v780
    %v786 = vsub.f32 %v761, %v781
    %v787 = vmul.f32 %v782, %v782
    %v788 = vmul.f32 %v783, %v783
    %v789 = vmul.f32 %v784, %v784
    %v790 = vmul.f32 %v785, %v785
    %v791 = vmul.f32 %v786, %v786
    %v792 = vsel %vm373, %v787, 0.0
    %793 = vadd.xlane.f32.xlu0 %v792
    %v794 = vpop.xlane.xlu0 %793
    %v795 = vsel %vm373, %v788, 0.0
    %796 = vadd.xlane.f32.xlu0 %v795
    %v797 = vpop.xlane.xlu0 %796
    %v798 = vsel %vm373, %v789, 0.0
    %799 = vadd.xlane.f32.xlu0 %v798
    %v800 = vpop.xlane.xlu0 %799
    %v801 = vsel %vm373, %v790, 0.0
    %802 = vadd.xlane.f32.xlu0 %v801
    %v803 = vpop.xlane.xlu0 %802
    %v804 = vsel %vm386, %v791, 0.0
    %805 = vadd.xlane.f32.xlu0 %v804
    %v806 = vpop.xlane.xlu0 %805
    %v807 = vmul.f32 %v794, %v396
    %v808 = vmul.f32 %v797, %v396
    %v809 = vmul.f32 %v800, %v396
    %v810 = vmul.f32 %v803, %v396
    %v811 = vmul.f32 %v806, %v396
    %v812 = vadd.f32 %v807, 1e-06
    %v813 = vadd.f32 %v808, 1e-06
    %v814 = vadd.f32 %v809, 1e-06
    %v815 = vadd.f32 %v810, 1e-06
    %v816 = vadd.f32 %v811, 1e-06
    %v817 = vrsqrt.pop %v812
    %v818 = vmul.f32 %v817, %v812
    %v819 = vmul.f32 %v818, %v817
    %v820 = vmul.f32 0.5, %v819
    %v821 = vsub.f32 1.5, %v820
    %v822 = vmul.f32 %v817, %v821
    %vm823 = vweird.f32 %v812
    %vm824 = vweird.f32 %v817
    %vm825 = vmor %vm823, %vm824
    %v826 = vsel %vm825, %v817, %v822
    %v827 = vrsqrt.pop %v813
    %v828 = vmul.f32 %v827, %v813
    %v829 = vmul.f32 %v828, %v827
    %v830 = vmul.f32 0.5, %v829
    %v831 = vsub.f32 1.5, %v830
    %v832 = vmul.f32 %v827, %v831
    %vm833 = vweird.f32 %v813
    %vm834 = vweird.f32 %v827
    %vm835 = vmor %vm833, %vm834
    %v836 = vsel %vm835, %v827, %v832
    %v837 = vrsqrt.pop %v814
    %v838 = vmul.f32 %v837, %v814
    %v839 = vmul.f32 %v838, %v837
    %v840 = vmul.f32 0.5, %v839
    %v841 = vsub.f32 1.5, %v840
    %v842 = vmul.f32 %v837, %v841
    %vm843 = vweird.f32 %v814
    %vm844 = vweird.f32 %v837
    %vm845 = vmor %vm843, %vm844
    %v846 = vsel %vm845, %v837, %v842
    %v847 = vrsqrt.pop %v815
    %v848 = vmul.f32 %v847, %v815
    %v849 = vmul.f32 %v848, %v847
    %v850 = vmul.f32 0.5, %v849
    %v851 = vsub.f32 1.5, %v850
    %v852 = vmul.f32 %v847, %v851
    %vm853 = vweird.f32 %v815
    %vm854 = vweird.f32 %v847
    %vm855 = vmor %vm853, %vm854
    %v856 = vsel %vm855, %v847, %v852
    %v857 = vrsqrt.pop %v816
    %v858 = vmul.f32 %v857, %v816
    %v859 = vmul.f32 %v858, %v857
    %v860 = vmul.f32 0.5, %v859
    %v861 = vsub.f32 1.5, %v860
    %v862 = vmul.f32 %v857, %v861
    %vm863 = vweird.f32 %v816
    %vm864 = vweird.f32 %v857
    %vm865 = vmor %vm863, %vm864
    %v866 = vsel %vm865, %v857, %v862
    %v867 = vmul.f32 %v782, %v826
    %v868 = vmul.f32 %v783, %v836
    %v869 = vmul.f32 %v784, %v846
    %v870 = vmul.f32 %v785, %v856
    %v871 = vmul.f32 %v786, %v866
    %v873 = vperm.slane %v239, 0
    %v875 = vmul.f32 %v867, %v873
    %v876 = vmul.f32 %v868, %v873
    %v877 = vmul.f32 %v869, %v873
    %v878 = vmul.f32 %v870, %v873
    %v879 = vmul.f32 %v871, %v873
    %v881 = vperm.slane %v240, 0
    %v883 = vadd.f32 %v875, %v881
    %v884 = vadd.f32 %v876, %v881
    %v885 = vadd.f32 %v877, %v881
    %v886 = vadd.f32 %v878, %v881
    %v887 = vadd.f32 %v879, %v881
    %v888 = vpack.c.bf16 %v884, %v883
    %v889 = vpack.c.bf16 %v886, %v885
    %v890 = vpack.c.bf16 %v887, %v887
    %v892 = vperm.slane %v245, 0
    %v898 = vunpack.c.l.b16 %v241
    %v899 = vunpack.c.l.b16 %v242
    %v900 = vunpack.c.l.b16 %v243
    %v901 = vunpack.c.l.b16 %v244
    %v902 = vpack.c.b16 %v899, %v898
    %v903 = vpack.c.b16 %v901, %v900
    %v907 = vsel %vm373, %v888, 0
    %v910 = vsel %vm373, %v889, 0
    %v913 = vsel %vm373, %v890, 0
    %915 = vmatpush.bf16.msra.mxu0 0
    %916 = vmatpush.bf16.msra.mxu0 0
    %917 = vmatpush.bf16.msra.mxu0 0
    %918 = vmatpush.bf16.msra.mxu0 0
    %919 = vmatpush.bf16.msra.mxu0 0
    %920 = vmatpush.bf16.msra.mxu0 0
    %921 = vmatpush.bf16.msra.mxu0 %v903
    %922 = vmatpush.bf16.msra.mxu0 %v902
    %923 = vmatmul.bf16.gmra.mxu0 %v907
    %v924 = vpop.f32.mrf.mxu0
    %v925 = vadd.f32 %v892, %v924
    %v926 = vpop.f32.mrf.mxu0
    %v927 = vadd.f32 %v892, %v926
    %928 = vmatmul.bf16.gmra.mxu0 %v910
    %v929 = vpop.f32.mrf.mxu0
    %v930 = vadd.f32 %v892, %v929
    %v931 = vpop.f32.mrf.mxu0
    %v932 = vadd.f32 %v892, %v931
    %933 = vmatmul.bf16.gmra.mxu0 %v913
    %v934 = vpop.f32.mrf.mxu0
    %v935 = vadd.f32 %v892, %v934
    %v936 = vpop.f32.mrf.mxu0
    %937 = vdwg.mxu0
    %v938 = vpack.c.bf16 %v927, %v925
    %v939 = vpack.c.bf16 %v932, %v930
    %v940 = vpack.c.bf16 %v935, %v935
    %944 = vrot.lane.b32.xlu0 %v938, 96
    %v945 = vpop.permute.xlu0 %944
    %946 = vrot.lane.b32.xlu0 %v939, 96
    %v947 = vpop.permute.xlu0 %946
    %948 = vrot.lane.b32.xlu0 %v940, 96
    %v949 = vpop.permute.xlu0 %948
    %vm950 = vcmask 64512
    %v952 = vsel %vm950, %v938, 0
    %v955 = vsel %vm950, %v939, 0
    %v958 = vsel %vm950, %v940, 0
    %v961 = vsel %vm950, %v945, 0
    %v964 = vsel %vm950, %v947, 0
    %v967 = vsel %vm950, %v949, 0
    %969 = vmatpush.bf16.xpose.msra.mxu0 0
    %970 = vmatpush.bf16.xpose.msra.mxu0 0
    %971 = vmatpush.bf16.xpose.msra.mxu0 0
    %972 = vmatpush.bf16.xpose.msra.mxu0 0
    %973 = vmatpush.bf16.xpose.msra.mxu0 0
    %974 = vmatpush.bf16.xpose.msra.mxu0 %v967
    %975 = vmatpush.bf16.xpose.msra.mxu0 %v964
    %976 = vmatpush.bf16.xpose.msra.mxu0 %v961
    %977 = vmatmul.bf16.gmra.mxu0 %v952
    %v978 = vpop.f32.mrf.mxu0
    %v979 = vadd.f32 0.0, %v978
    %v980 = vpop.f32.mrf.mxu0
    %v981 = vadd.f32 0.0, %v980
    %982 = vmatmul.bf16.gmra.mxu0 %v955
    %v983 = vpop.f32.mrf.mxu0
    %v984 = vadd.f32 0.0, %v983
    %v985 = vpop.f32.mrf.mxu0
    %v986 = vadd.f32 0.0, %v985
    %987 = vmatmul.bf16.gmra.mxu0 %v958
    %v988 = vpop.f32.mrf.mxu0
    %v989 = vadd.f32 0.0, %v988
    %v990 = vpop.f32.mrf.mxu0
    %991 = vdwg.mxu0
    %v992 = vmul.f32 %v979, 0.35355338
    %v993 = vmul.f32 %v981, 0.35355338
    %v994 = vmul.f32 %v984, 0.35355338
    %v995 = vmul.f32 %v986, 0.35355338
    %v996 = vmul.f32 %v989, 0.35355338
    %v997 = vadd.f32 %v992, %v218
    %v998 = vadd.f32 %v993, %v219
    %v999 = vadd.f32 %v994, %v220
    %v1000 = vadd.f32 %v995, %v221
    %v1001 = vadd.f32 %v996, %v222
    %vm1002 = vcmask 277504
    %v1003 = vsel %vm1002, %v997, -inf
    %1004 = vmax.xlane.f32.xlu0 %v1003
    %v1005 = vpop.xlane.xlu0 %1004
    %v1006 = vsel %vm1002, %v998, -inf
    %1007 = vmax.xlane.f32.xlu0 %v1006
    %v1008 = vpop.xlane.xlu0 %1007
    %v1009 = vsel %vm1002, %v999, -inf
    %1010 = vmax.xlane.f32.xlu0 %v1009
    %v1011 = vpop.xlane.xlu0 %1010
    %v1012 = vsel %vm1002, %v1000, -inf
    %1013 = vmax.xlane.f32.xlu0 %v1012
    %v1014 = vpop.xlane.xlu0 %1013
    %vm1015 = vcmask 271360
    %v1016 = vsel %vm1015, %v1001, -inf
    %1017 = vmax.xlane.f32.xlu0 %v1016
    %v1018 = vpop.xlane.xlu0 %1017
    %v1019 = vsub.f32 %v997, %v1005
    %v1020 = vsub.f32 %v998, %v1008
    %v1021 = vsub.f32 %v999, %v1011
    %v1022 = vsub.f32 %v1000, %v1014
    %v1023 = vsub.f32 %v1001, %v1018
    %v1024 = vmul.f32 %v1019, 1.442695
    %v1025 = vpow.pop %v1024
    %v1026 = vmul.f32 %v1020, 1.442695
    %v1027 = vpow.pop %v1026
    %v1028 = vmul.f32 %v1021, 1.442695
    %v1029 = vpow.pop %v1028
    %v1030 = vmul.f32 %v1022, 1.442695
    %v1031 = vpow.pop %v1030
    %v1032 = vmul.f32 %v1023, 1.442695
    %v1033 = vpow.pop %v1032
    %v1034 = vsel %vm1002, %v1025, 0.0
    %1035 = vadd.xlane.f32.xlu0 %v1034
    %v1036 = vpop.xlane.xlu0 %1035
    %v1037 = vsel %vm1002, %v1027, 0.0
    %1038 = vadd.xlane.f32.xlu0 %v1037
    %v1039 = vpop.xlane.xlu0 %1038
    %v1040 = vsel %vm1002, %v1029, 0.0
    %1041 = vadd.xlane.f32.xlu0 %v1040
    %v1042 = vpop.xlane.xlu0 %1041
    %v1043 = vsel %vm1002, %v1031, 0.0
    %1044 = vadd.xlane.f32.xlu0 %v1043
    %v1045 = vpop.xlane.xlu0 %1044
    %v1046 = vsel %vm1015, %v1033, 0.0
    %1047 = vadd.xlane.f32.xlu0 %v1046
    %v1048 = vpop.xlane.xlu0 %1047
    %v1049 = vrcp.pop %v1036
    %v1050 = vrcp.pop %v1039
    %v1051 = vrcp.pop %v1042
    %v1052 = vrcp.pop %v1045
    %v1053 = vrcp.pop %v1048
    %v1054 = vmul.f32 %v1025, %v1049
    %v1055 = vmul.f32 %v1027, %v1050
    %v1056 = vmul.f32 %v1029, %v1051
    %v1057 = vmul.f32 %v1031, %v1052
    %v1058 = vmul.f32 %v1033, %v1053
    %v1059 = vpack.c.bf16 %v1055, %v1054
    %v1060 = vpack.c.bf16 %v1057, %v1056
    %v1061 = vpack.c.bf16 %v1058, %v1058
    %1062 = vrot.lane.b32.xlu0 %v938, 64
    %v1063 = vpop.permute.xlu0 %1062
    %1064 = vrot.lane.b32.xlu0 %v939, 64
    %v1065 = vpop.permute.xlu0 %1064
    %1066 = vrot.lane.b32.xlu0 %v940, 64
    %v1067 = vpop.permute.xlu0 %1066
    %v1071 = vsel %vm1002, %v1059, 0
    %v1074 = vsel %vm1002, %v1060, 0
    %v1077 = vsel %vm1002, %v1061, 0
    %vm1079 = vcmask 1040384
    %v1081 = vsel %vm1079, %v1067, 0
    %1083 = vmatpush.bf16.msra.mxu0 0
    %1084 = vmatpush.bf16.msra.mxu0 0
    %1085 = vmatpush.bf16.msra.mxu0 0
    %1086 = vmatpush.bf16.msra.mxu0 0
    %1087 = vmatpush.bf16.msra.mxu0 0
    %1088 = vmatpush.bf16.msra.mxu0 %v1081
    %1089 = vmatpush.bf16.msra.mxu0 %v1065
    %1090 = vmatpush.bf16.msra.mxu0 %v1063
    %1091 = vmatmul.bf16.gmra.mxu0 %v1071
    %v1092 = vpop.f32.mrf.mxu0
    %v1093 = vadd.f32 0.0, %v1092
    %v1094 = vpop.f32.mrf.mxu0
    %v1095 = vadd.f32 0.0, %v1094
    %1096 = vmatmul.bf16.gmra.mxu0 %v1074
    %v1097 = vpop.f32.mrf.mxu0
    %v1098 = vadd.f32 0.0, %v1097
    %v1099 = vpop.f32.mrf.mxu0
    %v1100 = vadd.f32 0.0, %v1099
    %1101 = vmatmul.bf16.gmra.mxu0 %v1077
    %v1102 = vpop.f32.mrf.mxu0
    %v1103 = vadd.f32 0.0, %v1102
    %v1104 = vpop.f32.mrf.mxu0
    %1105 = vdwg.mxu0
    %1106 = vrot.lane.b32.xlu0 %v938, 120
    %v1107 = vpop.permute.xlu0 %1106
    %1108 = vrot.lane.b32.xlu0 %v939, 120
    %v1109 = vpop.permute.xlu0 %1108
    %1110 = vrot.lane.b32.xlu0 %v940, 120
    %v1111 = vpop.permute.xlu0 %1110
    %1112 = vrot.lane.b32.xlu0 %v938, 88
    %v1113 = vpop.permute.xlu0 %1112
    %1114 = vrot.lane.b32.xlu0 %v939, 88
    %v1115 = vpop.permute.xlu0 %1114
    %1116 = vrot.lane.b32.xlu0 %v940, 88
    %v1117 = vpop.permute.xlu0 %1116
    %v1119 = vsel %vm950, %v1107, 0
    %v1122 = vsel %vm950, %v1109, 0
    %v1125 = vsel %vm950, %v1111, 0
    %v1128 = vsel %vm950, %v1113, 0
    %v1131 = vsel %vm950, %v1115, 0
    %v1134 = vsel %vm950, %v1117, 0
    %1136 = vmatpush.bf16.xpose.msra.mxu0 0
    %1137 = vmatpush.bf16.xpose.msra.mxu0 0
    %1138 = vmatpush.bf16.xpose.msra.mxu0 0
    %1139 = vmatpush.bf16.xpose.msra.mxu0 0
    %1140 = vmatpush.bf16.xpose.msra.mxu0 0
    %1141 = vmatpush.bf16.xpose.msra.mxu0 %v1134
    %1142 = vmatpush.bf16.xpose.msra.mxu0 %v1131
    %1143 = vmatpush.bf16.xpose.msra.mxu0 %v1128
    %1144 = vmatmul.bf16.gmra.mxu0 %v1119
    %v1145 = vpop.f32.mrf.mxu0
    %v1146 = vadd.f32 0.0, %v1145
    %v1147 = vpop.f32.mrf.mxu0
    %v1148 = vadd.f32 0.0, %v1147
    %1149 = vmatmul.bf16.gmra.mxu0 %v1122
    %v1150 = vpop.f32.mrf.mxu0
    %v1151 = vadd.f32 0.0, %v1150
    %v1152 = vpop.f32.mrf.mxu0
    %v1153 = vadd.f32 0.0, %v1152
    %1154 = vmatmul.bf16.gmra.mxu0 %v1125
    %v1155 = vpop.f32.mrf.mxu0
    %v1156 = vadd.f32 0.0, %v1155
    %v1157 = vpop.f32.mrf.mxu0
    %1158 = vdwg.mxu0
    %v1159 = vmul.f32 %v1146, 0.35355338
    %v1160 = vmul.f32 %v1148, 0.35355338
    %v1161 = vmul.f32 %v1151, 0.35355338
    %v1162 = vmul.f32 %v1153, 0.35355338
    %v1163 = vmul.f32 %v1156, 0.35355338
    %v1164 = vadd.f32 %v1159, %v218
    %v1165 = vadd.f32 %v1160, %v219
    %v1166 = vadd.f32 %v1161, %v220
    %v1167 = vadd.f32 %v1162, %v221
    %v1168 = vadd.f32 %v1163, %v222
    %v1169 = vsel %vm1002, %v1164, -inf
    %1170 = vmax.xlane.f32.xlu0 %v1169
    %v1171 = vpop.xlane.xlu0 %1170
    %v1172 = vsel %vm1002, %v1165, -inf
    %1173 = vmax.xlane.f32.xlu0 %v1172
    %v1174 = vpop.xlane.xlu0 %1173
    %v1175 = vsel %vm1002, %v1166, -inf
    %1176 = vmax.xlane.f32.xlu0 %v1175
    %v1177 = vpop.xlane.xlu0 %1176
    %v1178 = vsel %vm1002, %v1167, -inf
    %1179 = vmax.xlane.f32.xlu0 %v1178
    %v1180 = vpop.xlane.xlu0 %1179
    %v1181 = vsel %vm1015, %v1168, -inf
    %1182 = vmax.xlane.f32.xlu0 %v1181
    %v1183 = vpop.xlane.xlu0 %1182
    %v1184 = vsub.f32 %v1164, %v1171
    %v1185 = vsub.f32 %v1165, %v1174
    %v1186 = vsub.f32 %v1166, %v1177
    %v1187 = vsub.f32 %v1167, %v1180
    %v1188 = vsub.f32 %v1168, %v1183
    %v1189 = vmul.f32 %v1184, 1.442695
    %v1190 = vpow.pop %v1189
    %v1191 = vmul.f32 %v1185, 1.442695
    %v1192 = vpow.pop %v1191
    %v1193 = vmul.f32 %v1186, 1.442695
    %v1194 = vpow.pop %v1193
    %v1195 = vmul.f32 %v1187, 1.442695
    %v1196 = vpow.pop %v1195
    %v1197 = vmul.f32 %v1188, 1.442695
    %v1198 = vpow.pop %v1197
    %v1199 = vsel %vm1002, %v1190, 0.0
    %1200 = vadd.xlane.f32.xlu0 %v1199
    %v1201 = vpop.xlane.xlu0 %1200
    %v1202 = vsel %vm1002, %v1192, 0.0
    %1203 = vadd.xlane.f32.xlu0 %v1202
    %v1204 = vpop.xlane.xlu0 %1203
    %v1205 = vsel %vm1002, %v1194, 0.0
    %1206 = vadd.xlane.f32.xlu0 %v1205
    %v1207 = vpop.xlane.xlu0 %1206
    %v1208 = vsel %vm1002, %v1196, 0.0
    %1209 = vadd.xlane.f32.xlu0 %v1208
    %v1210 = vpop.xlane.xlu0 %1209
    %v1211 = vsel %vm1015, %v1198, 0.0
    %1212 = vadd.xlane.f32.xlu0 %v1211
    %v1213 = vpop.xlane.xlu0 %1212
    %v1214 = vrcp.pop %v1201
    %v1215 = vrcp.pop %v1204
    %v1216 = vrcp.pop %v1207
    %v1217 = vrcp.pop %v1210
    %v1218 = vrcp.pop %v1213
    %v1219 = vmul.f32 %v1190, %v1214
    %v1220 = vmul.f32 %v1192, %v1215
    %v1221 = vmul.f32 %v1194, %v1216
    %v1222 = vmul.f32 %v1196, %v1217
    %v1223 = vmul.f32 %v1198, %v1218
    %v1224 = vpack.c.bf16 %v1220, %v1219
    %v1225 = vpack.c.bf16 %v1222, %v1221
    %v1226 = vpack.c.bf16 %v1223, %v1223
    %1227 = vrot.lane.b32.xlu0 %v938, 56
    %v1228 = vpop.permute.xlu0 %1227
    %1229 = vrot.lane.b32.xlu0 %v939, 56
    %v1230 = vpop.permute.xlu0 %1229
    %1231 = vrot.lane.b32.xlu0 %v940, 56
    %v1232 = vpop.permute.xlu0 %1231
    %v1236 = vsel %vm1002, %v1224, 0
    %v1239 = vsel %vm1002, %v1225, 0
    %v1242 = vsel %vm1002, %v1226, 0
    %v1245 = vsel %vm1079, %v1232, 0
    %1247 = vmatpush.bf16.msra.mxu0 0
    %1248 = vmatpush.bf16.msra.mxu0 0
    %1249 = vmatpush.bf16.msra.mxu0 0
    %1250 = vmatpush.bf16.msra.mxu0 0
    %1251 = vmatpush.bf16.msra.mxu0 0
    %1252 = vmatpush.bf16.msra.mxu0 %v1245
    %1253 = vmatpush.bf16.msra.mxu0 %v1230
    %1254 = vmatpush.bf16.msra.mxu0 %v1228
    %1255 = vmatmul.bf16.gmra.mxu0 %v1236
    %v1256 = vpop.f32.mrf.mxu0
    %v1257 = vadd.f32 0.0, %v1256
    %v1258 = vpop.f32.mrf.mxu0
    %v1259 = vadd.f32 0.0, %v1258
    %1260 = vmatmul.bf16.gmra.mxu0 %v1239
    %v1261 = vpop.f32.mrf.mxu0
    %v1262 = vadd.f32 0.0, %v1261
    %v1263 = vpop.f32.mrf.mxu0
    %v1264 = vadd.f32 0.0, %v1263
    %1265 = vmatmul.bf16.gmra.mxu0 %v1242
    %v1266 = vpop.f32.mrf.mxu0
    %v1267 = vadd.f32 0.0, %v1266
    %v1268 = vpop.f32.mrf.mxu0
    %1269 = vdwg.mxu0
    %1270 = vrot.lane.b32.xlu0 %v938, 112
    %v1271 = vpop.permute.xlu0 %1270
    %1272 = vrot.lane.b32.xlu0 %v939, 112
    %v1273 = vpop.permute.xlu0 %1272
    %1274 = vrot.lane.b32.xlu0 %v940, 112
    %v1275 = vpop.permute.xlu0 %1274
    %1276 = vrot.lane.b32.xlu0 %v938, 80
    %v1277 = vpop.permute.xlu0 %1276
    %1278 = vrot.lane.b32.xlu0 %v939, 80
    %v1279 = vpop.permute.xlu0 %1278
    %1280 = vrot.lane.b32.xlu0 %v940, 80
    %v1281 = vpop.permute.xlu0 %1280
    %v1283 = vsel %vm950, %v1271, 0
    %v1286 = vsel %vm950, %v1273, 0
    %v1289 = vsel %vm950, %v1275, 0
    %v1292 = vsel %vm950, %v1277, 0
    %v1295 = vsel %vm950, %v1279, 0
    %v1298 = vsel %vm950, %v1281, 0
    %1300 = vmatpush.bf16.xpose.msra.mxu0 0
    %1301 = vmatpush.bf16.xpose.msra.mxu0 0
    %1302 = vmatpush.bf16.xpose.msra.mxu0 0
    %1303 = vmatpush.bf16.xpose.msra.mxu0 0
    %1304 = vmatpush.bf16.xpose.msra.mxu0 0
    %1305 = vmatpush.bf16.xpose.msra.mxu0 %v1298
    %1306 = vmatpush.bf16.xpose.msra.mxu0 %v1295
    %1307 = vmatpush.bf16.xpose.msra.mxu0 %v1292
    %1308 = vmatmul.bf16.gmra.mxu0 %v1283
    %v1309 = vpop.f32.mrf.mxu0
    %v1310 = vadd.f32 0.0, %v1309
    %v1311 = vpop.f32.mrf.mxu0
    %v1312 = vadd.f32 0.0, %v1311
    %1313 = vmatmul.bf16.gmra.mxu0 %v1286
    %v1314 = vpop.f32.mrf.mxu0
    %v1315 = vadd.f32 0.0, %v1314
    %v1316 = vpop.f32.mrf.mxu0
    %v1317 = vadd.f32 0.0, %v1316
    %1318 = vmatmul.bf16.gmra.mxu0 %v1289
    %v1319 = vpop.f32.mrf.mxu0
    %v1320 = vadd.f32 0.0, %v1319
    %v1321 = vpop.f32.mrf.mxu0
    %1322 = vdwg.mxu0
    %v1323 = vmul.f32 %v1310, 0.35355338
    %v1324 = vmul.f32 %v1312, 0.35355338
    %v1325 = vmul.f32 %v1315, 0.35355338
    %v1326 = vmul.f32 %v1317, 0.35355338
    %v1327 = vmul.f32 %v1320, 0.35355338
    %v1328 = vadd.f32 %v1323, %v218
    %v1329 = vadd.f32 %v1324, %v219
    %v1330 = vadd.f32 %v1325, %v220
    %v1331 = vadd.f32 %v1326, %v221
    %v1332 = vadd.f32 %v1327, %v222
    %v1333 = vsel %vm1002, %v1328, -inf
    %1334 = vmax.xlane.f32.xlu0 %v1333
    %v1335 = vpop.xlane.xlu0 %1334
    %v1336 = vsel %vm1002, %v1329, -inf
    %1337 = vmax.xlane.f32.xlu0 %v1336
    %v1338 = vpop.xlane.xlu0 %1337
    %v1339 = vsel %vm1002, %v1330, -inf
    %1340 = vmax.xlane.f32.xlu0 %v1339
    %v1341 = vpop.xlane.xlu0 %1340
    %v1342 = vsel %vm1002, %v1331, -inf
    %1343 = vmax.xlane.f32.xlu0 %v1342
    %v1344 = vpop.xlane.xlu0 %1343
    %v1345 = vsel %vm1015, %v1332, -inf
    %1346 = vmax.xlane.f32.xlu0 %v1345
    %v1347 = vpop.xlane.xlu0 %1346
    %v1348 = vsub.f32 %v1328, %v1335
    %v1349 = vsub.f32 %v1329, %v1338
    %v1350 = vsub.f32 %v1330, %v1341
    %v1351 = vsub.f32 %v1331, %v1344
    %v1352 = vsub.f32 %v1332, %v1347
    %v1353 = vmul.f32 %v1348, 1.442695
    %v1354 = vpow.pop %v1353
    %v1355 = vmul.f32 %v1349, 1.442695
    %v1356 = vpow.pop %v1355
    %v1357 = vmul.f32 %v1350, 1.442695
    %v1358 = vpow.pop %v1357
    %v1359 = vmul.f32 %v1351, 1.442695
    %v1360 = vpow.pop %v1359
    %v1361 = vmul.f32 %v1352, 1.442695
    %v1362 = vpow.pop %v1361
    %v1363 = vsel %vm1002, %v1354, 0.0
    %1364 = vadd.xlane.f32.xlu0 %v1363
    %v1365 = vpop.xlane.xlu0 %1364
    %v1366 = vsel %vm1002, %v1356, 0.0
    %1367 = vadd.xlane.f32.xlu0 %v1366
    %v1368 = vpop.xlane.xlu0 %1367
    %v1369 = vsel %vm1002, %v1358, 0.0
    %1370 = vadd.xlane.f32.xlu0 %v1369
    %v1371 = vpop.xlane.xlu0 %1370
    %v1372 = vsel %vm1002, %v1360, 0.0
    %1373 = vadd.xlane.f32.xlu0 %v1372
    %v1374 = vpop.xlane.xlu0 %1373
    %v1375 = vsel %vm1015, %v1362, 0.0
    %1376 = vadd.xlane.f32.xlu0 %v1375
    %v1377 = vpop.xlane.xlu0 %1376
    %v1378 = vrcp.pop %v1365
    %v1379 = vrcp.pop %v1368
    %v1380 = vrcp.pop %v1371
    %v1381 = vrcp.pop %v1374
    %v1382 = vrcp.pop %v1377
    %v1383 = vmul.f32 %v1354, %v1378
    %v1384 = vmul.f32 %v1356, %v1379
    %v1385 = vmul.f32 %v1358, %v1380
    %v1386 = vmul.f32 %v1360, %v1381
    %v1387 = vmul.f32 %v1362, %v1382
    %v1388 = vpack.c.bf16 %v1384, %v1383
    %v1389 = vpack.c.bf16 %v1386, %v1385
    %v1390 = vpack.c.bf16 %v1387, %v1387
    %1391 = vrot.lane.b32.xlu0 %v938, 48
    %v1392 = vpop.permute.xlu0 %1391
    %1393 = vrot.lane.b32.xlu0 %v939, 48
    %v1394 = vpop.permute.xlu0 %1393
    %1395 = vrot.lane.b32.xlu0 %v940, 48
    %v1396 = vpop.permute.xlu0 %1395
    %v1400 = vsel %vm1002, %v1388, 0
    %v1403 = vsel %vm1002, %v1389, 0
    %v1406 = vsel %vm1002, %v1390, 0
    %v1409 = vsel %vm1079, %v1396, 0
    %1411 = vmatpush.bf16.msra.mxu0 0
    %1412 = vmatpush.bf16.msra.mxu0 0
    %1413 = vmatpush.bf16.msra.mxu0 0
    %1414 = vmatpush.bf16.msra.mxu0 0
    %1415 = vmatpush.bf16.msra.mxu0 0
    %1416 = vmatpush.bf16.msra.mxu0 %v1409
    %1417 = vmatpush.bf16.msra.mxu0 %v1394
    %1418 = vmatpush.bf16.msra.mxu0 %v1392
    %1419 = vmatmul.bf16.gmra.mxu0 %v1400
    %v1420 = vpop.f32.mrf.mxu0
    %v1421 = vadd.f32 0.0, %v1420
    %v1422 = vpop.f32.mrf.mxu0
    %v1423 = vadd.f32 0.0, %v1422
    %1424 = vmatmul.bf16.gmra.mxu0 %v1403
    %v1425 = vpop.f32.mrf.mxu0
    %v1426 = vadd.f32 0.0, %v1425
    %v1427 = vpop.f32.mrf.mxu0
    %v1428 = vadd.f32 0.0, %v1427
    %1429 = vmatmul.bf16.gmra.mxu0 %v1406
    %v1430 = vpop.f32.mrf.mxu0
    %v1431 = vadd.f32 0.0, %v1430
    %v1432 = vpop.f32.mrf.mxu0
    %1433 = vdwg.mxu0
    %1434 = vrot.lane.b32.xlu0 %v938, 104
    %v1435 = vpop.permute.xlu0 %1434
    %1436 = vrot.lane.b32.xlu0 %v939, 104
    %v1437 = vpop.permute.xlu0 %1436
    %1438 = vrot.lane.b32.xlu0 %v940, 104
    %v1439 = vpop.permute.xlu0 %1438
    %1440 = vrot.lane.b32.xlu0 %v938, 72
    %v1441 = vpop.permute.xlu0 %1440
    %1442 = vrot.lane.b32.xlu0 %v939, 72
    %v1443 = vpop.permute.xlu0 %1442
    %1444 = vrot.lane.b32.xlu0 %v940, 72
    %v1445 = vpop.permute.xlu0 %1444
    %v1447 = vsel %vm950, %v1435, 0
    %v1450 = vsel %vm950, %v1437, 0
    %v1453 = vsel %vm950, %v1439, 0
    %v1456 = vsel %vm950, %v1441, 0
    %v1459 = vsel %vm950, %v1443, 0
    %v1462 = vsel %vm950, %v1445, 0
    %1464 = vmatpush.bf16.xpose.msra.mxu0 0
    %1465 = vmatpush.bf16.xpose.msra.mxu0 0
    %1466 = vmatpush.bf16.xpose.msra.mxu0 0
    %1467 = vmatpush.bf16.xpose.msra.mxu0 0
    %1468 = vmatpush.bf16.xpose.msra.mxu0 0
    %1469 = vmatpush.bf16.xpose.msra.mxu0 %v1462
    %1470 = vmatpush.bf16.xpose.msra.mxu0 %v1459
    %1471 = vmatpush.bf16.xpose.msra.mxu0 %v1456
    %1472 = vmatmul.bf16.gmra.mxu0 %v1447
    %v1473 = vpop.f32.mrf.mxu0
    %v1474 = vadd.f32 0.0, %v1473
    %v1475 = vpop.f32.mrf.mxu0
    %v1476 = vadd.f32 0.0, %v1475
    %1477 = vmatmul.bf16.gmra.mxu0 %v1450
    %v1478 = vpop.f32.mrf.mxu0
    %v1479 = vadd.f32 0.0, %v1478
    %v1480 = vpop.f32.mrf.mxu0
    %v1481 = vadd.f32 0.0, %v1480
    %1482 = vmatmul.bf16.gmra.mxu0 %v1453
    %v1483 = vpop.f32.mrf.mxu0
    %v1484 = vadd.f32 0.0, %v1483
    %v1485 = vpop.f32.mrf.mxu0
    %1486 = vdwg.mxu0
    %v1487 = vmul.f32 %v1474, 0.35355338
    %v1488 = vmul.f32 %v1476, 0.35355338
    %v1489 = vmul.f32 %v1479, 0.35355338
    %v1490 = vmul.f32 %v1481, 0.35355338
    %v1491 = vmul.f32 %v1484, 0.35355338
    %v1492 = vadd.f32 %v1487, %v218
    %v1493 = vadd.f32 %v1488, %v219
    %v1494 = vadd.f32 %v1489, %v220
    %v1495 = vadd.f32 %v1490, %v221
    %v1496 = vadd.f32 %v1491, %v222
    %v1497 = vsel %vm1002, %v1492, -inf
    %1498 = vmax.xlane.f32.xlu0 %v1497
    %v1499 = vpop.xlane.xlu0 %1498
    %v1500 = vsel %vm1002, %v1493, -inf
    %1501 = vmax.xlane.f32.xlu0 %v1500
    %v1502 = vpop.xlane.xlu0 %1501
    %v1503 = vsel %vm1002, %v1494, -inf
    %1504 = vmax.xlane.f32.xlu0 %v1503
    %v1505 = vpop.xlane.xlu0 %1504
    %v1506 = vsel %vm1002, %v1495, -inf
    %1507 = vmax.xlane.f32.xlu0 %v1506
    %v1508 = vpop.xlane.xlu0 %1507
    %v1509 = vsel %vm1015, %v1496, -inf
    %1510 = vmax.xlane.f32.xlu0 %v1509
    %v1511 = vpop.xlane.xlu0 %1510
    %v1512 = vsub.f32 %v1492, %v1499
    %v1513 = vsub.f32 %v1493, %v1502
    %v1514 = vsub.f32 %v1494, %v1505
    %v1515 = vsub.f32 %v1495, %v1508
    %v1516 = vsub.f32 %v1496, %v1511
    %v1517 = vmul.f32 %v1512, 1.442695
    %v1518 = vpow.pop %v1517
    %v1519 = vmul.f32 %v1513, 1.442695
    %v1520 = vpow.pop %v1519
    %v1521 = vmul.f32 %v1514, 1.442695
    %v1522 = vpow.pop %v1521
    %v1523 = vmul.f32 %v1515, 1.442695
    %v1524 = vpow.pop %v1523
    %v1525 = vmul.f32 %v1516, 1.442695
    %v1526 = vpow.pop %v1525
    %v1527 = vsel %vm1002, %v1518, 0.0
    %1528 = vadd.xlane.f32.xlu0 %v1527
    %v1529 = vpop.xlane.xlu0 %1528
    %v1530 = vsel %vm1002, %v1520, 0.0
    %1531 = vadd.xlane.f32.xlu0 %v1530
    %v1532 = vpop.xlane.xlu0 %1531
    %v1533 = vsel %vm1002, %v1522, 0.0
    %1534 = vadd.xlane.f32.xlu0 %v1533
    %v1535 = vpop.xlane.xlu0 %1534
    %v1536 = vsel %vm1002, %v1524, 0.0
    %1537 = vadd.xlane.f32.xlu0 %v1536
    %v1538 = vpop.xlane.xlu0 %1537
    %v1539 = vsel %vm1015, %v1526, 0.0
    %1540 = vadd.xlane.f32.xlu0 %v1539
    %v1541 = vpop.xlane.xlu0 %1540
    %v1542 = vrcp.pop %v1529
    %v1543 = vrcp.pop %v1532
    %v1544 = vrcp.pop %v1535
    %v1545 = vrcp.pop %v1538
    %v1546 = vrcp.pop %v1541
    %v1547 = vmul.f32 %v1518, %v1542
    %v1548 = vmul.f32 %v1520, %v1543
    %v1549 = vmul.f32 %v1522, %v1544
    %v1550 = vmul.f32 %v1524, %v1545
    %v1551 = vmul.f32 %v1526, %v1546
    %v1552 = vpack.c.bf16 %v1548, %v1547
    %v1553 = vpack.c.bf16 %v1550, %v1549
    %v1554 = vpack.c.bf16 %v1551, %v1551
    %1555 = vrot.lane.b32.xlu0 %v938, 40
    %v1556 = vpop.permute.xlu0 %1555
    %1557 = vrot.lane.b32.xlu0 %v939, 40
    %v1558 = vpop.permute.xlu0 %1557
    %1559 = vrot.lane.b32.xlu0 %v940, 40
    %v1560 = vpop.permute.xlu0 %1559
    %v1564 = vsel %vm1002, %v1552, 0
    %v1567 = vsel %vm1002, %v1553, 0
    %v1570 = vsel %vm1002, %v1554, 0
    %v1573 = vsel %vm1079, %v1560, 0
    %1575 = vmatpush.bf16.msra.mxu0 0
    %1576 = vmatpush.bf16.msra.mxu0 0
    %1577 = vmatpush.bf16.msra.mxu0 0
    %1578 = vmatpush.bf16.msra.mxu0 0
    %1579 = vmatpush.bf16.msra.mxu0 0
    %1580 = vmatpush.bf16.msra.mxu0 %v1573
    %1581 = vmatpush.bf16.msra.mxu0 %v1558
    %1582 = vmatpush.bf16.msra.mxu0 %v1556
    %1583 = vmatmul.bf16.gmra.mxu0 %v1564
    %v1584 = vpop.f32.mrf.mxu0
    %v1585 = vadd.f32 0.0, %v1584
    %v1586 = vpop.f32.mrf.mxu0
    %v1587 = vadd.f32 0.0, %v1586
    %1588 = vmatmul.bf16.gmra.mxu0 %v1567
    %v1589 = vpop.f32.mrf.mxu0
    %v1590 = vadd.f32 0.0, %v1589
    %v1591 = vpop.f32.mrf.mxu0
    %v1592 = vadd.f32 0.0, %v1591
    %1593 = vmatmul.bf16.gmra.mxu0 %v1570
    %v1594 = vpop.f32.mrf.mxu0
    %v1595 = vadd.f32 0.0, %v1594
    %v1596 = vpop.f32.mrf.mxu0
    %1597 = vdwg.mxu0
    %1603 = vrot.lane.b32.xlu0 %v1257, 8
    %v1604 = vpop.permute.xlu0 %1603
    %1605 = vrot.lane.b32.xlu0 %v1259, 8
    %v1606 = vpop.permute.xlu0 %1605
    %1607 = vrot.lane.b32.xlu0 %v1262, 8
    %v1608 = vpop.permute.xlu0 %1607
    %1609 = vrot.lane.b32.xlu0 %v1264, 8
    %v1610 = vpop.permute.xlu0 %1609
    %1611 = vrot.lane.b32.xlu0 %v1267, 8
    %v1612 = vpop.permute.xlu0 %1611
    %1623 = vrot.lane.b32.xlu0 %v1421, 16
    %v1624 = vpop.permute.xlu0 %1623
    %1625 = vrot.lane.b32.xlu0 %v1423, 16
    %v1626 = vpop.permute.xlu0 %1625
    %1627 = vrot.lane.b32.xlu0 %v1426, 16
    %v1628 = vpop.permute.xlu0 %1627
    %1629 = vrot.lane.b32.xlu0 %v1428, 16
    %v1630 = vpop.permute.xlu0 %1629
    %1631 = vrot.lane.b32.xlu0 %v1431, 16
    %v1632 = vpop.permute.xlu0 %1631
    %1643 = vrot.lane.b32.xlu0 %v1585, 24
    %v1644 = vpop.permute.xlu0 %1643
    %1645 = vrot.lane.b32.xlu0 %v1587, 24
    %v1646 = vpop.permute.xlu0 %1645
    %1647 = vrot.lane.b32.xlu0 %v1590, 24
    %v1648 = vpop.permute.xlu0 %1647
    %1649 = vrot.lane.b32.xlu0 %v1592, 24
    %v1650 = vpop.permute.xlu0 %1649
    %1651 = vrot.lane.b32.xlu0 %v1595, 24
    %v1652 = vpop.permute.xlu0 %1651
    %v1658 = vsel %vm950, %v1093, %v1604
    %v1659 = vsel %vm950, %v1095, %v1606
    %v1660 = vsel %vm950, %v1098, %v1608
    %v1661 = vsel %vm950, %v1100, %v1610
    %v1662 = vsel %vm950, %v1103, %v1612
    %vm1663 = vcmask 130048
    %v1664 = vsel %vm1663, %v1658, %v1624
    %v1665 = vsel %vm1663, %v1659, %v1626
    %v1666 = vsel %vm1663, %v1660, %v1628
    %v1667 = vsel %vm1663, %v1661, %v1630
    %v1668 = vsel %vm1663, %v1662, %v1632
    %vm1669 = vcmask 195584
    %v1670 = vsel %vm1669, %v1664, %v1644
    %v1671 = vsel %vm1669, %v1665, %v1646
    %v1672 = vsel %vm1669, %v1666, %v1648
    %v1673 = vsel %vm1669, %v1667, %v1650
    %v1674 = vsel %vm1669, %v1668, %v1652
    %v1675 = vpack.c.bf16 %v1671, %v1670
    %v1676 = vpack.c.bf16 %v1673, %v1672
    %v1677 = vpack.c.bf16 %v1674, %v1674
    %v1682 = vunpack.c.l.b16 %v246
    %v1683 = vunpack.c.l.b16 %v247
    %v1684 = vunpack.c.l.b16 %v248
    %v1685 = vunpack.c.l.b16 %v249
    %v1686 = vpack.c.b16 %v1683, %v1682
    %v1687 = vpack.c.b16 %v1685, %v1684
    %v1691 = vsel %vm373, %v1675, 0
    %v1694 = vsel %vm373, %v1676, 0
    %v1697 = vsel %vm373, %v1677, 0
    %1699 = vmatpush.bf16.msra.mxu0 0
    %1700 = vmatpush.bf16.msra.mxu0 0
    %1701 = vmatpush.bf16.msra.mxu0 0
    %1702 = vmatpush.bf16.msra.mxu0 0
    %1703 = vmatpush.bf16.msra.mxu0 0
    %1704 = vmatpush.bf16.msra.mxu0 0
    %1705 = vmatpush.bf16.msra.mxu0 %v1687
    %1706 = vmatpush.bf16.msra.mxu0 %v1686
    %1707 = vmatmul.bf16.gmra.mxu0 %v1691
    %v1708 = vpop.f32.mrf.mxu0
    %v1709 = vadd.f32 0.0, %v1708
    %v1710 = vpop.f32.mrf.mxu0
    %v1711 = vadd.f32 0.0, %v1710
    %1712 = vmatmul.bf16.gmra.mxu0 %v1694
    %v1713 = vpop.f32.mrf.mxu0
    %v1714 = vadd.f32 0.0, %v1713
    %v1715 = vpop.f32.mrf.mxu0
    %v1716 = vadd.f32 0.0, %v1715
    %1717 = vmatmul.bf16.gmra.mxu0 %v1697
    %v1718 = vpop.f32.mrf.mxu0
    %v1719 = vadd.f32 0.0, %v1718
    %v1720 = vpop.f32.mrf.mxu0
    %1721 = vdwg.mxu0
    %v1722 = vadd.f32 %v757, %v1709
    %v1723 = vadd.f32 %v758, %v1711
    %v1724 = vadd.f32 %v759, %v1714
    %v1725 = vadd.f32 %v760, %v1716
    %v1726 = vadd.f32 %v761, %v1719
    %v1728 = vperm.slane %v250, 0
    %v1730 = vadd.f32 %v1722, %v1728
    %v1731 = vadd.f32 %v1723, %v1728
    %v1732 = vadd.f32 %v1724, %v1728
    %v1733 = vadd.f32 %v1725, %v1728
    %v1734 = vadd.f32 %v1726, %v1728
    %v1735 = vsel %vm373, %v1730, 0.0
    %1736 = vadd.xlane.f32.xlu0 %v1735
    %v1737 = vpop.xlane.xlu0 %1736
    %v1738 = vsel %vm373, %v1731, 0.0
    %1739 = vadd.xlane.f32.xlu0 %v1738
    %v1740 = vpop.xlane.xlu0 %1739
    %v1741 = vsel %vm373, %v1732, 0.0
    %1742 = vadd.xlane.f32.xlu0 %v1741
    %v1743 = vpop.xlane.xlu0 %1742
    %v1744 = vsel %vm373, %v1733, 0.0
    %1745 = vadd.xlane.f32.xlu0 %v1744
    %v1746 = vpop.xlane.xlu0 %1745
    %v1747 = vsel %vm386, %v1734, 0.0
    %1748 = vadd.xlane.f32.xlu0 %v1747
    %v1749 = vpop.xlane.xlu0 %1748
    %v1750 = vmul.f32 %v1737, %v396
    %v1751 = vmul.f32 %v1740, %v396
    %v1752 = vmul.f32 %v1743, %v396
    %v1753 = vmul.f32 %v1746, %v396
    %v1754 = vmul.f32 %v1749, %v396
    %v1755 = vsub.f32 %v1730, %v1750
    %v1756 = vsub.f32 %v1731, %v1751
    %v1757 = vsub.f32 %v1732, %v1752
    %v1758 = vsub.f32 %v1733, %v1753
    %v1759 = vsub.f32 %v1734, %v1754
    %v1760 = vmul.f32 %v1755, %v1755
    %v1761 = vmul.f32 %v1756, %v1756
    %v1762 = vmul.f32 %v1757, %v1757
    %v1763 = vmul.f32 %v1758, %v1758
    %v1764 = vmul.f32 %v1759, %v1759
    %v1765 = vsel %vm373, %v1760, 0.0
    %1766 = vadd.xlane.f32.xlu0 %v1765
    %v1767 = vpop.xlane.xlu0 %1766
    %v1768 = vsel %vm373, %v1761, 0.0
    %1769 = vadd.xlane.f32.xlu0 %v1768
    %v1770 = vpop.xlane.xlu0 %1769
    %v1771 = vsel %vm373, %v1762, 0.0
    %1772 = vadd.xlane.f32.xlu0 %v1771
    %v1773 = vpop.xlane.xlu0 %1772
    %v1774 = vsel %vm373, %v1763, 0.0
    %1775 = vadd.xlane.f32.xlu0 %v1774
    %v1776 = vpop.xlane.xlu0 %1775
    %v1777 = vsel %vm386, %v1764, 0.0
    %1778 = vadd.xlane.f32.xlu0 %v1777
    %v1779 = vpop.xlane.xlu0 %1778
    %v1780 = vmul.f32 %v1767, %v396
    %v1781 = vmul.f32 %v1770, %v396
    %v1782 = vmul.f32 %v1773, %v396
    %v1783 = vmul.f32 %v1776, %v396
    %v1784 = vmul.f32 %v1779, %v396
    %v1785 = vadd.f32 %v1780, 1e-06
    %v1786 = vadd.f32 %v1781, 1e-06
    %v1787 = vadd.f32 %v1782, 1e-06
    %v1788 = vadd.f32 %v1783, 1e-06
    %v1789 = vadd.f32 %v1784, 1e-06
    %v1790 = vrsqrt.pop %v1785
    %v1791 = vmul.f32 %v1790, %v1785
    %v1792 = vmul.f32 %v1791, %v1790
    %v1793 = vmul.f32 0.5, %v1792
    %v1794 = vsub.f32 1.5, %v1793
    %v1795 = vmul.f32 %v1790, %v1794
    %vm1796 = vweird.f32 %v1785
    %vm1797 = vweird.f32 %v1790
    %vm1798 = vmor %vm1796, %vm1797
    %v1799 = vsel %vm1798, %v1790, %v1795
    %v1800 = vrsqrt.pop %v1786
    %v1801 = vmul.f32 %v1800, %v1786
    %v1802 = vmul.f32 %v1801, %v1800
    %v1803 = vmul.f32 0.5, %v1802
    %v1804 = vsub.f32 1.5, %v1803
    %v1805 = vmul.f32 %v1800, %v1804
    %vm1806 = vweird.f32 %v1786
    %vm1807 = vweird.f32 %v1800
    %vm1808 = vmor %vm1806, %vm1807
    %v1809 = vsel %vm1808, %v1800, %v1805
    %v1810 = vrsqrt.pop %v1787
    %v1811 = vmul.f32 %v1810, %v1787
    %v1812 = vmul.f32 %v1811, %v1810
    %v1813 = vmul.f32 0.5, %v1812
    %v1814 = vsub.f32 1.5, %v1813
    %v1815 = vmul.f32 %v1810, %v1814
    %vm1816 = vweird.f32 %v1787
    %vm1817 = vweird.f32 %v1810
    %vm1818 = vmor %vm1816, %vm1817
    %v1819 = vsel %vm1818, %v1810, %v1815
    %v1820 = vrsqrt.pop %v1788
    %v1821 = vmul.f32 %v1820, %v1788
    %v1822 = vmul.f32 %v1821, %v1820
    %v1823 = vmul.f32 0.5, %v1822
    %v1824 = vsub.f32 1.5, %v1823
    %v1825 = vmul.f32 %v1820, %v1824
    %vm1826 = vweird.f32 %v1788
    %vm1827 = vweird.f32 %v1820
    %vm1828 = vmor %vm1826, %vm1827
    %v1829 = vsel %vm1828, %v1820, %v1825
    %v1830 = vrsqrt.pop %v1789
    %v1831 = vmul.f32 %v1830, %v1789
    %v1832 = vmul.f32 %v1831, %v1830
    %v1833 = vmul.f32 0.5, %v1832
    %v1834 = vsub.f32 1.5, %v1833
    %v1835 = vmul.f32 %v1830, %v1834
    %vm1836 = vweird.f32 %v1789
    %vm1837 = vweird.f32 %v1830
    %vm1838 = vmor %vm1836, %vm1837
    %v1839 = vsel %vm1838, %v1830, %v1835
    %v1840 = vmul.f32 %v1755, %v1799
    %v1841 = vmul.f32 %v1756, %v1809
    %v1842 = vmul.f32 %v1757, %v1819
    %v1843 = vmul.f32 %v1758, %v1829
    %v1844 = vmul.f32 %v1759, %v1839
    %v1846 = vperm.slane %v251, 0
    %v1848 = vmul.f32 %v1840, %v1846
    %v1849 = vmul.f32 %v1841, %v1846
    %v1850 = vmul.f32 %v1842, %v1846
    %v1851 = vmul.f32 %v1843, %v1846
    %v1852 = vmul.f32 %v1844, %v1846
    %v1854 = vperm.slane %v252, 0
    %v1856 = vadd.f32 %v1848, %v1854
    %v1857 = vadd.f32 %v1849, %v1854
    %v1858 = vadd.f32 %v1850, %v1854
    %v1859 = vadd.f32 %v1851, %v1854
    %v1860 = vadd.f32 %v1852, %v1854
    %v1861 = vpack.c.bf16 %v1857, %v1856
    %v1862 = vpack.c.bf16 %v1859, %v1858
    %v1863 = vpack.c.bf16 %v1860, %v1860
    %v1865 = vperm.slane %v257, 0
    %v1871 = vunpack.c.l.b16 %v253
    %v1872 = vunpack.c.l.b16 %v254
    %v1873 = vunpack.c.l.b16 %v255
    %v1874 = vunpack.c.l.b16 %v256
    %v1875 = vpack.c.b16 %v1872, %v1871
    %v1876 = vpack.c.b16 %v1874, %v1873
    %v1880 = vsel %vm373, %v1861, 0
    %v1883 = vsel %vm373, %v1862, 0
    %v1886 = vsel %vm373, %v1863, 0
    %1888 = vmatpush.bf16.msra.mxu0 0
    %1889 = vmatpush.bf16.msra.mxu0 0
    %1890 = vmatpush.bf16.msra.mxu0 0
    %1891 = vmatpush.bf16.msra.mxu0 0
    %1892 = vmatpush.bf16.msra.mxu0 0
    %1893 = vmatpush.bf16.msra.mxu0 0
    %1894 = vmatpush.bf16.msra.mxu0 %v1876
    %1895 = vmatpush.bf16.msra.mxu0 %v1875
    %1896 = vmatmul.bf16.gmra.mxu0 %v1880
    %v1897 = vpop.f32.mrf.mxu0
    %v1898 = vadd.f32 %v1865, %v1897
    %v1899 = vpop.f32.mrf.mxu0
    %v1900 = vadd.f32 %v1865, %v1899
    %1901 = vmatmul.bf16.gmra.mxu0 %v1883
    %v1902 = vpop.f32.mrf.mxu0
    %v1903 = vadd.f32 %v1865, %v1902
    %v1904 = vpop.f32.mrf.mxu0
    %v1905 = vadd.f32 %v1865, %v1904
    %1906 = vmatmul.bf16.gmra.mxu0 %v1886
    %v1907 = vpop.f32.mrf.mxu0
    %v1908 = vadd.f32 %v1865, %v1907
    %v1909 = vpop.f32.mrf.mxu0
    %1910 = vdwg.mxu0
    %v1911 = vmul.f32 %v1898, 1.702
    %v1912 = vmul.f32 %v1900, 1.702
    %v1913 = vmul.f32 %v1903, 1.702
    %v1914 = vmul.f32 %v1905, 1.702
    %v1915 = vmul.f32 %v1908, 1.702
    %v1916 = vxor.u32 %v1911, 2147483648
    %v1917 = vxor.u32 %v1912, 2147483648
    %v1918 = vxor.u32 %v1913, 2147483648
    %v1919 = vxor.u32 %v1914, 2147483648
    %v1920 = vxor.u32 %v1915, 2147483648
    %v1921 = vmul.f32 %v1916, 1.442695
    %v1922 = vpow.pop %v1921
    %v1923 = vmul.f32 %v1917, 1.442695
    %v1924 = vpow.pop %v1923
    %v1925 = vmul.f32 %v1918, 1.442695
    %v1926 = vpow.pop %v1925
    %v1927 = vmul.f32 %v1919, 1.442695
    %v1928 = vpow.pop %v1927
    %v1929 = vmul.f32 %v1920, 1.442695
    %v1930 = vpow.pop %v1929
    %v1931 = vadd.f32 %v1922, 1.0
    %v1932 = vadd.f32 %v1924, 1.0
    %v1933 = vadd.f32 %v1926, 1.0
    %v1934 = vadd.f32 %v1928, 1.0
    %v1935 = vadd.f32 %v1930, 1.0
    %v1936 = vrcp.pop %v1931
    %v1937 = vmul.f32 %v1931, %v1936
    %v1938 = vsub.f32 1.0, %v1937
    %v1939 = vmul.f32 %v1936, %v1938
    %v1940 = vadd.f32 %v1936, %v1939
    %vm1941 = vweird.f32 %v1931
    %vm1942 = vweird.f32 %v1936
    %vm1943 = vmor %vm1941, %vm1942
    %v1944 = vsel %vm1943, %v1936, %v1940
    %v1945 = vand.u32 2147483647, %v1931
    %vm1946 = vcmp.eq.f32.partialorder %v1945, 8.507059e+37
    %v1947 = vand.u32 %v1931, 2147483648
    %v1948 = vor.u32 1.1754944e-38, %v1947
    %v1949 = vsel %vm1946, %v1948, %v1944
    %v1950 = vmul.f32 1.0, %v1949
    %v1951 = vrcp.pop %v1932
    %v1952 = vmul.f32 %v1932, %v1951
    %v1953 = vsub.f32 1.0, %v1952
    %v1954 = vmul.f32 %v1951, %v1953
    %v1955 = vadd.f32 %v1951, %v1954
    %vm1956 = vweird.f32 %v1932
    %vm1957 = vweird.f32 %v1951
    %vm1958 = vmor %vm1956, %vm1957
    %v1959 = vsel %vm1958, %v1951, %v1955
    %v1960 = vand.u32 2147483647, %v1932
    %vm1961 = vcmp.eq.f32.partialorder %v1960, 8.507059e+37
    %v1962 = vand.u32 %v1932, 2147483648
    %v1963 = vor.u32 1.1754944e-38, %v1962
    %v1964 = vsel %vm1961, %v1963, %v1959
    %v1965 = vmul.f32 1.0, %v1964
    %v1966 = vrcp.pop %v1933
    %v1967 = vmul.f32 %v1933, %v1966
    %v1968 = vsub.f32 1.0, %v1967
    %v1969 = vmul.f32 %v1966, %v1968
    %v1970 = vadd.f32 %v1966, %v1969
    %vm1971 = vweird.f32 %v1933
    %vm1972 = vweird.f32 %v1966
    %vm1973 = vmor %vm1971, %vm1972
    %v1974 = vsel %vm1973, %v1966, %v1970
    %v1975 = vand.u32 2147483647, %v1933
    %vm1976 = vcmp.eq.f32.partialorder %v1975, 8.507059e+37
    %v1977 = vand.u32 %v1933, 2147483648
    %v1978 = vor.u32 1.1754944e-38, %v1977
    %v1979 = vsel %vm1976, %v1978, %v1974
    %v1980 = vmul.f32 1.0, %v1979
    %v1981 = vrcp.pop %v1934
    %v1982 = vmul.f32 %v1934, %v1981
    %v1983 = vsub.f32 1.0, %v1982
    %v1984 = vmul.f32 %v1981, %v1983
    %v1985 = vadd.f32 %v1981, %v1984
    %vm1986 = vweird.f32 %v1934
    %vm1987 = vweird.f32 %v1981
    %vm1988 = vmor %vm1986, %vm1987
    %v1989 = vsel %vm1988, %v1981, %v1985
    %v1990 = vand.u32 2147483647, %v1934
    %vm1991 = vcmp.eq.f32.partialorder %v1990, 8.507059e+37
    %v1992 = vand.u32 %v1934, 2147483648
    %v1993 = vor.u32 1.1754944e-38, %v1992
    %v1994 = vsel %vm1991, %v1993, %v1989
    %v1995 = vmul.f32 1.0, %v1994
    %v1996 = vrcp.pop %v1935
    %v1997 = vmul.f32 %v1935, %v1996
    %v1998 = vsub.f32 1.0, %v1997
    %v1999 = vmul.f32 %v1996, %v1998
    %v2000 = vadd.f32 %v1996, %v1999
    %vm2001 = vweird.f32 %v1935
    %vm2002 = vweird.f32 %v1996
    %vm2003 = vmor %vm2001, %vm2002
    %v2004 = vsel %vm2003, %v1996, %v2000
    %v2005 = vand.u32 2147483647, %v1935
    %vm2006 = vcmp.eq.f32.partialorder %v2005, 8.507059e+37
    %v2007 = vand.u32 %v1935, 2147483648
    %v2008 = vor.u32 1.1754944e-38, %v2007
    %v2009 = vsel %vm2006, %v2008, %v2004
    %v2010 = vmul.f32 1.0, %v2009
    %v2011 = vmul.f32 %v1898, %v1950
    %v2012 = vmul.f32 %v1900, %v1965
    %v2013 = vmul.f32 %v1903, %v1980
    %v2014 = vmul.f32 %v1905, %v1995
    %v2015 = vmul.f32 %v1908, %v2010
    %v2016 = vpack.c.bf16 %v2012, %v2011
    %v2017 = vpack.c.bf16 %v2014, %v2013
    %v2018 = vpack.c.bf16 %v2015, %v2015
    %v2027 = vunpack.c.l.b16 %v258
    %v2028 = vunpack.c.l.b16 %v259
    %v2029 = vunpack.c.l.b16 %v260
    %v2030 = vunpack.c.l.b16 %v261
    %v2031 = vunpack.c.l.b16 %v262
    %v2032 = vunpack.c.l.b16 %v263
    %v2033 = vunpack.c.l.b16 %v264
    %v2034 = vunpack.c.l.b16 %v265
    %v2035 = vpack.c.b16 %v2028, %v2027
    %v2036 = vpack.c.b16 %v2030, %v2029
    %v2037 = vpack.c.b16 %v2032, %v2031
    %v2038 = vpack.c.b16 %v2034, %v2033
    %vm2043 = vcmask 523264
    %v2045 = vsel %vm2043, %v2016, 0
    %v2048 = vsel %vm2043, %v2017, 0
    %v2051 = vsel %vm2043, %v2018, 0
    %2053 = vmatpush.bf16.msra.mxu0 0
    %2054 = vmatpush.bf16.msra.mxu0 0
    %2055 = vmatpush.bf16.msra.mxu0 0
    %2056 = vmatpush.bf16.msra.mxu0 0
    %2057 = vmatpush.bf16.msra.mxu0 %v2038
    %2058 = vmatpush.bf16.msra.mxu0 %v2037
    %2059 = vmatpush.bf16.msra.mxu0 %v2036
    %2060 = vmatpush.bf16.msra.mxu0 %v2035
    %2061 = vmatmul.bf16.gmra.mxu0 %v2045
    %v2062 = vpop.f32.mrf.mxu0
    %v2063 = vadd.f32 0.0, %v2062
    %v2064 = vpop.f32.mrf.mxu0
    %v2065 = vadd.f32 0.0, %v2064
    %2066 = vmatmul.bf16.gmra.mxu0 %v2048
    %v2067 = vpop.f32.mrf.mxu0
    %v2068 = vadd.f32 0.0, %v2067
    %v2069 = vpop.f32.mrf.mxu0
    %v2070 = vadd.f32 0.0, %v2069
    %2071 = vmatmul.bf16.gmra.mxu0 %v2051
    %v2072 = vpop.f32.mrf.mxu0
    %v2073 = vadd.f32 0.0, %v2072
    %v2074 = vpop.f32.mrf.mxu0
    %2075 = vdwg.mxu0
    %v2076 = vadd.f32 %v1730, %v2063
    %v2077 = vadd.f32 %v1731, %v2065
    %v2078 = vadd.f32 %v1732, %v2068
    %v2079 = vadd.f32 %v1733, %v2070
    %v2080 = vadd.f32 %v1734, %v2073
    %v2082 = vperm.slane %v266, 0
    %v2084 = vadd.f32 %v2076, %v2082
    %v2085 = vadd.f32 %v2077, %v2082
    %v2086 = vadd.f32 %v2078, %v2082
    %v2087 = vadd.f32 %v2079, %v2082
    %v2088 = vadd.f32 %v2080, %v2082
    %v2089 = vsel %vm373, %v2084, 0.0
    %2090 = vadd.xlane.f32.xlu0 %v2089
    %v2091 = vpop.xlane.xlu0 %2090
    %v2092 = vsel %vm373, %v2085, 0.0
    %2093 = vadd.xlane.f32.xlu0 %v2092
    %v2094 = vpop.xlane.xlu0 %2093
    %v2095 = vsel %vm373, %v2086, 0.0
    %2096 = vadd.xlane.f32.xlu0 %v2095
    %v2097 = vpop.xlane.xlu0 %2096
    %v2098 = vsel %vm373, %v2087, 0.0
    %2099 = vadd.xlane.f32.xlu0 %v2098
    %v2100 = vpop.xlane.xlu0 %2099
    %v2101 = vsel %vm386, %v2088, 0.0
    %2102 = vadd.xlane.f32.xlu0 %v2101
    %v2103 = vpop.xlane.xlu0 %2102
    %v2104 = vmul.f32 %v2091, %v396
    %v2105 = vmul.f32 %v2094, %v396
    %v2106 = vmul.f32 %v2097, %v396
    %v2107 = vmul.f32 %v2100, %v396
    %v2108 = vmul.f32 %v2103, %v396
    %v2109 = vsub.f32 %v2084, %v2104
    %v2110 = vsub.f32 %v2085, %v2105
    %v2111 = vsub.f32 %v2086, %v2106
    %v2112 = vsub.f32 %v2087, %v2107
    %v2113 = vsub.f32 %v2088, %v2108
    %v2114 = vmul.f32 %v2109, %v2109
    %v2115 = vmul.f32 %v2110, %v2110
    %v2116 = vmul.f32 %v2111, %v2111
    %v2117 = vmul.f32 %v2112, %v2112
    %v2118 = vmul.f32 %v2113, %v2113
    %v2119 = vsel %vm373, %v2114, 0.0
    %2120 = vadd.xlane.f32.xlu0 %v2119
    %v2121 = vpop.xlane.xlu0 %2120
    %v2122 = vsel %vm373, %v2115, 0.0
    %2123 = vadd.xlane.f32.xlu0 %v2122
    %v2124 = vpop.xlane.xlu0 %2123
    %v2125 = vsel %vm373, %v2116, 0.0
    %2126 = vadd.xlane.f32.xlu0 %v2125
    %v2127 = vpop.xlane.xlu0 %2126
    %v2128 = vsel %vm373, %v2117, 0.0
    %2129 = vadd.xlane.f32.xlu0 %v2128
    %v2130 = vpop.xlane.xlu0 %2129
    %v2131 = vsel %vm386, %v2118, 0.0
    %2132 = vadd.xlane.f32.xlu0 %v2131
    %v2133 = vpop.xlane.xlu0 %2132
    %v2134 = vmul.f32 %v2121, %v396
    %v2135 = vmul.f32 %v2124, %v396
    %v2136 = vmul.f32 %v2127, %v396
    %v2137 = vmul.f32 %v2130, %v396
    %v2138 = vmul.f32 %v2133, %v396
    %v2139 = vadd.f32 %v2134, 1e-06
    %v2140 = vadd.f32 %v2135, 1e-06
    %v2141 = vadd.f32 %v2136, 1e-06
    %v2142 = vadd.f32 %v2137, 1e-06
    %v2143 = vadd.f32 %v2138, 1e-06
    %v2144 = vrsqrt.pop %v2139
    %v2145 = vmul.f32 %v2144, %v2139
    %v2146 = vmul.f32 %v2145, %v2144
    %v2147 = vmul.f32 0.5, %v2146
    %v2148 = vsub.f32 1.5, %v2147
    %v2149 = vmul.f32 %v2144, %v2148
    %vm2150 = vweird.f32 %v2139
    %vm2151 = vweird.f32 %v2144
    %vm2152 = vmor %vm2150, %vm2151
    %v2153 = vsel %vm2152, %v2144, %v2149
    %v2154 = vrsqrt.pop %v2140
    %v2155 = vmul.f32 %v2154, %v2140
    %v2156 = vmul.f32 %v2155, %v2154
    %v2157 = vmul.f32 0.5, %v2156
    %v2158 = vsub.f32 1.5, %v2157
    %v2159 = vmul.f32 %v2154, %v2158
    %vm2160 = vweird.f32 %v2140
    %vm2161 = vweird.f32 %v2154
    %vm2162 = vmor %vm2160, %vm2161
    %v2163 = vsel %vm2162, %v2154, %v2159
    %v2164 = vrsqrt.pop %v2141
    %v2165 = vmul.f32 %v2164, %v2141
    %v2166 = vmul.f32 %v2165, %v2164
    %v2167 = vmul.f32 0.5, %v2166
    %v2168 = vsub.f32 1.5, %v2167
    %v2169 = vmul.f32 %v2164, %v2168
    %vm2170 = vweird.f32 %v2141
    %vm2171 = vweird.f32 %v2164
    %vm2172 = vmor %vm2170, %vm2171
    %v2173 = vsel %vm2172, %v2164, %v2169
    %v2174 = vrsqrt.pop %v2142
    %v2175 = vmul.f32 %v2174, %v2142
    %v2176 = vmul.f32 %v2175, %v2174
    %v2177 = vmul.f32 0.5, %v2176
    %v2178 = vsub.f32 1.5, %v2177
    %v2179 = vmul.f32 %v2174, %v2178
    %vm2180 = vweird.f32 %v2142
    %vm2181 = vweird.f32 %v2174
    %vm2182 = vmor %vm2180, %vm2181
    %v2183 = vsel %vm2182, %v2174, %v2179
    %v2184 = vrsqrt.pop %v2143
    %v2185 = vmul.f32 %v2184, %v2143
    %v2186 = vmul.f32 %v2185, %v2184
    %v2187 = vmul.f32 0.5, %v2186
    %v2188 = vsub.f32 1.5, %v2187
    %v2189 = vmul.f32 %v2184, %v2188
    %vm2190 = vweird.f32 %v2143
    %vm2191 = vweird.f32 %v2184
    %vm2192 = vmor %vm2190, %vm2191
    %v2193 = vsel %vm2192, %v2184, %v2189
    %v2194 = vmul.f32 %v2109, %v2153
    %v2195 = vmul.f32 %v2110, %v2163
    %v2196 = vmul.f32 %v2111, %v2173
    %v2197 = vmul.f32 %v2112, %v2183
    %v2198 = vmul.f32 %v2113, %v2193
    %v2200 = vperm.slane %v267, 0
    %v2202 = vmul.f32 %v2194, %v2200
    %v2203 = vmul.f32 %v2195, %v2200
    %v2204 = vmul.f32 %v2196, %v2200
    %v2205 = vmul.f32 %v2197, %v2200
    %v2206 = vmul.f32 %v2198, %v2200
    %v2208 = vperm.slane %v268, 0
    %v2210 = vadd.f32 %v2202, %v2208
    %v2211 = vadd.f32 %v2203, %v2208
    %v2212 = vadd.f32 %v2204, %v2208
    %v2213 = vadd.f32 %v2205, %v2208
    %v2214 = vadd.f32 %v2206, %v2208
    %v2215 = vpack.c.bf16 %v2211, %v2210
    %v2216 = vpack.c.bf16 %v2213, %v2212
    %v2217 = vpack.c.bf16 %v2214, %v2214
    %v2219 = vperm.slane %v273, 0
    %v2225 = vunpack.c.l.b16 %v269
    %v2226 = vunpack.c.l.b16 %v270
    %v2227 = vunpack.c.l.b16 %v271
    %v2228 = vunpack.c.l.b16 %v272
    %v2229 = vpack.c.b16 %v2226, %v2225
    %v2230 = vpack.c.b16 %v2228, %v2227
    %v2234 = vsel %vm373, %v2215, 0
    %v2237 = vsel %vm373, %v2216, 0
    %v2240 = vsel %vm373, %v2217, 0
    %2242 = vmatpush.bf16.msra.mxu0 0
    %2243 = vmatpush.bf16.msra.mxu0 0
    %2244 = vmatpush.bf16.msra.mxu0 0
    %2245 = vmatpush.bf16.msra.mxu0 0
    %2246 = vmatpush.bf16.msra.mxu0 0
    %2247 = vmatpush.bf16.msra.mxu0 0
    %2248 = vmatpush.bf16.msra.mxu0 %v2230
    %2249 = vmatpush.bf16.msra.mxu0 %v2229
    %2250 = vmatmul.bf16.gmra.mxu0 %v2234
    %v2251 = vpop.f32.mrf.mxu0
    %v2252 = vadd.f32 %v2219, %v2251
    %v2253 = vpop.f32.mrf.mxu0
    %v2254 = vadd.f32 %v2219, %v2253
    %2255 = vmatmul.bf16.gmra.mxu0 %v2237
    %v2256 = vpop.f32.mrf.mxu0
    %v2257 = vadd.f32 %v2219, %v2256
    %v2258 = vpop.f32.mrf.mxu0
    %v2259 = vadd.f32 %v2219, %v2258
    %2260 = vmatmul.bf16.gmra.mxu0 %v2240
    %v2261 = vpop.f32.mrf.mxu0
    %v2262 = vadd.f32 %v2219, %v2261
    %v2263 = vpop.f32.mrf.mxu0
    %2264 = vdwg.mxu0
    %v2265 = vpack.c.bf16 %v2254, %v2252
    %v2266 = vpack.c.bf16 %v2259, %v2257
    %v2267 = vpack.c.bf16 %v2262, %v2262
    %2271 = vrot.lane.b32.xlu0 %v2265, 96
    %v2272 = vpop.permute.xlu0 %2271
    %2273 = vrot.lane.b32.xlu0 %v2266, 96
    %v2274 = vpop.permute.xlu0 %2273
    %2275 = vrot.lane.b32.xlu0 %v2267, 96
    %v2276 = vpop.permute.xlu0 %2275
    %v2278 = vsel %vm950, %v2265, 0
    %v2281 = vsel %vm950, %v2266, 0
    %v2284 = vsel %vm950, %v2267, 0
    %v2287 = vsel %vm950, %v2272, 0
    %v2290 = vsel %vm950, %v2274, 0
    %v2293 = vsel %vm950, %v2276, 0
    %2295 = vmatpush.bf16.xpose.msra.mxu0 0
    %2296 = vmatpush.bf16.xpose.msra.mxu0 0
    %2297 = vmatpush.bf16.xpose.msra.mxu0 0
    %2298 = vmatpush.bf16.xpose.msra.mxu0 0
    %2299 = vmatpush.bf16.xpose.msra.mxu0 0
    %2300 = vmatpush.bf16.xpose.msra.mxu0 %v2293
    %2301 = vmatpush.bf16.xpose.msra.mxu0 %v2290
    %2302 = vmatpush.bf16.xpose.msra.mxu0 %v2287
    %2303 = vmatmul.bf16.gmra.mxu0 %v2278
    %v2304 = vpop.f32.mrf.mxu0
    %v2305 = vadd.f32 0.0, %v2304
    %v2306 = vpop.f32.mrf.mxu0
    %v2307 = vadd.f32 0.0, %v2306
    %2308 = vmatmul.bf16.gmra.mxu0 %v2281
    %v2309 = vpop.f32.mrf.mxu0
    %v2310 = vadd.f32 0.0, %v2309
    %v2311 = vpop.f32.mrf.mxu0
    %v2312 = vadd.f32 0.0, %v2311
    %2313 = vmatmul.bf16.gmra.mxu0 %v2284
    %v2314 = vpop.f32.mrf.mxu0
    %v2315 = vadd.f32 0.0, %v2314
    %v2316 = vpop.f32.mrf.mxu0
    %2317 = vdwg.mxu0
    %v2318 = vmul.f32 %v2305, 0.35355338
    %v2319 = vmul.f32 %v2307, 0.35355338
    %v2320 = vmul.f32 %v2310, 0.35355338
    %v2321 = vmul.f32 %v2312, 0.35355338
    %v2322 = vmul.f32 %v2315, 0.35355338
    %v2323 = vadd.f32 %v2318, %v218
    %v2324 = vadd.f32 %v2319, %v219
    %v2325 = vadd.f32 %v2320, %v220
    %v2326 = vadd.f32 %v2321, %v221
    %v2327 = vadd.f32 %v2322, %v222
    %v2328 = vsel %vm1002, %v2323, -inf
    %2329 = vmax.xlane.f32.xlu0 %v2328
    %v2330 = vpop.xlane.xlu0 %2329
    %v2331 = vsel %vm1002, %v2324, -inf
    %2332 = vmax.xlane.f32.xlu0 %v2331
    %v2333 = vpop.xlane.xlu0 %2332
    %v2334 = vsel %vm1002, %v2325, -inf
    %2335 = vmax.xlane.f32.xlu0 %v2334
    %v2336 = vpop.xlane.xlu0 %2335
    %v2337 = vsel %vm1002, %v2326, -inf
    %2338 = vmax.xlane.f32.xlu0 %v2337
    %v2339 = vpop.xlane.xlu0 %2338
    %v2340 = vsel %vm1015, %v2327, -inf
    %2341 = vmax.xlane.f32.xlu0 %v2340
    %v2342 = vpop.xlane.xlu0 %2341
    %v2343 = vsub.f32 %v2323, %v2330
    %v2344 = vsub.f32 %v2324, %v2333
    %v2345 = vsub.f32 %v2325, %v2336
    %v2346 = vsub.f32 %v2326, %v2339
    %v2347 = vsub.f32 %v2327, %v2342
    %v2348 = vmul.f32 %v2343, 1.442695
    %v2349 = vpow.pop %v2348
    %v2350 = vmul.f32 %v2344, 1.442695
    %v2351 = vpow.pop %v2350
    %v2352 = vmul.f32 %v2345, 1.442695
    %v2353 = vpow.pop %v2352
    %v2354 = vmul.f32 %v2346, 1.442695
    %v2355 = vpow.pop %v2354
    %v2356 = vmul.f32 %v2347, 1.442695
    %v2357 = vpow.pop %v2356
    %v2358 = vsel %vm1002, %v2349, 0.0
    %2359 = vadd.xlane.f32.xlu0 %v2358
    %v2360 = vpop.xlane.xlu0 %2359
    %v2361 = vsel %vm1002, %v2351, 0.0
    %2362 = vadd.xlane.f32.xlu0 %v2361
    %v2363 = vpop.xlane.xlu0 %2362
    %v2364 = vsel %vm1002, %v2353, 0.0
    %2365 = vadd.xlane.f32.xlu0 %v2364
    %v2366 = vpop.xlane.xlu0 %2365
    %v2367 = vsel %vm1002, %v2355, 0.0
    %2368 = vadd.xlane.f32.xlu0 %v2367
    %v2369 = vpop.xlane.xlu0 %2368
    %v2370 = vsel %vm1015, %v2357, 0.0
    %2371 = vadd.xlane.f32.xlu0 %v2370
    %v2372 = vpop.xlane.xlu0 %2371
    %v2373 = vrcp.pop %v2360
    %v2374 = vrcp.pop %v2363
    %v2375 = vrcp.pop %v2366
    %v2376 = vrcp.pop %v2369
    %v2377 = vrcp.pop %v2372
    %v2378 = vmul.f32 %v2349, %v2373
    %v2379 = vmul.f32 %v2351, %v2374
    %v2380 = vmul.f32 %v2353, %v2375
    %v2381 = vmul.f32 %v2355, %v2376
    %v2382 = vmul.f32 %v2357, %v2377
    %v2383 = vpack.c.bf16 %v2379, %v2378
    %v2384 = vpack.c.bf16 %v2381, %v2380
    %v2385 = vpack.c.bf16 %v2382, %v2382
    %2386 = vrot.lane.b32.xlu0 %v2265, 64
    %v2387 = vpop.permute.xlu0 %2386
    %2388 = vrot.lane.b32.xlu0 %v2266, 64
    %v2389 = vpop.permute.xlu0 %2388
    %2390 = vrot.lane.b32.xlu0 %v2267, 64
    %v2391 = vpop.permute.xlu0 %2390
    %v2395 = vsel %vm1002, %v2383, 0
    %v2398 = vsel %vm1002, %v2384, 0
    %v2401 = vsel %vm1002, %v2385, 0
    %v2404 = vsel %vm1079, %v2391, 0
    %2406 = vmatpush.bf16.msra.mxu0 0
    %2407 = vmatpush.bf16.msra.mxu0 0
    %2408 = vmatpush.bf16.msra.mxu0 0
    %2409 = vmatpush.bf16.msra.mxu0 0
    %2410 = vmatpush.bf16.msra.mxu0 0
    %2411 = vmatpush.bf16.msra.mxu0 %v2404
    %2412 = vmatpush.bf16.msra.mxu0 %v2389
    %2413 = vmatpush.bf16.msra.mxu0 %v2387
    %2414 = vmatmul.bf16.gmra.mxu0 %v2395
    %v2415 = vpop.f32.mrf.mxu0
    %v2416 = vadd.f32 0.0, %v2415
    %v2417 = vpop.f32.mrf.mxu0
    %v2418 = vadd.f32 0.0, %v2417
    %2419 = vmatmul.bf16.gmra.mxu0 %v2398
    %v2420 = vpop.f32.mrf.mxu0
    %v2421 = vadd.f32 0.0, %v2420
    %v2422 = vpop.f32.mrf.mxu0
    %v2423 = vadd.f32 0.0, %v2422
    %2424 = vmatmul.bf16.gmra.mxu0 %v2401
    %v2425 = vpop.f32.mrf.mxu0
    %v2426 = vadd.f32 0.0, %v2425
    %v2427 = vpop.f32.mrf.mxu0
    %2428 = vdwg.mxu0
    %2429 = vrot.lane.b32.xlu0 %v2265, 120
    %v2430 = vpop.permute.xlu0 %2429
    %2431 = vrot.lane.b32.xlu0 %v2266, 120
    %v2432 = vpop.permute.xlu0 %2431
    %2433 = vrot.lane.b32.xlu0 %v2267, 120
    %v2434 = vpop.permute.xlu0 %2433
    %2435 = vrot.lane.b32.xlu0 %v2265, 88
    %v2436 = vpop.permute.xlu0 %2435
    %2437 = vrot.lane.b32.xlu0 %v2266, 88
    %v2438 = vpop.permute.xlu0 %2437
    %2439 = vrot.lane.b32.xlu0 %v2267, 88
    %v2440 = vpop.permute.xlu0 %2439
    %v2442 = vsel %vm950, %v2430, 0
    %v2445 = vsel %vm950, %v2432, 0
    %v2448 = vsel %vm950, %v2434, 0
    %v2451 = vsel %vm950, %v2436, 0
    %v2454 = vsel %vm950, %v2438, 0
    %v2457 = vsel %vm950, %v2440, 0
    %2459 = vmatpush.bf16.xpose.msra.mxu0 0
    %2460 = vmatpush.bf16.xpose.msra.mxu0 0
    %2461 = vmatpush.bf16.xpose.msra.mxu0 0
    %2462 = vmatpush.bf16.xpose.msra.mxu0 0
    %2463 = vmatpush.bf16.xpose.msra.mxu0 0
    %2464 = vmatpush.bf16.xpose.msra.mxu0 %v2457
    %2465 = vmatpush.bf16.xpose.msra.mxu0 %v2454
    %2466 = vmatpush.bf16.xpose.msra.mxu0 %v2451
    %2467 = vmatmul.bf16.gmra.mxu0 %v2442
    %v2468 = vpop.f32.mrf.mxu0
    %v2469 = vadd.f32 0.0, %v2468
    %v2470 = vpop.f32.mrf.mxu0
    %v2471 = vadd.f32 0.0, %v2470
    %2472 = vmatmul.bf16.gmra.mxu0 %v2445
    %v2473 = vpop.f32.mrf.mxu0
    %v2474 = vadd.f32 0.0, %v2473
    %v2475 = vpop.f32.mrf.mxu0
    %v2476 = vadd.f32 0.0, %v2475
    %2477 = vmatmul.bf16.gmra.mxu0 %v2448
    %v2478 = vpop.f32.mrf.mxu0
    %v2479 = vadd.f32 0.0, %v2478
    %v2480 = vpop.f32.mrf.mxu0
    %2481 = vdwg.mxu0
    %v2482 = vmul.f32 %v2469, 0.35355338
    %v2483 = vmul.f32 %v2471, 0.35355338
    %v2484 = vmul.f32 %v2474, 0.35355338
    %v2485 = vmul.f32 %v2476, 0.35355338
    %v2486 = vmul.f32 %v2479, 0.35355338
    %v2487 = vadd.f32 %v2482, %v218
    %v2488 = vadd.f32 %v2483, %v219
    %v2489 = vadd.f32 %v2484, %v220
    %v2490 = vadd.f32 %v2485, %v221
    %v2491 = vadd.f32 %v2486, %v222
    %v2492 = vsel %vm1002, %v2487, -inf
    %2493 = vmax.xlane.f32.xlu0 %v2492
    %v2494 = vpop.xlane.xlu0 %2493
    %v2495 = vsel %vm1002, %v2488, -inf
    %2496 = vmax.xlane.f32.xlu0 %v2495
    %v2497 = vpop.xlane.xlu0 %2496
    %v2498 = vsel %vm1002, %v2489, -inf
    %2499 = vmax.xlane.f32.xlu0 %v2498
    %v2500 = vpop.xlane.xlu0 %2499
    %v2501 = vsel %vm1002, %v2490, -inf
    %2502 = vmax.xlane.f32.xlu0 %v2501
    %v2503 = vpop.xlane.xlu0 %2502
    %v2504 = vsel %vm1015, %v2491, -inf
    %2505 = vmax.xlane.f32.xlu0 %v2504
    %v2506 = vpop.xlane.xlu0 %2505
    %v2507 = vsub.f32 %v2487, %v2494
    %v2508 = vsub.f32 %v2488, %v2497
    %v2509 = vsub.f32 %v2489, %v2500
    %v2510 = vsub.f32 %v2490, %v2503
    %v2511 = vsub.f32 %v2491, %v2506
    %v2512 = vmul.f32 %v2507, 1.442695
    %v2513 = vpow.pop %v2512
    %v2514 = vmul.f32 %v2508, 1.442695
    %v2515 = vpow.pop %v2514
    %v2516 = vmul.f32 %v2509, 1.442695
    %v2517 = vpow.pop %v2516
    %v2518 = vmul.f32 %v2510, 1.442695
    %v2519 = vpow.pop %v2518
    %v2520 = vmul.f32 %v2511, 1.442695
    %v2521 = vpow.pop %v2520
    %v2522 = vsel %vm1002, %v2513, 0.0
    %2523 = vadd.xlane.f32.xlu0 %v2522
    %v2524 = vpop.xlane.xlu0 %2523
    %v2525 = vsel %vm1002, %v2515, 0.0
    %2526 = vadd.xlane.f32.xlu0 %v2525
    %v2527 = vpop.xlane.xlu0 %2526
    %v2528 = vsel %vm1002, %v2517, 0.0
    %2529 = vadd.xlane.f32.xlu0 %v2528
    %v2530 = vpop.xlane.xlu0 %2529
    %v2531 = vsel %vm1002, %v2519, 0.0
    %2532 = vadd.xlane.f32.xlu0 %v2531
    %v2533 = vpop.xlane.xlu0 %2532
    %v2534 = vsel %vm1015, %v2521, 0.0
    %2535 = vadd.xlane.f32.xlu0 %v2534
    %v2536 = vpop.xlane.xlu0 %2535
    %v2537 = vrcp.pop %v2524
    %v2538 = vrcp.pop %v2527
    %v2539 = vrcp.pop %v2530
    %v2540 = vrcp.pop %v2533
    %v2541 = vrcp.pop %v2536
    %v2542 = vmul.f32 %v2513, %v2537
    %v2543 = vmul.f32 %v2515, %v2538
    %v2544 = vmul.f32 %v2517, %v2539
    %v2545 = vmul.f32 %v2519, %v2540
    %v2546 = vmul.f32 %v2521, %v2541
    %v2547 = vpack.c.bf16 %v2543, %v2542
    %v2548 = vpack.c.bf16 %v2545, %v2544
    %v2549 = vpack.c.bf16 %v2546, %v2546
    %2550 = vrot.lane.b32.xlu0 %v2265, 56
    %v2551 = vpop.permute.xlu0 %2550
    %2552 = vrot.lane.b32.xlu0 %v2266, 56
    %v2553 = vpop.permute.xlu0 %2552
    %2554 = vrot.lane.b32.xlu0 %v2267, 56
    %v2555 = vpop.permute.xlu0 %2554
    %v2559 = vsel %vm1002, %v2547, 0
    %v2562 = vsel %vm1002, %v2548, 0
    %v2565 = vsel %vm1002, %v2549, 0
    %v2568 = vsel %vm1079, %v2555, 0
    %2570 = vmatpush.bf16.msra.mxu0 0
    %2571 = vmatpush.bf16.msra.mxu0 0
    %2572 = vmatpush.bf16.msra.mxu0 0
    %2573 = vmatpush.bf16.msra.mxu0 0
    %2574 = vmatpush.bf16.msra.mxu0 0
    %2575 = vmatpush.bf16.msra.mxu0 %v2568
    %2576 = vmatpush.bf16.msra.mxu0 %v2553
    %2577 = vmatpush.bf16.msra.mxu0 %v2551
    %2578 = vmatmul.bf16.gmra.mxu0 %v2559
    %v2579 = vpop.f32.mrf.mxu0
    %v2580 = vadd.f32 0.0, %v2579
    %v2581 = vpop.f32.mrf.mxu0
    %v2582 = vadd.f32 0.0, %v2581
    %2583 = vmatmul.bf16.gmra.mxu0 %v2562
    %v2584 = vpop.f32.mrf.mxu0
    %v2585 = vadd.f32 0.0, %v2584
    %v2586 = vpop.f32.mrf.mxu0
    %v2587 = vadd.f32 0.0, %v2586
    %2588 = vmatmul.bf16.gmra.mxu0 %v2565
    %v2589 = vpop.f32.mrf.mxu0
    %v2590 = vadd.f32 0.0, %v2589
    %v2591 = vpop.f32.mrf.mxu0
    %2592 = vdwg.mxu0
    %2593 = vrot.lane.b32.xlu0 %v2265, 112
    %v2594 = vpop.permute.xlu0 %2593
    %2595 = vrot.lane.b32.xlu0 %v2266, 112
    %v2596 = vpop.permute.xlu0 %2595
    %2597 = vrot.lane.b32.xlu0 %v2267, 112
    %v2598 = vpop.permute.xlu0 %2597
    %2599 = vrot.lane.b32.xlu0 %v2265, 80
    %v2600 = vpop.permute.xlu0 %2599
    %2601 = vrot.lane.b32.xlu0 %v2266, 80
    %v2602 = vpop.permute.xlu0 %2601
    %2603 = vrot.lane.b32.xlu0 %v2267, 80
    %v2604 = vpop.permute.xlu0 %2603
    %v2606 = vsel %vm950, %v2594, 0
    %v2609 = vsel %vm950, %v2596, 0
    %v2612 = vsel %vm950, %v2598, 0
    %v2615 = vsel %vm950, %v2600, 0
    %v2618 = vsel %vm950, %v2602, 0
    %v2621 = vsel %vm950, %v2604, 0
    %2623 = vmatpush.bf16.xpose.msra.mxu0 0
    %2624 = vmatpush.bf16.xpose.msra.mxu0 0
    %2625 = vmatpush.bf16.xpose.msra.mxu0 0
    %2626 = vmatpush.bf16.xpose.msra.mxu0 0
    %2627 = vmatpush.bf16.xpose.msra.mxu0 0
    %2628 = vmatpush.bf16.xpose.msra.mxu0 %v2621
    %2629 = vmatpush.bf16.xpose.msra.mxu0 %v2618
    %2630 = vmatpush.bf16.xpose.msra.mxu0 %v2615
    %2631 = vmatmul.bf16.gmra.mxu0 %v2606
    %v2632 = vpop.f32.mrf.mxu0
    %v2633 = vadd.f32 0.0, %v2632
    %v2634 = vpop.f32.mrf.mxu0
    %v2635 = vadd.f32 0.0, %v2634
    %2636 = vmatmul.bf16.gmra.mxu0 %v2609
    %v2637 = vpop.f32.mrf.mxu0
    %v2638 = vadd.f32 0.0, %v2637
    %v2639 = vpop.f32.mrf.mxu0
    %v2640 = vadd.f32 0.0, %v2639
    %2641 = vmatmul.bf16.gmra.mxu0 %v2612
    %v2642 = vpop.f32.mrf.mxu0
    %v2643 = vadd.f32 0.0, %v2642
    %v2644 = vpop.f32.mrf.mxu0
    %2645 = vdwg.mxu0
    %v2646 = vmul.f32 %v2633, 0.35355338
    %v2647 = vmul.f32 %v2635, 0.35355338
    %v2648 = vmul.f32 %v2638, 0.35355338
    %v2649 = vmul.f32 %v2640, 0.35355338
    %v2650 = vmul.f32 %v2643, 0.35355338
    %v2651 = vadd.f32 %v2646, %v218
    %v2652 = vadd.f32 %v2647, %v219
    %v2653 = vadd.f32 %v2648, %v220
    %v2654 = vadd.f32 %v2649, %v221
    %v2655 = vadd.f32 %v2650, %v222
    %v2656 = vsel %vm1002, %v2651, -inf
    %2657 = vmax.xlane.f32.xlu0 %v2656
    %v2658 = vpop.xlane.xlu0 %2657
    %v2659 = vsel %vm1002, %v2652, -inf
    %2660 = vmax.xlane.f32.xlu0 %v2659
    %v2661 = vpop.xlane.xlu0 %2660
    %v2662 = vsel %vm1002, %v2653, -inf
    %2663 = vmax.xlane.f32.xlu0 %v2662
    %v2664 = vpop.xlane.xlu0 %2663
    %v2665 = vsel %vm1002, %v2654, -inf
    %2666 = vmax.xlane.f32.xlu0 %v2665
    %v2667 = vpop.xlane.xlu0 %2666
    %v2668 = vsel %vm1015, %v2655, -inf
    %2669 = vmax.xlane.f32.xlu0 %v2668
    %v2670 = vpop.xlane.xlu0 %2669
    %v2671 = vsub.f32 %v2651, %v2658
    %v2672 = vsub.f32 %v2652, %v2661
    %v2673 = vsub.f32 %v2653, %v2664
    %v2674 = vsub.f32 %v2654, %v2667
    %v2675 = vsub.f32 %v2655, %v2670
    %v2676 = vmul.f32 %v2671, 1.442695
    %v2677 = vpow.pop %v2676
    %v2678 = vmul.f32 %v2672, 1.442695
    %v2679 = vpow.pop %v2678
    %v2680 = vmul.f32 %v2673, 1.442695
    %v2681 = vpow.pop %v2680
    %v2682 = vmul.f32 %v2674, 1.442695
    %v2683 = vpow.pop %v2682
    %v2684 = vmul.f32 %v2675, 1.442695
    %v2685 = vpow.pop %v2684
    %v2686 = vsel %vm1002, %v2677, 0.0
    %2687 = vadd.xlane.f32.xlu0 %v2686
    %v2688 = vpop.xlane.xlu0 %2687
    %v2689 = vsel %vm1002, %v2679, 0.0
    %2690 = vadd.xlane.f32.xlu0 %v2689
    %v2691 = vpop.xlane.xlu0 %2690
    %v2692 = vsel %vm1002, %v2681, 0.0
    %2693 = vadd.xlane.f32.xlu0 %v2692
    %v2694 = vpop.xlane.xlu0 %2693
    %v2695 = vsel %vm1002, %v2683, 0.0
    %2696 = vadd.xlane.f32.xlu0 %v2695
    %v2697 = vpop.xlane.xlu0 %2696
    %v2698 = vsel %vm1015, %v2685, 0.0
    %2699 = vadd.xlane.f32.xlu0 %v2698
    %v2700 = vpop.xlane.xlu0 %2699
    %v2701 = vrcp.pop %v2688
    %v2702 = vrcp.pop %v2691
    %v2703 = vrcp.pop %v2694
    %v2704 = vrcp.pop %v2697
    %v2705 = vrcp.pop %v2700
    %v2706 = vmul.f32 %v2677, %v2701
    %v2707 = vmul.f32 %v2679, %v2702
    %v2708 = vmul.f32 %v2681, %v2703
    %v2709 = vmul.f32 %v2683, %v2704
    %v2710 = vmul.f32 %v2685, %v2705
    %v2711 = vpack.c.bf16 %v2707, %v2706
    %v2712 = vpack.c.bf16 %v2709, %v2708
    %v2713 = vpack.c.bf16 %v2710, %v2710
    %2714 = vrot.lane.b32.xlu0 %v2265, 48
    %v2715 = vpop.permute.xlu0 %2714
    %2716 = vrot.lane.b32.xlu0 %v2266, 48
    %v2717 = vpop.permute.xlu0 %2716
    %2718 = vrot.lane.b32.xlu0 %v2267, 48
    %v2719 = vpop.permute.xlu0 %2718
    %v2723 = vsel %vm1002, %v2711, 0
    %v2726 = vsel %vm1002, %v2712, 0
    %v2729 = vsel %vm1002, %v2713, 0
    %v2732 = vsel %vm1079, %v2719, 0
    %2734 = vmatpush.bf16.msra.mxu0 0
    %2735 = vmatpush.bf16.msra.mxu0 0
    %2736 = vmatpush.bf16.msra.mxu0 0
    %2737 = vmatpush.bf16.msra.mxu0 0
    %2738 = vmatpush.bf16.msra.mxu0 0
    %2739 = vmatpush.bf16.msra.mxu0 %v2732
    %2740 = vmatpush.bf16.msra.mxu0 %v2717
    %2741 = vmatpush.bf16.msra.mxu0 %v2715
    %2742 = vmatmul.bf16.gmra.mxu0 %v2723
    %v2743 = vpop.f32.mrf.mxu0
    %v2744 = vadd.f32 0.0, %v2743
    %v2745 = vpop.f32.mrf.mxu0
    %v2746 = vadd.f32 0.0, %v2745
    %2747 = vmatmul.bf16.gmra.mxu0 %v2726
    %v2748 = vpop.f32.mrf.mxu0
    %v2749 = vadd.f32 0.0, %v2748
    %v2750 = vpop.f32.mrf.mxu0
    %v2751 = vadd.f32 0.0, %v2750
    %2752 = vmatmul.bf16.gmra.mxu0 %v2729
    %v2753 = vpop.f32.mrf.mxu0
    %v2754 = vadd.f32 0.0, %v2753
    %v2755 = vpop.f32.mrf.mxu0
    %2756 = vdwg.mxu0
    %2757 = vrot.lane.b32.xlu0 %v2265, 104
    %v2758 = vpop.permute.xlu0 %2757
    %2759 = vrot.lane.b32.xlu0 %v2266, 104
    %v2760 = vpop.permute.xlu0 %2759
    %2761 = vrot.lane.b32.xlu0 %v2267, 104
    %v2762 = vpop.permute.xlu0 %2761
    %2763 = vrot.lane.b32.xlu0 %v2265, 72
    %v2764 = vpop.permute.xlu0 %2763
    %2765 = vrot.lane.b32.xlu0 %v2266, 72
    %v2766 = vpop.permute.xlu0 %2765
    %2767 = vrot.lane.b32.xlu0 %v2267, 72
    %v2768 = vpop.permute.xlu0 %2767
    %v2770 = vsel %vm950, %v2758, 0
    %v2773 = vsel %vm950, %v2760, 0
    %v2776 = vsel %vm950, %v2762, 0
    %v2779 = vsel %vm950, %v2764, 0
    %v2782 = vsel %vm950, %v2766, 0
    %v2785 = vsel %vm950, %v2768, 0
    %2787 = vmatpush.bf16.xpose.msra.mxu0 0
    %2788 = vmatpush.bf16.xpose.msra.mxu0 0
    %2789 = vmatpush.bf16.xpose.msra.mxu0 0
    %2790 = vmatpush.bf16.xpose.msra.mxu0 0
    %2791 = vmatpush.bf16.xpose.msra.mxu0 0
    %2792 = vmatpush.bf16.xpose.msra.mxu0 %v2785
    %2793 = vmatpush.bf16.xpose.msra.mxu0 %v2782
    %2794 = vmatpush.bf16.xpose.msra.mxu0 %v2779
    %2795 = vmatmul.bf16.gmra.mxu0 %v2770
    %v2796 = vpop.f32.mrf.mxu0
    %v2797 = vadd.f32 0.0, %v2796
    %v2798 = vpop.f32.mrf.mxu0
    %v2799 = vadd.f32 0.0, %v2798
    %2800 = vmatmul.bf16.gmra.mxu0 %v2773
    %v2801 = vpop.f32.mrf.mxu0
    %v2802 = vadd.f32 0.0, %v2801
    %v2803 = vpop.f32.mrf.mxu0
    %v2804 = vadd.f32 0.0, %v2803
    %2805 = vmatmul.bf16.gmra.mxu0 %v2776
    %v2806 = vpop.f32.mrf.mxu0
    %v2807 = vadd.f32 0.0, %v2806
    %v2808 = vpop.f32.mrf.mxu0
    %2809 = vdwg.mxu0
    %v2810 = vmul.f32 %v2797, 0.35355338
    %v2811 = vmul.f32 %v2799, 0.35355338
    %v2812 = vmul.f32 %v2802, 0.35355338
    %v2813 = vmul.f32 %v2804, 0.35355338
    %v2814 = vmul.f32 %v2807, 0.35355338
    %v2815 = vadd.f32 %v2810, %v218
    %v2816 = vadd.f32 %v2811, %v219
    %v2817 = vadd.f32 %v2812, %v220
    %v2818 = vadd.f32 %v2813, %v221
    %v2819 = vadd.f32 %v2814, %v222
    %v2820 = vsel %vm1002, %v2815, -inf
    %2821 = vmax.xlane.f32.xlu0 %v2820
    %v2822 = vpop.xlane.xlu0 %2821
    %v2823 = vsel %vm1002, %v2816, -inf
    %2824 = vmax.xlane.f32.xlu0 %v2823
    %v2825 = vpop.xlane.xlu0 %2824
    %v2826 = vsel %vm1002, %v2817, -inf
    %2827 = vmax.xlane.f32.xlu0 %v2826
    %v2828 = vpop.xlane.xlu0 %2827
    %v2829 = vsel %vm1002, %v2818, -inf
    %2830 = vmax.xlane.f32.xlu0 %v2829
    %v2831 = vpop.xlane.xlu0 %2830
    %v2832 = vsel %vm1015, %v2819, -inf
    %2833 = vmax.xlane.f32.xlu0 %v2832
    %v2834 = vpop.xlane.xlu0 %2833
    %v2835 = vsub.f32 %v2815, %v2822
    %v2836 = vsub.f32 %v2816, %v2825
    %v2837 = vsub.f32 %v2817, %v2828
    %v2838 = vsub.f32 %v2818, %v2831
    %v2839 = vsub.f32 %v2819, %v2834
    %v2840 = vmul.f32 %v2835, 1.442695
    %v2841 = vpow.pop %v2840
    %v2842 = vmul.f32 %v2836, 1.442695
    %v2843 = vpow.pop %v2842
    %v2844 = vmul.f32 %v2837, 1.442695
    %v2845 = vpow.pop %v2844
    %v2846 = vmul.f32 %v2838, 1.442695
    %v2847 = vpow.pop %v2846
    %v2848 = vmul.f32 %v2839, 1.442695
    %v2849 = vpow.pop %v2848
    %v2850 = vsel %vm1002, %v2841, 0.0
    %2851 = vadd.xlane.f32.xlu0 %v2850
    %v2852 = vpop.xlane.xlu0 %2851
    %v2853 = vsel %vm1002, %v2843, 0.0
    %2854 = vadd.xlane.f32.xlu0 %v2853
    %v2855 = vpop.xlane.xlu0 %2854
    %v2856 = vsel %vm1002, %v2845, 0.0
    %2857 = vadd.xlane.f32.xlu0 %v2856
    %v2858 = vpop.xlane.xlu0 %2857
    %v2859 = vsel %vm1002, %v2847, 0.0
    %2860 = vadd.xlane.f32.xlu0 %v2859
    %v2861 = vpop.xlane.xlu0 %2860
    %v2862 = vsel %vm1015, %v2849, 0.0
    %2863 = vadd.xlane.f32.xlu0 %v2862
    %v2864 = vpop.xlane.xlu0 %2863
    %v2865 = vrcp.pop %v2852
    %v2866 = vrcp.pop %v2855
    %v2867 = vrcp.pop %v2858
    %v2868 = vrcp.pop %v2861
    %v2869 = vrcp.pop %v2864
    %v2870 = vmul.f32 %v2841, %v2865
    %v2871 = vmul.f32 %v2843, %v2866
    %v2872 = vmul.f32 %v2845, %v2867
    %v2873 = vmul.f32 %v2847, %v2868
    %v2874 = vmul.f32 %v2849, %v2869
    %v2875 = vpack.c.bf16 %v2871, %v2870
    %v2876 = vpack.c.bf16 %v2873, %v2872
    %v2877 = vpack.c.bf16 %v2874, %v2874
    %2878 = vrot.lane.b32.xlu0 %v2265, 40
    %v2879 = vpop.permute.xlu0 %2878
    %2880 = vrot.lane.b32.xlu0 %v2266, 40
    %v2881 = vpop.permute.xlu0 %2880
    %2882 = vrot.lane.b32.xlu0 %v2267, 40
    %v2883 = vpop.permute.xlu0 %2882
    %v2887 = vsel %vm1002, %v2875, 0
    %v2890 = vsel %vm1002, %v2876, 0
    %v2893 = vsel %vm1002, %v2877, 0
    %v2896 = vsel %vm1079, %v2883, 0
    %2898 = vmatpush.bf16.msra.mxu0 0
    %2899 = vmatpush.bf16.msra.mxu0 0
    %2900 = vmatpush.bf16.msra.mxu0 0
    %2901 = vmatpush.bf16.msra.mxu0 0
    %2902 = vmatpush.bf16.msra.mxu0 0
    %2903 = vmatpush.bf16.msra.mxu0 %v2896
    %2904 = vmatpush.bf16.msra.mxu0 %v2881
    %2905 = vmatpush.bf16.msra.mxu0 %v2879
    %2906 = vmatmul.bf16.gmra.mxu0 %v2887
    %v2907 = vpop.f32.mrf.mxu0
    %v2908 = vadd.f32 0.0, %v2907
    %v2909 = vpop.f32.mrf.mxu0
    %v2910 = vadd.f32 0.0, %v2909
    %2911 = vmatmul.bf16.gmra.mxu0 %v2890
    %v2912 = vpop.f32.mrf.mxu0
    %v2913 = vadd.f32 0.0, %v2912
    %v2914 = vpop.f32.mrf.mxu0
    %v2915 = vadd.f32 0.0, %v2914
    %2916 = vmatmul.bf16.gmra.mxu0 %v2893
    %v2917 = vpop.f32.mrf.mxu0
    %v2918 = vadd.f32 0.0, %v2917
    %v2919 = vpop.f32.mrf.mxu0
    %2920 = vdwg.mxu0
    %2926 = vrot.lane.b32.xlu0 %v2580, 8
    %v2927 = vpop.permute.xlu0 %2926
    %2928 = vrot.lane.b32.xlu0 %v2582, 8
    %v2929 = vpop.permute.xlu0 %2928
    %2930 = vrot.lane.b32.xlu0 %v2585, 8
    %v2931 = vpop.permute.xlu0 %2930
    %2932 = vrot.lane.b32.xlu0 %v2587, 8
    %v2933 = vpop.permute.xlu0 %2932
    %2934 = vrot.lane.b32.xlu0 %v2590, 8
    %v2935 = vpop.permute.xlu0 %2934
    %2946 = vrot.lane.b32.xlu0 %v2744, 16
    %v2947 = vpop.permute.xlu0 %2946
    %2948 = vrot.lane.b32.xlu0 %v2746, 16
    %v2949 = vpop.permute.xlu0 %2948
    %2950 = vrot.lane.b32.xlu0 %v2749, 16
    %v2951 = vpop.permute.xlu0 %2950
    %2952 = vrot.lane.b32.xlu0 %v2751, 16
    %v2953 = vpop.permute.xlu0 %2952
    %2954 = vrot.lane.b32.xlu0 %v2754, 16
    %v2955 = vpop.permute.xlu0 %2954
    %2966 = vrot.lane.b32.xlu0 %v2908, 24
    %v2967 = vpop.permute.xlu0 %2966
    %2968 = vrot.lane.b32.xlu0 %v2910, 24
    %v2969 = vpop.permute.xlu0 %2968
    %2970 = vrot.lane.b32.xlu0 %v2913, 24
    %v2971 = vpop.permute.xlu0 %2970
    %2972 = vrot.lane.b32.xlu0 %v2915, 24
    %v2973 = vpop.permute.xlu0 %2972
    %2974 = vrot.lane.b32.xlu0 %v2918, 24
    %v2975 = vpop.permute.xlu0 %2974
    %v2981 = vsel %vm950, %v2416, %v2927
    %v2982 = vsel %vm950, %v2418, %v2929
    %v2983 = vsel %vm950, %v2421, %v2931
    %v2984 = vsel %vm950, %v2423, %v2933
    %v2985 = vsel %vm950, %v2426, %v2935
    %v2986 = vsel %vm1663, %v2981, %v2947
    %v2987 = vsel %vm1663, %v2982, %v2949
    %v2988 = vsel %vm1663, %v2983, %v2951
    %v2989 = vsel %vm1663, %v2984, %v2953
    %v2990 = vsel %vm1663, %v2985, %v2955
    %v2991 = vsel %vm1669, %v2986, %v2967
    %v2992 = vsel %vm1669, %v2987, %v2969
    %v2993 = vsel %vm1669, %v2988, %v2971
    %v2994 = vsel %vm1669, %v2989, %v2973
    %v2995 = vsel %vm1669, %v2990, %v2975
    %v2996 = vpack.c.bf16 %v2992, %v2991
    %v2997 = vpack.c.bf16 %v2994, %v2993
    %v2998 = vpack.c.bf16 %v2995, %v2995
    %v3003 = vunpack.c.l.b16 %v274
    %v3004 = vunpack.c.l.b16 %v275
    %v3005 = vunpack.c.l.b16 %v276
    %v3006 = vunpack.c.l.b16 %v277
    %v3007 = vpack.c.b16 %v3004, %v3003
    %v3008 = vpack.c.b16 %v3006, %v3005
    %v3012 = vsel %vm373, %v2996, 0
    %v3015 = vsel %vm373, %v2997, 0
    %v3018 = vsel %vm373, %v2998, 0
    %3020 = vmatpush.bf16.msra.mxu0 0
    %3021 = vmatpush.bf16.msra.mxu0 0
    %3022 = vmatpush.bf16.msra.mxu0 0
    %3023 = vmatpush.bf16.msra.mxu0 0
    %3024 = vmatpush.bf16.msra.mxu0 0
    %3025 = vmatpush.bf16.msra.mxu0 0
    %3026 = vmatpush.bf16.msra.mxu0 %v3008
    %3027 = vmatpush.bf16.msra.mxu0 %v3007
    %3028 = vmatmul.bf16.gmra.mxu0 %v3012
    %v3029 = vpop.f32.mrf.mxu0
    %v3030 = vadd.f32 0.0, %v3029
    %v3031 = vpop.f32.mrf.mxu0
    %v3032 = vadd.f32 0.0, %v3031
    %3033 = vmatmul.bf16.gmra.mxu0 %v3015
    %v3034 = vpop.f32.mrf.mxu0
    %v3035 = vadd.f32 0.0, %v3034
    %v3036 = vpop.f32.mrf.mxu0
    %v3037 = vadd.f32 0.0, %v3036
    %3038 = vmatmul.bf16.gmra.mxu0 %v3018
    %v3039 = vpop.f32.mrf.mxu0
    %v3040 = vadd.f32 0.0, %v3039
    %v3041 = vpop.f32.mrf.mxu0
    %3042 = vdwg.mxu0
    %v3043 = vadd.f32 %v2084, %v3030
    %v3044 = vadd.f32 %v2085, %v3032
    %v3045 = vadd.f32 %v2086, %v3035
    %v3046 = vadd.f32 %v2087, %v3037
    %v3047 = vadd.f32 %v2088, %v3040
    %v3049 = vperm.slane %v278, 0
    %v3051 = vadd.f32 %v3043, %v3049
    %v3052 = vadd.f32 %v3044, %v3049
    %v3053 = vadd.f32 %v3045, %v3049
    %v3054 = vadd.f32 %v3046, %v3049
    %v3055 = vadd.f32 %v3047, %v3049
    %v3056 = vsel %vm373, %v3051, 0.0
    %3057 = vadd.xlane.f32.xlu0 %v3056
    %v3058 = vpop.xlane.xlu0 %3057
    %v3059 = vsel %vm373, %v3052, 0.0
    %3060 = vadd.xlane.f32.xlu0 %v3059
    %v3061 = vpop.xlane.xlu0 %3060
    %v3062 = vsel %vm373, %v3053, 0.0
    %3063 = vadd.xlane.f32.xlu0 %v3062
    %v3064 = vpop.xlane.xlu0 %3063
    %v3065 = vsel %vm373, %v3054, 0.0
    %3066 = vadd.xlane.f32.xlu0 %v3065
    %v3067 = vpop.xlane.xlu0 %3066
    %v3068 = vsel %vm386, %v3055, 0.0
    %3069 = vadd.xlane.f32.xlu0 %v3068
    %v3070 = vpop.xlane.xlu0 %3069
    %v3071 = vmul.f32 %v3058, %v396
    %v3072 = vmul.f32 %v3061, %v396
    %v3073 = vmul.f32 %v3064, %v396
    %v3074 = vmul.f32 %v3067, %v396
    %v3075 = vmul.f32 %v3070, %v396
    %v3076 = vsub.f32 %v3051, %v3071
    %v3077 = vsub.f32 %v3052, %v3072
    %v3078 = vsub.f32 %v3053, %v3073
    %v3079 = vsub.f32 %v3054, %v3074
    %v3080 = vsub.f32 %v3055, %v3075
    %v3081 = vmul.f32 %v3076, %v3076
    %v3082 = vmul.f32 %v3077, %v3077
    %v3083 = vmul.f32 %v3078, %v3078
    %v3084 = vmul.f32 %v3079, %v3079
    %v3085 = vmul.f32 %v3080, %v3080
    %v3086 = vsel %vm373, %v3081, 0.0
    %3087 = vadd.xlane.f32.xlu0 %v3086
    %v3088 = vpop.xlane.xlu0 %3087
    %v3089 = vsel %vm373, %v3082, 0.0
    %3090 = vadd.xlane.f32.xlu0 %v3089
    %v3091 = vpop.xlane.xlu0 %3090
    %v3092 = vsel %vm373, %v3083, 0.0
    %3093 = vadd.xlane.f32.xlu0 %v3092
    %v3094 = vpop.xlane.xlu0 %3093
    %v3095 = vsel %vm373, %v3084, 0.0
    %3096 = vadd.xlane.f32.xlu0 %v3095
    %v3097 = vpop.xlane.xlu0 %3096
    %v3098 = vsel %vm386, %v3085, 0.0
    %3099 = vadd.xlane.f32.xlu0 %v3098
    %v3100 = vpop.xlane.xlu0 %3099
    %v3101 = vmul.f32 %v3088, %v396
    %v3102 = vmul.f32 %v3091, %v396
    %v3103 = vmul.f32 %v3094, %v396
    %v3104 = vmul.f32 %v3097, %v396
    %v3105 = vmul.f32 %v3100, %v396
    %v3106 = vadd.f32 %v3101, 1e-06
    %v3107 = vadd.f32 %v3102, 1e-06
    %v3108 = vadd.f32 %v3103, 1e-06
    %v3109 = vadd.f32 %v3104, 1e-06
    %v3110 = vadd.f32 %v3105, 1e-06
    %v3111 = vrsqrt.pop %v3106
    %v3112 = vmul.f32 %v3111, %v3106
    %v3113 = vmul.f32 %v3112, %v3111
    %v3114 = vmul.f32 0.5, %v3113
    %v3115 = vsub.f32 1.5, %v3114
    %v3116 = vmul.f32 %v3111, %v3115
    %vm3117 = vweird.f32 %v3106
    %vm3118 = vweird.f32 %v3111
    %vm3119 = vmor %vm3117, %vm3118
    %v3120 = vsel %vm3119, %v3111, %v3116
    %v3121 = vrsqrt.pop %v3107
    %v3122 = vmul.f32 %v3121, %v3107
    %v3123 = vmul.f32 %v3122, %v3121
    %v3124 = vmul.f32 0.5, %v3123
    %v3125 = vsub.f32 1.5, %v3124
    %v3126 = vmul.f32 %v3121, %v3125
    %vm3127 = vweird.f32 %v3107
    %vm3128 = vweird.f32 %v3121
    %vm3129 = vmor %vm3127, %vm3128
    %v3130 = vsel %vm3129, %v3121, %v3126
    %v3131 = vrsqrt.pop %v3108
    %v3132 = vmul.f32 %v3131, %v3108
    %v3133 = vmul.f32 %v3132, %v3131
    %v3134 = vmul.f32 0.5, %v3133
    %v3135 = vsub.f32 1.5, %v3134
    %v3136 = vmul.f32 %v3131, %v3135
    %vm3137 = vweird.f32 %v3108
    %vm3138 = vweird.f32 %v3131
    %vm3139 = vmor %vm3137, %vm3138
    %v3140 = vsel %vm3139, %v3131, %v3136
    %v3141 = vrsqrt.pop %v3109
    %v3142 = vmul.f32 %v3141, %v3109
    %v3143 = vmul.f32 %v3142, %v3141
    %v3144 = vmul.f32 0.5, %v3143
    %v3145 = vsub.f32 1.5, %v3144
    %v3146 = vmul.f32 %v3141, %v3145
    %vm3147 = vweird.f32 %v3109
    %vm3148 = vweird.f32 %v3141
    %vm3149 = vmor %vm3147, %vm3148
    %v3150 = vsel %vm3149, %v3141, %v3146
    %v3151 = vrsqrt.pop %v3110
    %v3152 = vmul.f32 %v3151, %v3110
    %v3153 = vmul.f32 %v3152, %v3151
    %v3154 = vmul.f32 0.5, %v3153
    %v3155 = vsub.f32 1.5, %v3154
    %v3156 = vmul.f32 %v3151, %v3155
    %vm3157 = vweird.f32 %v3110
    %vm3158 = vweird.f32 %v3151
    %vm3159 = vmor %vm3157, %vm3158
    %v3160 = vsel %vm3159, %v3151, %v3156
    %v3161 = vmul.f32 %v3076, %v3120
    %v3162 = vmul.f32 %v3077, %v3130
    %v3163 = vmul.f32 %v3078, %v3140
    %v3164 = vmul.f32 %v3079, %v3150
    %v3165 = vmul.f32 %v3080, %v3160
    %v3167 = vperm.slane %v279, 0
    %v3169 = vmul.f32 %v3161, %v3167
    %v3170 = vmul.f32 %v3162, %v3167
    %v3171 = vmul.f32 %v3163, %v3167
    %v3172 = vmul.f32 %v3164, %v3167
    %v3173 = vmul.f32 %v3165, %v3167
    %v3175 = vperm.slane %v280, 0
    %v3177 = vadd.f32 %v3169, %v3175
    %v3178 = vadd.f32 %v3170, %v3175
    %v3179 = vadd.f32 %v3171, %v3175
    %v3180 = vadd.f32 %v3172, %v3175
    %v3181 = vadd.f32 %v3173, %v3175
    %v3182 = vpack.c.bf16 %v3178, %v3177
    %v3183 = vpack.c.bf16 %v3180, %v3179
    %v3184 = vpack.c.bf16 %v3181, %v3181
    %v3186 = vperm.slane %v285, 0
    %v3192 = vunpack.c.l.b16 %v281
    %v3193 = vunpack.c.l.b16 %v282
    %v3194 = vunpack.c.l.b16 %v283
    %v3195 = vunpack.c.l.b16 %v284
    %v3196 = vpack.c.b16 %v3193, %v3192
    %v3197 = vpack.c.b16 %v3195, %v3194
    %v3201 = vsel %vm373, %v3182, 0
    %v3204 = vsel %vm373, %v3183, 0
    %v3207 = vsel %vm373, %v3184, 0
    %3209 = vmatpush.bf16.msra.mxu0 0
    %3210 = vmatpush.bf16.msra.mxu0 0
    %3211 = vmatpush.bf16.msra.mxu0 0
    %3212 = vmatpush.bf16.msra.mxu0 0
    %3213 = vmatpush.bf16.msra.mxu0 0
    %3214 = vmatpush.bf16.msra.mxu0 0
    %3215 = vmatpush.bf16.msra.mxu0 %v3197
    %3216 = vmatpush.bf16.msra.mxu0 %v3196
    %3217 = vmatmul.bf16.gmra.mxu0 %v3201
    %v3218 = vpop.f32.mrf.mxu0
    %v3219 = vadd.f32 %v3186, %v3218
    %v3220 = vpop.f32.mrf.mxu0
    %v3221 = vadd.f32 %v3186, %v3220
    %3222 = vmatmul.bf16.gmra.mxu0 %v3204
    %v3223 = vpop.f32.mrf.mxu0
    %v3224 = vadd.f32 %v3186, %v3223
    %v3225 = vpop.f32.mrf.mxu0
    %v3226 = vadd.f32 %v3186, %v3225
    %3227 = vmatmul.bf16.gmra.mxu0 %v3207
    %v3228 = vpop.f32.mrf.mxu0
    %v3229 = vadd.f32 %v3186, %v3228
    %v3230 = vpop.f32.mrf.mxu0
    %3231 = vdwg.mxu0
    %v3232 = vmul.f32 %v3219, 1.702
    %v3233 = vmul.f32 %v3221, 1.702
    %v3234 = vmul.f32 %v3224, 1.702
    %v3235 = vmul.f32 %v3226, 1.702
    %v3236 = vmul.f32 %v3229, 1.702
    %v3237 = vxor.u32 %v3232, 2147483648
    %v3238 = vxor.u32 %v3233, 2147483648
    %v3239 = vxor.u32 %v3234, 2147483648
    %v3240 = vxor.u32 %v3235, 2147483648
    %v3241 = vxor.u32 %v3236, 2147483648
    %v3242 = vmul.f32 %v3237, 1.442695
    %v3243 = vpow.pop %v3242
    %v3244 = vmul.f32 %v3238, 1.442695
    %v3245 = vpow.pop %v3244
    %v3246 = vmul.f32 %v3239, 1.442695
    %v3247 = vpow.pop %v3246
    %v3248 = vmul.f32 %v3240, 1.442695
    %v3249 = vpow.pop %v3248
    %v3250 = vmul.f32 %v3241, 1.442695
    %v3251 = vpow.pop %v3250
    %v3252 = vadd.f32 %v3243, 1.0
    %v3253 = vadd.f32 %v3245, 1.0
    %v3254 = vadd.f32 %v3247, 1.0
    %v3255 = vadd.f32 %v3249, 1.0
    %v3256 = vadd.f32 %v3251, 1.0
    %v3257 = vrcp.pop %v3252
    %v3258 = vmul.f32 %v3252, %v3257
    %v3259 = vsub.f32 1.0, %v3258
    %v3260 = vmul.f32 %v3257, %v3259
    %v3261 = vadd.f32 %v3257, %v3260
    %vm3262 = vweird.f32 %v3252
    %vm3263 = vweird.f32 %v3257
    %vm3264 = vmor %vm3262, %vm3263
    %v3265 = vsel %vm3264, %v3257, %v3261
    %v3266 = vand.u32 2147483647, %v3252
    %vm3267 = vcmp.eq.f32.partialorder %v3266, 8.507059e+37
    %v3268 = vand.u32 %v3252, 2147483648
    %v3269 = vor.u32 1.1754944e-38, %v3268
    %v3270 = vsel %vm3267, %v3269, %v3265
    %v3271 = vmul.f32 1.0, %v3270
    %v3272 = vrcp.pop %v3253
    %v3273 = vmul.f32 %v3253, %v3272
    %v3274 = vsub.f32 1.0, %v3273
    %v3275 = vmul.f32 %v3272, %v3274
    %v3276 = vadd.f32 %v3272, %v3275
    %vm3277 = vweird.f32 %v3253
    %vm3278 = vweird.f32 %v3272
    %vm3279 = vmor %vm3277, %vm3278
    %v3280 = vsel %vm3279, %v3272, %v3276
    %v3281 = vand.u32 2147483647, %v3253
    %vm3282 = vcmp.eq.f32.partialorder %v3281, 8.507059e+37
    %v3283 = vand.u32 %v3253, 2147483648
    %v3284 = vor.u32 1.1754944e-38, %v3283
    %v3285 = vsel %vm3282, %v3284, %v3280
    %v3286 = vmul.f32 1.0, %v3285
    %v3287 = vrcp.pop %v3254
    %v3288 = vmul.f32 %v3254, %v3287
    %v3289 = vsub.f32 1.0, %v3288
    %v3290 = vmul.f32 %v3287, %v3289
    %v3291 = vadd.f32 %v3287, %v3290
    %vm3292 = vweird.f32 %v3254
    %vm3293 = vweird.f32 %v3287
    %vm3294 = vmor %vm3292, %vm3293
    %v3295 = vsel %vm3294, %v3287, %v3291
    %v3296 = vand.u32 2147483647, %v3254
    %vm3297 = vcmp.eq.f32.partialorder %v3296, 8.507059e+37
    %v3298 = vand.u32 %v3254, 2147483648
    %v3299 = vor.u32 1.1754944e-38, %v3298
    %v3300 = vsel %vm3297, %v3299, %v3295
    %v3301 = vmul.f32 1.0, %v3300
    %v3302 = vrcp.pop %v3255
    %v3303 = vmul.f32 %v3255, %v3302
    %v3304 = vsub.f32 1.0, %v3303
    %v3305 = vmul.f32 %v3302, %v3304
    %v3306 = vadd.f32 %v3302, %v3305
    %vm3307 = vweird.f32 %v3255
    %vm3308 = vweird.f32 %v3302
    %vm3309 = vmor %vm3307, %vm3308
    %v3310 = vsel %vm3309, %v3302, %v3306
    %v3311 = vand.u32 2147483647, %v3255
    %vm3312 = vcmp.eq.f32.partialorder %v3311, 8.507059e+37
    %v3313 = vand.u32 %v3255, 2147483648
    %v3314 = vor.u32 1.1754944e-38, %v3313
    %v3315 = vsel %vm3312, %v3314, %v3310
    %v3316 = vmul.f32 1.0, %v3315
    %v3317 = vrcp.pop %v3256
    %v3318 = vmul.f32 %v3256, %v3317
    %v3319 = vsub.f32 1.0, %v3318
    %v3320 = vmul.f32 %v3317, %v3319
    %v3321 = vadd.f32 %v3317, %v3320
    %vm3322 = vweird.f32 %v3256
    %vm3323 = vweird.f32 %v3317
    %vm3324 = vmor %vm3322, %vm3323
    %v3325 = vsel %vm3324, %v3317, %v3321
    %v3326 = vand.u32 2147483647, %v3256
    %vm3327 = vcmp.eq.f32.partialorder %v3326, 8.507059e+37
    %v3328 = vand.u32 %v3256, 2147483648
    %v3329 = vor.u32 1.1754944e-38, %v3328
    %v3330 = vsel %vm3327, %v3329, %v3325
    %v3331 = vmul.f32 1.0, %v3330
    %v3332 = vmul.f32 %v3219, %v3271
    %v3333 = vmul.f32 %v3221, %v3286
    %v3334 = vmul.f32 %v3224, %v3301
    %v3335 = vmul.f32 %v3226, %v3316
    %v3336 = vmul.f32 %v3229, %v3331
    %v3337 = vpack.c.bf16 %v3333, %v3332
    %v3338 = vpack.c.bf16 %v3335, %v3334
    %v3339 = vpack.c.bf16 %v3336, %v3336
    %v3348 = vunpack.c.l.b16 %v286
    %v3349 = vunpack.c.l.b16 %v287
    %v3350 = vunpack.c.l.b16 %v288
    %v3351 = vunpack.c.l.b16 %v289
    %v3352 = vunpack.c.l.b16 %v290
    %v3353 = vunpack.c.l.b16 %v291
    %v3354 = vunpack.c.l.b16 %v292
    %v3355 = vunpack.c.l.b16 %v293
    %v3356 = vpack.c.b16 %v3349, %v3348
    %v3357 = vpack.c.b16 %v3351, %v3350
    %v3358 = vpack.c.b16 %v3353, %v3352
    %v3359 = vpack.c.b16 %v3355, %v3354
    %v3365 = vsel %vm2043, %v3337, 0
    %v3368 = vsel %vm2043, %v3338, 0
    %v3371 = vsel %vm2043, %v3339, 0
    %3373 = vmatpush.bf16.msra.mxu0 0
    %3374 = vmatpush.bf16.msra.mxu0 0
    %3375 = vmatpush.bf16.msra.mxu0 0
    %3376 = vmatpush.bf16.msra.mxu0 0
    %3377 = vmatpush.bf16.msra.mxu0 %v3359
    %3378 = vmatpush.bf16.msra.mxu0 %v3358
    %3379 = vmatpush.bf16.msra.mxu0 %v3357
    %3380 = vmatpush.bf16.msra.mxu0 %v3356
    %3381 = vmatmul.bf16.gmra.mxu0 %v3365
    %v3382 = vpop.f32.mrf.mxu0
    %v3383 = vadd.f32 0.0, %v3382
    %v3384 = vpop.f32.mrf.mxu0
    %3385 = vmatmul.bf16.gmra.mxu0 %v3368
    %v3386 = vpop.f32.mrf.mxu0
    %v3387 = vadd.f32 0.0, %v3386
    %v3388 = vpop.f32.mrf.mxu0
    %3389 = vmatmul.bf16.gmra.mxu0 %v3371
    %v3390 = vpop.f32.mrf.mxu0
    %v3391 = vpop.f32.mrf.mxu0
    %3392 = vdwg.mxu0
    %v3393 = vadd.f32 %v3051, %v3383
    %v3394 = vadd.f32 %v3053, %v3387
    %v3396 = vperm.slane %v294, 0
    %v3398 = vadd.f32 %v3393, %v3396
    %v3399 = vadd.f32 %v3394, %v3396
    %v3400 = vsel %vm1079, %v3398, %v3399
    %v3401 = vsel %vm386, %v3400, 0.0
    %3402 = vadd.xlane.f32.xlu0 %v3401
    %v3403 = vpop.xlane.xlu0 %3402
    %v3404 = vmul.f32 %v3403, %v396
    %v3405 = vsub.f32 %v3400, %v3404
    %v3406 = vmul.f32 %v3405, %v3405
    %v3407 = vsel %vm386, %v3406, 0.0
    %3408 = vadd.xlane.f32.xlu0 %v3407
    %v3409 = vpop.xlane.xlu0 %3408
    %v3410 = vmul.f32 %v3409, %v396
    %v3411 = vadd.f32 %v3410, 1e-06
    %v3412 = vrsqrt.pop %v3411
    %v3413 = vmul.f32 %v3412, %v3411
    %v3414 = vmul.f32 %v3413, %v3412
    %v3415 = vmul.f32 0.5, %v3414
    %v3416 = vsub.f32 1.5, %v3415
    %v3417 = vmul.f32 %v3412, %v3416
    %vm3418 = vweird.f32 %v3411
    %vm3419 = vweird.f32 %v3412
    %vm3420 = vmor %vm3418, %vm3419
    %v3421 = vsel %vm3420, %v3412, %v3417
    %v3422 = vmul.f32 %v3405, %v3421
    %v3424 = vperm.slane %v295, 0
    %v3426 = vmul.f32 %v3422, %v3424
    %v3428 = vperm.slane %v296, 0
    %v3430 = vadd.f32 %v3426, %v3428
    %v3431 = vpack.c.bf16 %v3430, %v3430
    %v3433 = vperm.slane %v301, 0
    %v3439 = vunpack.c.l.b16 %v297
    %v3440 = vunpack.c.l.b16 %v298
    %v3441 = vunpack.c.l.b16 %v299
    %v3442 = vunpack.c.l.b16 %v300
    %v3443 = vpack.c.b16 %v3440, %v3439
    %v3444 = vpack.c.b16 %v3442, %v3441
    %v3448 = vsel %vm373, %v3431, 0
    %3450 = vmatpush.bf16.msra.mxu0 0
    %3451 = vmatpush.bf16.msra.mxu0 0
    %3452 = vmatpush.bf16.msra.mxu0 0
    %3453 = vmatpush.bf16.msra.mxu0 0
    %3454 = vmatpush.bf16.msra.mxu0 0
    %3455 = vmatpush.bf16.msra.mxu0 0
    %3456 = vmatpush.bf16.msra.mxu0 %v3444
    %3457 = vmatpush.bf16.msra.mxu0 %v3443
    %3458 = vmatmul.bf16.gmra.mxu0 %v3448
    %v3459 = vpop.f32.mrf.mxu0
    %v3460 = vadd.f32 %v3433, %v3459
    %v3461 = vpop.f32.mrf.mxu0
    %3462 = vdwg.mxu0
    %v3463 = vtanh.pop %v3460
    %v3464 = vpack.c.bf16 %v3463, %v3463
    %v3466 = vperm.slane %v306, 0
    %v3472 = vunpack.c.l.b16 %v302
    %v3473 = vunpack.c.l.b16 %v303
    %v3474 = vunpack.c.l.b16 %v304
    %v3475 = vunpack.c.l.b16 %v305
    %v3476 = vpack.c.b16 %v3473, %v3472
    %v3477 = vpack.c.b16 %v3475, %v3474
    %v3481 = vsel %vm373, %v3464, 0
    %3483 = vmatpush.bf16.msra.mxu0 0
    %3484 = vmatpush.bf16.msra.mxu0 0
    %3485 = vmatpush.bf16.msra.mxu0 0
    %3486 = vmatpush.bf16.msra.mxu0 0
    %3487 = vmatpush.bf16.msra.mxu0 0
    %3488 = vmatpush.bf16.msra.mxu0 0
    %3489 = vmatpush.bf16.msra.mxu0 %v3477
    %3490 = vmatpush.bf16.msra.mxu0 %v3476
    %3491 = vmatmul.bf16.gmra.mxu0 %v3481
    %v3492 = vpop.f32.mrf.mxu0
    %v3493 = vadd.f32 %v3466, %v3492
    %v3494 = vpop.f32.mrf.mxu0
    %3495 = vdwg.mxu0
    %v3496 = vmul.f32 %v3493, 1.702
    %v3497 = vxor.u32 %v3496, 2147483648
    %v3498 = vmul.f32 %v3497, 1.442695
    %v3499 = vpow.pop %v3498
    %v3500 = vadd.f32 %v3499, 1.0
    %v3501 = vrcp.pop %v3500
    %v3502 = vmul.f32 %v3500, %v3501
    %v3503 = vsub.f32 1.0, %v3502
    %v3504 = vmul.f32 %v3501, %v3503
    %v3505 = vadd.f32 %v3501, %v3504
    %vm3506 = vweird.f32 %v3500
    %vm3507 = vweird.f32 %v3501
    %vm3508 = vmor %vm3506, %vm3507
    %v3509 = vsel %vm3508, %v3501, %v3505
    %v3510 = vand.u32 2147483647, %v3500
    %vm3511 = vcmp.eq.f32.partialorder %v3510, 8.507059e+37
    %v3512 = vand.u32 %v3500, 2147483648
    %v3513 = vor.u32 1.1754944e-38, %v3512
    %v3514 = vsel %vm3511, %v3513, %v3509
    %v3515 = vmul.f32 1.0, %v3514
    %v3516 = vmul.f32 %v3493, %v3515
    %v3517 = vpack.c.bf16 %v3516, %v3516
    %v3519 = vperm.slane %v315, 0
    %v3529 = vunpack.c.l.b16 %v307
    %v3530 = vunpack.c.l.b16 %v308
    %v3531 = vunpack.c.l.b16 %v309
    %v3532 = vunpack.c.l.b16 %v310
    %v3533 = vunpack.c.l.b16 %v311
    %v3534 = vunpack.c.l.b16 %v312
    %v3535 = vunpack.c.l.b16 %v313
    %v3536 = vunpack.c.l.b16 %v314
    %v3537 = vpack.c.b16 %v3530, %v3529
    %v3538 = vpack.c.b16 %v3532, %v3531
    %v3539 = vpack.c.b16 %v3534, %v3533
    %v3540 = vpack.c.b16 %v3536, %v3535
    %v3546 = vsel %vm2043, %v3517, 0
    %3548 = vmatpush.bf16.msra.mxu0 0
    %3549 = vmatpush.bf16.msra.mxu0 0
    %3550 = vmatpush.bf16.msra.mxu0 0
    %3551 = vmatpush.bf16.msra.mxu0 0
    %3552 = vmatpush.bf16.msra.mxu0 %v3540
    %3553 = vmatpush.bf16.msra.mxu0 %v3539
    %3554 = vmatpush.bf16.msra.mxu0 %v3538
    %3555 = vmatpush.bf16.msra.mxu0 %v3537
    %3556 = vmatmul.bf16.gmra.mxu0 %v3546
    %v3557 = vpop.f32.mrf.mxu0
    %v3558 = vadd.f32 %v3519, %v3557
    %v3559 = vpop.f32.mrf.mxu0
    %3560 = vdwg.mxu0
    %vm3561 = vcmask 74752
    %3562 = vst.msk [vmem:[#allocation5] sm:$0x3] %vm3561, %v3558
    // Predicated region
    $region186: #{vit_forward.1} parent=1 // pred_check
      _
    $region187: #{vit_forward.1} parent=1 // pred_check_branch
      %3564 = sbr.rel (0) target = $region189
    $region188: #{vit_forward.1} parent=1 // pred_region
      %3566 = vsyncadd [#allocation4], 0
      %s3568 = sshll.u32 [#allocation5], 4
      %s3569 = int_to_ptr.vmem [resolvable:$true] %s3568
      %s3570 = sshll.u32 %s91, 4
      %s3571 = int_to_ptr.hbm [resolvable:$true] %s3570
      %3573 = dma.vmem_to_hbm [thread:$0]  %s3569, 32, %s3571, [#allocation4]
    $region189: #{vit_forward.1} parent=1 // pred_fallthru
      _
    // Predicated region
    $region190: #{vit_forward.1} parent=1 // pred_check
      _
    $region191: #{vit_forward.1} parent=1 // pred_check_branch
      %3575 = sbr.rel (0) target = $region193
    $region192: #{vit_forward.1} parent=1 // pred_region
      %3577 = dma.done [#allocation4], 32
    $region193: #{vit_forward.1} parent=1 // pred_fallthru
      _
    %3578 = vsyncpa [#allocation3], 1
    %3579 = vsyncpa [#allocation4], 1

</llo_original>
